<compile_context>
chip_gen: v7x
topology: tpu7x:2x2x1
jax: 0.10.0
libtpu: 0.0.40
codegen_flags: <defaults>
</compile_context>

<pallas_src>
import jax
import jax.numpy as jnp
from jax.experimental import pallas as pl
from jax.experimental.pallas import tpu as pltpu

# ----------------------------- model config (small) -------------------------
B = 2              # batch
IN_CH = 3          # image channels
IMG = 64           # image height = width
PATCH = 16         # patch size
N_PATCHES = (IMG // PATCH) * (IMG // PATCH)   # 16
SEQ = 1 + N_PATCHES                           # cls token + patches = 17
D = 128            # transformer hidden (stands in for in_planes=768)
NUM_HEADS = 4
HEAD_DIM = D // NUM_HEADS
MLP_H = 256
DEPTH = 2
BLOCK = 4          # number of heat parts (self.block)
BOTTLENECK = 128   # ClassBlock num_bottleneck (stands in for 512)
NUM_CLASSES = 16   # unused in eval (ClassBlock returns bottleneck feature)
CPP = IN_CH * PATCH * PATCH                   # 768 per-patch pixels

# split sizes exactly as get_heartmap_pool computes them
_split_each = N_PATCHES / BLOCK
SPLIT_SIZES = [int(_split_each) for _ in range(BLOCK - 1)]
SPLIT_SIZES.append(N_PATCHES - sum(SPLIT_SIZES))

ATTN_SCALE = float(HEAD_DIM) ** -0.5


# ------------------------------- Pallas kernels ------------------------------
def _vit_kernel(tok_ref, patch_w_ref, patch_b_ref, cls_ref, pos_ref,
                ln1_g_ref, ln1_b_ref, qkv_w_ref, qkv_b_ref,
                proj_w_ref, proj_b_ref, ln2_g_ref, ln2_b_ref,
                fc1_w_ref, fc1_b_ref, fc2_w_ref, fc2_b_ref,
                lnf_g_ref, lnf_b_ref,
                part_ref, heat_ref):
    """Whole ViT backbone for one batch element, fully VMEM-resident."""

    def layer_norm(x, g, b):
        mu = jnp.mean(x, axis=-1, keepdims=True)
        var = jnp.mean((x - mu) * (x - mu), axis=-1, keepdims=True)
        return (x - mu) * jax.lax.rsqrt(var + 1e-6) * g + b

    def mm(a, w):
        # bf16 MXU matmul with f32 accumulation; elementwise math stays f32.
        return jnp.dot(a.astype(jnp.bfloat16), w.astype(jnp.bfloat16),
                       preferred_element_type=jnp.float32)

    # patch embedding + cls token + positional embedding
    tok = tok_ref[0].astype(jnp.float32)                        # [N, CPP]
    x = mm(tok, patch_w_ref[...]) + patch_b_ref[...]            # [N, D]
    x = jnp.concatenate([cls_ref[...], x], axis=0)              # [S, D]
    x = x + pos_ref[...]

    for d in range(DEPTH):                                      # static unroll
        # ----- attention -----
        h = layer_norm(x, ln1_g_ref[d], ln1_b_ref[d])
        qkv = mm(h, qkv_w_ref[d]) + qkv_b_ref[d]                # [S, 3D]
        heads = []
        for hh in range(NUM_HEADS):
            lo = hh * HEAD_DIM
            q = qkv[:, lo:lo + HEAD_DIM]
            k = qkv[:, D + lo:D + lo + HEAD_DIM]
            v = qkv[:, 2 * D + lo:2 * D + lo + HEAD_DIM]
            s = jax.lax.dot_general(
                q.astype(jnp.bfloat16), k.astype(jnp.bfloat16),
                (((1,), (1,)), ((), ())),
                preferred_element_type=jnp.float32) * ATTN_SCALE
            s = s - jnp.max(s, axis=-1, keepdims=True)          # f32 softmax
            p = jnp.exp(s)
            p = p * pl.reciprocal(jnp.sum(p, axis=-1, keepdims=True), approx=True)
            heads.append(jnp.dot(p.astype(jnp.bfloat16), v.astype(jnp.bfloat16),
                                 preferred_element_type=jnp.float32))
        attn = jnp.concatenate(heads, axis=1)                   # [S, D] lane-dense
        x = x + mm(attn, proj_w_ref[d]) + proj_b_ref[d]

        # ----- MLP -----
        h = layer_norm(x, ln2_g_ref[d], ln2_b_ref[d])
        # TODO(synk): tanh-approx GELU; PyTorch nn.GELU default is exact erf
        # (small numerical divergence, kept for robust Mosaic lowering).
        h = jax.nn.gelu(mm(h, fc1_w_ref[d]) + fc1_b_ref[d], approximate=True)
        x = x + mm(h, fc2_w_ref[d]) + fc2_b_ref[d]

    x = layer_norm(x, lnf_g_ref[...], lnf_b_ref[...])           # [S, D]
    part = x[1:, :]                                             # [N, D]
    part_ref[0] = part.astype(part_ref.dtype)
    # heatmap = mean over feature dim (fused; avoids a separate reduction pass)
    heat_ref[0] = jnp.mean(part, axis=-1, keepdims=True).astype(heat_ref.dtype)


def _pool_classify_kernel(pool_w_ref, part_ref, cls_w_ref, cls_b_ref,
                          bn_s_ref, bn_t_ref, out_ref):
    """Sorted group-mean pooling (as a matmul) + all 4 ClassBlocks, one batch el."""
    part = part_ref[0]                                          # [N, D] f32
    pw = pool_w_ref[0]                                          # [BLOCK, N]
    heat = jnp.dot(pw, part, preferred_element_type=jnp.float32)  # [BLOCK, D]

    ys = []
    for g in range(BLOCK):                                      # static unroll
        yg = jnp.dot(heat[g:g + 1, :], cls_w_ref[g],
                     preferred_element_type=jnp.float32)        # [1, BOTTLENECK]
        ys.append(yg)
    y = jnp.concatenate(ys, axis=0)                             # [BLOCK, BOTTLENECK]
    y = (y + cls_b_ref[...]) * bn_s_ref[...] + bn_t_ref[...]    # Linear + BN1d eval
    out_ref[0] = y.astype(out_ref.dtype)


# ------------------------------ kernel wrappers -------------------------------
def vit_forward(x_img, p):
    """Fused ViT backbone: returns (part_features [B,N,D], heatmap [B,N])."""
    Bx = x_img.shape[0]
    # patchify glue: NCHW -> [B, N, C*P*P]
    t = x_img.reshape(Bx, IN_CH, IMG // PATCH, PATCH, IMG // PATCH, PATCH)
    tok = t.transpose(0, 2, 4, 1, 3, 5).reshape(Bx, N_PATCHES, CPP)

    def full(*shape):
        return pl.BlockSpec(shape, lambda b, n=len(shape): (0,) * n)

    flops = 2 * Bx * (N_PATCHES * CPP * D
                      + DEPTH * (SEQ * D * 3 * D
                                 + 2 * NUM_HEADS * SEQ * SEQ * HEAD_DIM
                                 + SEQ * D * D
                                 + 2 * SEQ * D * MLP_H))
    transc = Bx * DEPTH * (NUM_HEADS * SEQ * SEQ + SEQ * MLP_H)
    nbytes = 4 * (tok.size + CPP * D + SEQ * D
                  + DEPTH * (D * 3 * D + D * D + 2 * D * MLP_H)
                  + Bx * N_PATCHES * (D + 1))

    part, heat = pl.pallas_call(
        _vit_kernel,
        out_shape=(jax.ShapeDtypeStruct((Bx, N_PATCHES, D), jnp.float32),
                   jax.ShapeDtypeStruct((Bx, N_PATCHES, 1), jnp.float32)),
        grid=(Bx,),
        in_specs=[
            pl.BlockSpec((1, N_PATCHES, CPP), lambda b: (b, 0, 0)),  # tokens
            full(CPP, D), full(1, D),                                # patch embed
            full(1, D), full(SEQ, D),                                # cls, pos
            full(DEPTH, 1, D), full(DEPTH, 1, D),                    # ln1 g/b
            full(DEPTH, D, 3 * D), full(DEPTH, 1, 3 * D),            # qkv w/b
            full(DEPTH, D, D), full(DEPTH, 1, D),                    # proj w/b
            full(DEPTH, 1, D), full(DEPTH, 1, D),                    # ln2 g/b
            full(DEPTH, D, MLP_H), full(DEPTH, 1, MLP_H),            # fc1 w/b
            full(DEPTH, MLP_H, D), full(DEPTH, 1, D),                # fc2 w/b
            full(1, D), full(1, D),                                  # final ln g/b
        ],
        out_specs=(pl.BlockSpec((1, N_PATCHES, D), lambda b: (b, 0, 0)),
                   pl.BlockSpec((1, N_PATCHES, 1), lambda b: (b, 0, 0))),
        compiler_params=pltpu.CompilerParams(
            dimension_semantics=("parallel",)),
        cost_estimate=pl.CostEstimate(flops=flops, transcendentals=transc,
                                      bytes_accessed=nbytes),
    )(tok, p["patch_w"], p["patch_b"], p["cls_token"], p["pos_embed"],
      p["ln1_g"], p["ln1_b"], p["qkv_w"], p["qkv_b"],
      p["proj_w"], p["proj_b"], p["ln2_g"], p["ln2_b"],
      p["fc1_w"], p["fc1_b"], p["fc2_w"], p["fc2_b"],
      p["ln_g"], p["ln_b"])
    return part, heat[:, :, 0]


def heat_pool_and_classify(part_features, heatmap, cls_params):
    """get_heartmap_pool + part_classifier (eval) in one pallas_call per batch."""
    Bx = part_features.shape[0]

    # argsort (descending) on the tiny [B, N] heatmap in plain JAX, then fold
    # the sorted-group membership into per-group mean weights so the kernel
    # only performs a lane-dense matmul (no gather / ragged slices).
    # Note: tie order may differ from torch.argsort(descending=True).
    arg = jnp.argsort(-heatmap, axis=1)                         # [B, N] descending
    rank = jnp.argsort(arg, axis=1)                             # rank of each token
    pos_group = jnp.asarray(
        sum(([g] * sz for g, sz in enumerate(SPLIT_SIZES)), []), jnp.int32)
    group_ids = pos_group[rank]                                 # [B, N]
    inv_sz = jnp.asarray([1.0 / sz for sz in SPLIT_SIZES], jnp.float32)
    pool_w = (group_ids[:, None, :] == jnp.arange(BLOCK)[None, :, None]
              ).astype(jnp.float32) * inv_sz[None, :, None]     # [B, BLOCK, N]

    out = pl.pallas_call(
        _pool_classify_kernel,
        out_shape=jax.ShapeDtypeStruct((Bx, BLOCK, BOTTLENECK), jnp.float32),
        grid=(Bx,),
        in_specs=[
            pl.BlockSpec((1, BLOCK, N_PATCHES), lambda b: (b, 0, 0)),
            pl.BlockSpec((1, N_PATCHES, D), lambda b: (b, 0, 0)),
            pl.BlockSpec((BLOCK, D, BOTTLENECK), lambda b: (0, 0, 0)),
            pl.BlockSpec((BLOCK, BOTTLENECK), lambda b: (0, 0)),
            pl.BlockSpec((BLOCK, BOTTLENECK), lambda b: (0, 0)),
            pl.BlockSpec((BLOCK, BOTTLENECK), lambda b: (0, 0)),
        ],
        out_specs=pl.BlockSpec((1, BLOCK, BOTTLENECK), lambda b: (b, 0, 0)),
        compiler_params=pltpu.CompilerParams(
            dimension_semantics=("parallel",)),
    )(pool_w, part_features, cls_params["w"], cls_params["b"],
      cls_params["bn_scale"], cls_params["bn_shift"])
    return jnp.transpose(out, (0, 2, 1))                        # [B, BOTTLENECK, BLOCK]


# ------------------------------- model forward --------------------------------
def build_transformer_forward(x_img, params):
    part_features, heatmap = vit_forward(x_img, params["vit"])      # [B,N,D], [B,N]
    y = heat_pool_and_classify(part_features, heatmap,
                               params["classifier_heat"])           # [B,BOTTLENECK,BLOCK]
    # TODO(synk): original forward then concatenates an undefined
    # `tranformer_feature` (NameError in PyTorch) — omitted.
    return y


# ------------------------------- parameter init --------------------------------
def init_params(key):
    keys = iter(jax.random.split(key, 64))

    def nrm(shape, std=0.02):
        return (std * jax.random.normal(next(keys), shape)).astype(jnp.float32)

    def zeros(shape):
        return jnp.zeros(shape, jnp.float32)

    def ones(shape):
        return jnp.ones(shape, jnp.float32)

    def stack(fn):
        return jnp.stack([fn() for _ in range(DEPTH)], axis=0)

    vit = dict(
        patch_w=nrm((CPP, D)),
        patch_b=zeros((1, D)),
        cls_token=nrm((1, D)),
        pos_embed=nrm((SEQ, D)),
        ln1_g=ones((DEPTH, 1, D)), ln1_b=zeros((DEPTH, 1, D)),
        qkv_w=stack(lambda: nrm((D, 3 * D))), qkv_b=zeros((DEPTH, 1, 3 * D)),
        proj_w=stack(lambda: nrm((D, D))), proj_b=zeros((DEPTH, 1, D)),
        ln2_g=ones((DEPTH, 1, D)), ln2_b=zeros((DEPTH, 1, D)),
        fc1_w=stack(lambda: nrm((D, MLP_H))), fc1_b=zeros((DEPTH, 1, MLP_H)),
        fc2_w=stack(lambda: nrm((MLP_H, D))), fc2_b=zeros((DEPTH, 1, D)),
        ln_g=ones((1, D)), ln_b=zeros((1, D)),
    )

    # ClassBlock add_block: kaiming_normal_(fan_out) Linear + BN1d eval
    # (gamma=1, beta=0, running_mean=0, running_var=1, eps=1e-5 -> fused affine).
    kaiming_std = (2.0 / BOTTLENECK) ** 0.5
    bn_scale_val = (1.0 + 1e-5) ** -0.5
    classifier_heat = dict(
        w=jnp.stack([nrm((D, BOTTLENECK), std=kaiming_std) for _ in range(BLOCK)]),
        b=zeros((BLOCK, BOTTLENECK)),
        bn_scale=jnp.full((BLOCK, BOTTLENECK), bn_scale_val, jnp.float32),
        bn_shift=zeros((BLOCK, BOTTLENECK)),
    )
    return dict(vit=vit, classifier_heat=classifier_heat)


# ------------------------------------ main --------------------------------------
if __name__ == "__main__":
    key = jax.random.PRNGKey(0)
    pkey, xkey = jax.random.split(key)
    params = init_params(pkey)
    x = jax.random.normal(xkey, (B, IN_CH, IMG, IMG), dtype=jnp.float32)

    fwd = jax.jit(build_transformer_forward)
    y = jax.block_until_ready(fwd(x, params))

    assert y.shape == (B, BOTTLENECK, BLOCK), y.shape
    assert bool(jnp.all(jnp.isfinite(y)))
    print("KERNEL_OK")
</pallas_src>

<mosaic_0001>
module attributes {stable_mosaic.version = 11 : i64} {
  func.func @_vit_kernel(%arg0: i32, %arg1: memref<1x16x768xf32, #tpu.memory_space<vmem>>, %arg2: memref<768x128xf32, #tpu.memory_space<vmem>>, %arg3: memref<1x128xf32, #tpu.memory_space<vmem>>, %arg4: memref<1x128xf32, #tpu.memory_space<vmem>>, %arg5: memref<17x128xf32, #tpu.memory_space<vmem>>, %arg6: memref<2x1x128xf32, #tpu.memory_space<vmem>>, %arg7: memref<2x1x128xf32, #tpu.memory_space<vmem>>, %arg8: memref<2x128x384xf32, #tpu.memory_space<vmem>>, %arg9: memref<2x1x384xf32, #tpu.memory_space<vmem>>, %arg10: memref<2x128x128xf32, #tpu.memory_space<vmem>>, %arg11: memref<2x1x128xf32, #tpu.memory_space<vmem>>, %arg12: memref<2x1x128xf32, #tpu.memory_space<vmem>>, %arg13: memref<2x1x128xf32, #tpu.memory_space<vmem>>, %arg14: memref<2x128x256xf32, #tpu.memory_space<vmem>>, %arg15: memref<2x1x256xf32, #tpu.memory_space<vmem>>, %arg16: memref<2x256x128xf32, #tpu.memory_space<vmem>>, %arg17: memref<2x1x128xf32, #tpu.memory_space<vmem>>, %arg18: memref<1x128xf32, #tpu.memory_space<vmem>>, %arg19: memref<1x128xf32, #tpu.memory_space<vmem>>, %arg20: memref<1x16x128xf32, #tpu.memory_space<vmem>>, %arg21: memref<1x16x1xf32, #tpu.memory_space<vmem>>) attributes {dimension_semantics = [#tpu.dimension_semantics<parallel>], iteration_bounds = array<i64: 2>, scalar_prefetch = 0 : i64, scratch_operands = 0 : i64, tpu.core_type = #tpu.core_type<tc>, window_params = [{transform_indices = @transform_0, window_bounds = array<i64: 1, 16, 768>}, {pipeline_mode = #tpu.pipeline_mode<synchronous>, transform_indices = @transform_1, window_bounds = array<i64: 768, 128>}, {pipeline_mode = #tpu.pipeline_mode<synchronous>, transform_indices = @transform_2, window_bounds = array<i64: 1, 128>}, {pipeline_mode = #tpu.pipeline_mode<synchronous>, transform_indices = @transform_3, window_bounds = array<i64: 1, 128>}, {pipeline_mode = #tpu.pipeline_mode<synchronous>, transform_indices = @transform_4, window_bounds = array<i64: 17, 128>}, {pipeline_mode = #tpu.pipeline_mode<synchronous>, transform_indices = @transform_5, window_bounds = array<i64: 2, 1, 128>}, {pipeline_mode = #tpu.pipeline_mode<synchronous>, transform_indices = @transform_6, window_bounds = array<i64: 2, 1, 128>}, {pipeline_mode = #tpu.pipeline_mode<synchronous>, transform_indices = @transform_7, window_bounds = array<i64: 2, 128, 384>}, {pipeline_mode = #tpu.pipeline_mode<synchronous>, transform_indices = @transform_8, window_bounds = array<i64: 2, 1, 384>}, {pipeline_mode = #tpu.pipeline_mode<synchronous>, transform_indices = @transform_9, window_bounds = array<i64: 2, 128, 128>}, {pipeline_mode = #tpu.pipeline_mode<synchronous>, transform_indices = @transform_10, window_bounds = array<i64: 2, 1, 128>}, {pipeline_mode = #tpu.pipeline_mode<synchronous>, transform_indices = @transform_11, window_bounds = array<i64: 2, 1, 128>}, {pipeline_mode = #tpu.pipeline_mode<synchronous>, transform_indices = @transform_12, window_bounds = array<i64: 2, 1, 128>}, {pipeline_mode = #tpu.pipeline_mode<synchronous>, transform_indices = @transform_13, window_bounds = array<i64: 2, 128, 256>}, {pipeline_mode = #tpu.pipeline_mode<synchronous>, transform_indices = @transform_14, window_bounds = array<i64: 2, 1, 256>}, {pipeline_mode = #tpu.pipeline_mode<synchronous>, transform_indices = @transform_15, window_bounds = array<i64: 2, 256, 128>}, {pipeline_mode = #tpu.pipeline_mode<synchronous>, transform_indices = @transform_16, window_bounds = array<i64: 2, 1, 128>}, {pipeline_mode = #tpu.pipeline_mode<synchronous>, transform_indices = @transform_17, window_bounds = array<i64: 1, 128>}, {pipeline_mode = #tpu.pipeline_mode<synchronous>, transform_indices = @transform_18, window_bounds = array<i64: 1, 128>}, {transform_indices = @transform_19, window_bounds = array<i64: 1, 16, 128>}, {transform_indices = @transform_20, window_bounds = array<i64: 1, 16, 1>}]} {
    %c0 = arith.constant 0 : index
    %c0_0 = arith.constant 0 : index
    %c0_1 = arith.constant 0 : index
    %0 = vector.load %arg1[%c0, %c0_0, %c0_1] : memref<1x16x768xf32, #tpu.memory_space<vmem>>, vector<1x16x768xf32>
    %1 = vector.shape_cast %0 : vector<1x16x768xf32> to vector<16x768xf32>
    %c0_2 = arith.constant 0 : index
    %c0_3 = arith.constant 0 : index
    %2 = vector.load %arg2[%c0_2, %c0_3] : memref<768x128xf32, #tpu.memory_space<vmem>>, vector<768x128xf32>
    %3 = arith.truncf %1 : vector<16x768xf32> to vector<16x768xbf16>
    %4 = arith.truncf %2 : vector<768x128xf32> to vector<768x128xbf16>
    %cst = arith.constant dense<0.000000e+00> : vector<16x128xf32>
    %5 = tpu.matmul %3, %4, %cst {dimension_numbers = #tpu.dot_dimension_numbers<[1], [0], [0], [1], [0, 0, 1, 1], [], []>} : vector<16x768xbf16>, vector<768x128xbf16>, vector<16x128xf32> -> vector<16x128xf32>
    %c0_4 = arith.constant 0 : index
    %c0_5 = arith.constant 0 : index
    %6 = vector.load %arg3[%c0_4, %c0_5] : memref<1x128xf32, #tpu.memory_space<vmem>>, vector<1x128xf32>
    %7 = vector.broadcast %6 : vector<1x128xf32> to vector<16x128xf32>
    %8 = arith.addf %5, %7 : vector<16x128xf32>
    %c0_6 = arith.constant 0 : index
    %c0_7 = arith.constant 0 : index
    %9 = vector.load %arg4[%c0_6, %c0_7] : memref<1x128xf32, #tpu.memory_space<vmem>>, vector<1x128xf32>
    %10 = tpu.concatenate %9, %8 in 0 : vector<1x128xf32>, vector<16x128xf32> -> vector<17x128xf32>
    %c0_8 = arith.constant 0 : index
    %c0_9 = arith.constant 0 : index
    %11 = vector.load %arg5[%c0_8, %c0_9] : memref<17x128xf32, #tpu.memory_space<vmem>>, vector<17x128xf32>
    %12 = arith.addf %10, %11 : vector<17x128xf32>
    %c0_10 = arith.constant 0 : index
    %c0_11 = arith.constant 0 : index
    %c0_12 = arith.constant 0 : index
    %13 = vector.load %arg6[%c0_10, %c0_11, %c0_12] : memref<2x1x128xf32, #tpu.memory_space<vmem>>, vector<1x1x128xf32>
    %14 = vector.shape_cast %13 : vector<1x1x128xf32> to vector<1x128xf32>
    %c0_13 = arith.constant 0 : index
    %c0_14 = arith.constant 0 : index
    %c0_15 = arith.constant 0 : index
    %15 = vector.load %arg7[%c0_13, %c0_14, %c0_15] : memref<2x1x128xf32, #tpu.memory_space<vmem>>, vector<1x1x128xf32>
    %16 = vector.shape_cast %15 : vector<1x1x128xf32> to vector<1x128xf32>
    %cst_16 = arith.constant dense<0.000000e+00> : vector<17xf32>
    %17 = vector.multi_reduction <add>, %12, %cst_16 [1] : vector<17x128xf32> to vector<17xf32>
    %18 = vector.shape_cast %17 : vector<17xf32> to vector<17x1xf32>
    %cst_17 = arith.constant 1.280000e+02 : f32
    %19 = vector.broadcast %cst_17 : f32 to vector<17x1xf32>
    %20 = arith.divf %18, %19 : vector<17x1xf32>
    %21 = vector.broadcast %20 : vector<17x1xf32> to vector<17x128xf32>
    %22 = arith.subf %12, %21 : vector<17x128xf32>
    %23 = vector.broadcast %20 : vector<17x1xf32> to vector<17x128xf32>
    %24 = arith.subf %12, %23 : vector<17x128xf32>
    %25 = arith.mulf %22, %24 : vector<17x128xf32>
    %cst_18 = arith.constant dense<0.000000e+00> : vector<17xf32>
    %26 = vector.multi_reduction <add>, %25, %cst_18 [1] : vector<17x128xf32> to vector<17xf32>
    %27 = vector.shape_cast %26 : vector<17xf32> to vector<17x1xf32>
    %cst_19 = arith.constant 1.280000e+02 : f32
    %28 = vector.broadcast %cst_19 : f32 to vector<17x1xf32>
    %29 = arith.divf %27, %28 : vector<17x1xf32>
    %30 = vector.broadcast %20 : vector<17x1xf32> to vector<17x128xf32>
    %31 = arith.subf %12, %30 : vector<17x128xf32>
    %cst_20 = arith.constant 9.99999997E-7 : f32
    %32 = vector.broadcast %cst_20 : f32 to vector<17x1xf32>
    %33 = arith.addf %29, %32 : vector<17x1xf32>
    %34 = math.rsqrt %33 : vector<17x1xf32>
    %35 = vector.broadcast %34 : vector<17x1xf32> to vector<17x128xf32>
    %36 = arith.mulf %31, %35 : vector<17x128xf32>
    %37 = vector.broadcast %14 : vector<1x128xf32> to vector<17x128xf32>
    %38 = arith.mulf %36, %37 : vector<17x128xf32>
    %39 = vector.broadcast %16 : vector<1x128xf32> to vector<17x128xf32>
    %40 = arith.addf %38, %39 : vector<17x128xf32>
    %c0_21 = arith.constant 0 : index
    %c0_22 = arith.constant 0 : index
    %c0_23 = arith.constant 0 : index
    %41 = vector.load %arg8[%c0_21, %c0_22, %c0_23] : memref<2x128x384xf32, #tpu.memory_space<vmem>>, vector<1x128x384xf32>
    %42 = vector.shape_cast %41 : vector<1x128x384xf32> to vector<128x384xf32>
    %43 = arith.truncf %40 : vector<17x128xf32> to vector<17x128xbf16>
    %44 = arith.truncf %42 : vector<128x384xf32> to vector<128x384xbf16>
    %cst_24 = arith.constant dense<0.000000e+00> : vector<17x384xf32>
    %45 = tpu.matmul %43, %44, %cst_24 {dimension_numbers = #tpu.dot_dimension_numbers<[1], [0], [0], [1], [0, 0, 1, 1], [], []>} : vector<17x128xbf16>, vector<128x384xbf16>, vector<17x384xf32> -> vector<17x384xf32>
    %c0_25 = arith.constant 0 : index
    %c0_26 = arith.constant 0 : index
    %c0_27 = arith.constant 0 : index
    %46 = vector.load %arg9[%c0_25, %c0_26, %c0_27] : memref<2x1x384xf32, #tpu.memory_space<vmem>>, vector<1x1x384xf32>
    %47 = vector.shape_cast %46 : vector<1x1x384xf32> to vector<1x384xf32>
    %48 = vector.broadcast %47 : vector<1x384xf32> to vector<17x384xf32>
    %49 = arith.addf %45, %48 : vector<17x384xf32>
    %50 = vector.extract_strided_slice %49 {offsets = [0, 0], sizes = [17, 32], strides = [1, 1]} : vector<17x384xf32> to vector<17x32xf32>
    %51 = vector.extract_strided_slice %49 {offsets = [0, 128], sizes = [17, 32], strides = [1, 1]} : vector<17x384xf32> to vector<17x32xf32>
    %52 = vector.extract_strided_slice %49 {offsets = [0, 256], sizes = [17, 32], strides = [1, 1]} : vector<17x384xf32> to vector<17x32xf32>
    %53 = arith.truncf %50 : vector<17x32xf32> to vector<17x32xbf16>
    %54 = arith.truncf %51 : vector<17x32xf32> to vector<17x32xbf16>
    %cst_28 = arith.constant dense<0.000000e+00> : vector<17x17xf32>
    %55 = tpu.matmul %53, %54, %cst_28 {dimension_numbers = #tpu.dot_dimension_numbers<[1], [1], [0], [0], [0, 0, 1, 0], [], []>} : vector<17x32xbf16>, vector<17x32xbf16>, vector<17x17xf32> -> vector<17x17xf32>
    %cst_29 = arith.constant 0.176776692 : f32
    %56 = vector.broadcast %cst_29 : f32 to vector<17x17xf32>
    %57 = arith.mulf %55, %56 : vector<17x17xf32>
    %cst_30 = arith.constant dense<0xFF800000> : vector<17xf32>
    %58 = vector.multi_reduction <maximumf>, %57, %cst_30 [1] : vector<17x17xf32> to vector<17xf32>
    %59 = vector.shape_cast %58 : vector<17xf32> to vector<17x1xf32>
    %60 = vector.broadcast %59 : vector<17x1xf32> to vector<17x17xf32>
    %61 = arith.subf %57, %60 : vector<17x17xf32>
    %62 = math.exp %61 : vector<17x17xf32>
    %cst_31 = arith.constant dense<0.000000e+00> : vector<17xf32>
    %63 = vector.multi_reduction <add>, %62, %cst_31 [1] : vector<17x17xf32> to vector<17xf32>
    %64 = vector.shape_cast %63 : vector<17xf32> to vector<17x1xf32>
    %65 = tpu.reciprocal %64 {approx = true} : vector<17x1xf32> -> vector<17x1xf32>
    %66 = vector.broadcast %65 : vector<17x1xf32> to vector<17x17xf32>
    %67 = arith.mulf %62, %66 : vector<17x17xf32>
    %68 = arith.truncf %67 : vector<17x17xf32> to vector<17x17xbf16>
    %69 = arith.truncf %52 : vector<17x32xf32> to vector<17x32xbf16>
    %cst_32 = arith.constant dense<0.000000e+00> : vector<17x32xf32>
    %70 = tpu.matmul %68, %69, %cst_32 {dimension_numbers = #tpu.dot_dimension_numbers<[1], [0], [0], [1], [0, 0, 1, 1], [], []>} : vector<17x17xbf16>, vector<17x32xbf16>, vector<17x32xf32> -> vector<17x32xf32>
    %71 = vector.extract_strided_slice %49 {offsets = [0, 32], sizes = [17, 32], strides = [1, 1]} : vector<17x384xf32> to vector<17x32xf32>
    %72 = vector.extract_strided_slice %49 {offsets = [0, 160], sizes = [17, 32], strides = [1, 1]} : vector<17x384xf32> to vector<17x32xf32>
    %73 = vector.extract_strided_slice %49 {offsets = [0, 288], sizes = [17, 32], strides = [1, 1]} : vector<17x384xf32> to vector<17x32xf32>
    %74 = arith.truncf %71 : vector<17x32xf32> to vector<17x32xbf16>
    %75 = arith.truncf %72 : vector<17x32xf32> to vector<17x32xbf16>
    %cst_33 = arith.constant dense<0.000000e+00> : vector<17x17xf32>
    %76 = tpu.matmul %74, %75, %cst_33 {dimension_numbers = #tpu.dot_dimension_numbers<[1], [1], [0], [0], [0, 0, 1, 0], [], []>} : vector<17x32xbf16>, vector<17x32xbf16>, vector<17x17xf32> -> vector<17x17xf32>
    %cst_34 = arith.constant 0.176776692 : f32
    %77 = vector.broadcast %cst_34 : f32 to vector<17x17xf32>
    %78 = arith.mulf %76, %77 : vector<17x17xf32>
    %cst_35 = arith.constant dense<0xFF800000> : vector<17xf32>
    %79 = vector.multi_reduction <maximumf>, %78, %cst_35 [1] : vector<17x17xf32> to vector<17xf32>
    %80 = vector.shape_cast %79 : vector<17xf32> to vector<17x1xf32>
    %81 = vector.broadcast %80 : vector<17x1xf32> to vector<17x17xf32>
    %82 = arith.subf %78, %81 : vector<17x17xf32>
    %83 = math.exp %82 : vector<17x17xf32>
    %cst_36 = arith.constant dense<0.000000e+00> : vector<17xf32>
    %84 = vector.multi_reduction <add>, %83, %cst_36 [1] : vector<17x17xf32> to vector<17xf32>
    %85 = vector.shape_cast %84 : vector<17xf32> to vector<17x1xf32>
    %86 = tpu.reciprocal %85 {approx = true} : vector<17x1xf32> -> vector<17x1xf32>
    %87 = vector.broadcast %86 : vector<17x1xf32> to vector<17x17xf32>
    %88 = arith.mulf %83, %87 : vector<17x17xf32>
    %89 = arith.truncf %88 : vector<17x17xf32> to vector<17x17xbf16>
    %90 = arith.truncf %73 : vector<17x32xf32> to vector<17x32xbf16>
    %cst_37 = arith.constant dense<0.000000e+00> : vector<17x32xf32>
    %91 = tpu.matmul %89, %90, %cst_37 {dimension_numbers = #tpu.dot_dimension_numbers<[1], [0], [0], [1], [0, 0, 1, 1], [], []>} : vector<17x17xbf16>, vector<17x32xbf16>, vector<17x32xf32> -> vector<17x32xf32>
    %92 = vector.extract_strided_slice %49 {offsets = [0, 64], sizes = [17, 32], strides = [1, 1]} : vector<17x384xf32> to vector<17x32xf32>
    %93 = vector.extract_strided_slice %49 {offsets = [0, 192], sizes = [17, 32], strides = [1, 1]} : vector<17x384xf32> to vector<17x32xf32>
    %94 = vector.extract_strided_slice %49 {offsets = [0, 320], sizes = [17, 32], strides = [1, 1]} : vector<17x384xf32> to vector<17x32xf32>
    %95 = arith.truncf %92 : vector<17x32xf32> to vector<17x32xbf16>
    %96 = arith.truncf %93 : vector<17x32xf32> to vector<17x32xbf16>
    %cst_38 = arith.constant dense<0.000000e+00> : vector<17x17xf32>
    %97 = tpu.matmul %95, %96, %cst_38 {dimension_numbers = #tpu.dot_dimension_numbers<[1], [1], [0], [0], [0, 0, 1, 0], [], []>} : vector<17x32xbf16>, vector<17x32xbf16>, vector<17x17xf32> -> vector<17x17xf32>
    %cst_39 = arith.constant 0.176776692 : f32
    %98 = vector.broadcast %cst_39 : f32 to vector<17x17xf32>
    %99 = arith.mulf %97, %98 : vector<17x17xf32>
    %cst_40 = arith.constant dense<0xFF800000> : vector<17xf32>
    %100 = vector.multi_reduction <maximumf>, %99, %cst_40 [1] : vector<17x17xf32> to vector<17xf32>
    %101 = vector.shape_cast %100 : vector<17xf32> to vector<17x1xf32>
    %102 = vector.broadcast %101 : vector<17x1xf32> to vector<17x17xf32>
    %103 = arith.subf %99, %102 : vector<17x17xf32>
    %104 = math.exp %103 : vector<17x17xf32>
    %cst_41 = arith.constant dense<0.000000e+00> : vector<17xf32>
    %105 = vector.multi_reduction <add>, %104, %cst_41 [1] : vector<17x17xf32> to vector<17xf32>
    %106 = vector.shape_cast %105 : vector<17xf32> to vector<17x1xf32>
    %107 = tpu.reciprocal %106 {approx = true} : vector<17x1xf32> -> vector<17x1xf32>
    %108 = vector.broadcast %107 : vector<17x1xf32> to vector<17x17xf32>
    %109 = arith.mulf %104, %108 : vector<17x17xf32>
    %110 = arith.truncf %109 : vector<17x17xf32> to vector<17x17xbf16>
    %111 = arith.truncf %94 : vector<17x32xf32> to vector<17x32xbf16>
    %cst_42 = arith.constant dense<0.000000e+00> : vector<17x32xf32>
    %112 = tpu.matmul %110, %111, %cst_42 {dimension_numbers = #tpu.dot_dimension_numbers<[1], [0], [0], [1], [0, 0, 1, 1], [], []>} : vector<17x17xbf16>, vector<17x32xbf16>, vector<17x32xf32> -> vector<17x32xf32>
    %113 = vector.extract_strided_slice %49 {offsets = [0, 96], sizes = [17, 32], strides = [1, 1]} : vector<17x384xf32> to vector<17x32xf32>
    %114 = vector.extract_strided_slice %49 {offsets = [0, 224], sizes = [17, 32], strides = [1, 1]} : vector<17x384xf32> to vector<17x32xf32>
    %115 = vector.extract_strided_slice %49 {offsets = [0, 352], sizes = [17, 32], strides = [1, 1]} : vector<17x384xf32> to vector<17x32xf32>
    %116 = arith.truncf %113 : vector<17x32xf32> to vector<17x32xbf16>
    %117 = arith.truncf %114 : vector<17x32xf32> to vector<17x32xbf16>
    %cst_43 = arith.constant dense<0.000000e+00> : vector<17x17xf32>
    %118 = tpu.matmul %116, %117, %cst_43 {dimension_numbers = #tpu.dot_dimension_numbers<[1], [1], [0], [0], [0, 0, 1, 0], [], []>} : vector<17x32xbf16>, vector<17x32xbf16>, vector<17x17xf32> -> vector<17x17xf32>
    %cst_44 = arith.constant 0.176776692 : f32
    %119 = vector.broadcast %cst_44 : f32 to vector<17x17xf32>
    %120 = arith.mulf %118, %119 : vector<17x17xf32>
    %cst_45 = arith.constant dense<0xFF800000> : vector<17xf32>
    %121 = vector.multi_reduction <maximumf>, %120, %cst_45 [1] : vector<17x17xf32> to vector<17xf32>
    %122 = vector.shape_cast %121 : vector<17xf32> to vector<17x1xf32>
    %123 = vector.broadcast %122 : vector<17x1xf32> to vector<17x17xf32>
    %124 = arith.subf %120, %123 : vector<17x17xf32>
    %125 = math.exp %124 : vector<17x17xf32>
    %cst_46 = arith.constant dense<0.000000e+00> : vector<17xf32>
    %126 = vector.multi_reduction <add>, %125, %cst_46 [1] : vector<17x17xf32> to vector<17xf32>
    %127 = vector.shape_cast %126 : vector<17xf32> to vector<17x1xf32>
    %128 = tpu.reciprocal %127 {approx = true} : vector<17x1xf32> -> vector<17x1xf32>
    %129 = vector.broadcast %128 : vector<17x1xf32> to vector<17x17xf32>
    %130 = arith.mulf %125, %129 : vector<17x17xf32>
    %131 = arith.truncf %130 : vector<17x17xf32> to vector<17x17xbf16>
    %132 = arith.truncf %115 : vector<17x32xf32> to vector<17x32xbf16>
    %cst_47 = arith.constant dense<0.000000e+00> : vector<17x32xf32>
    %133 = tpu.matmul %131, %132, %cst_47 {dimension_numbers = #tpu.dot_dimension_numbers<[1], [0], [0], [1], [0, 0, 1, 1], [], []>} : vector<17x17xbf16>, vector<17x32xbf16>, vector<17x32xf32> -> vector<17x32xf32>
    %134 = tpu.concatenate %70, %91, %112, %133 in 1 : vector<17x32xf32>, vector<17x32xf32>, vector<17x32xf32>, vector<17x32xf32> -> vector<17x128xf32>
    %c0_48 = arith.constant 0 : index
    %c0_49 = arith.constant 0 : index
    %c0_50 = arith.constant 0 : index
    %135 = vector.load %arg10[%c0_48, %c0_49, %c0_50] : memref<2x128x128xf32, #tpu.memory_space<vmem>>, vector<1x128x128xf32>
    %136 = vector.shape_cast %135 : vector<1x128x128xf32> to vector<128x128xf32>
    %137 = arith.truncf %134 : vector<17x128xf32> to vector<17x128xbf16>
    %138 = arith.truncf %136 : vector<128x128xf32> to vector<128x128xbf16>
    %cst_51 = arith.constant dense<0.000000e+00> : vector<17x128xf32>
    %139 = tpu.matmul %137, %138, %cst_51 {dimension_numbers = #tpu.dot_dimension_numbers<[1], [0], [0], [1], [0, 0, 1, 1], [], []>} : vector<17x128xbf16>, vector<128x128xbf16>, vector<17x128xf32> -> vector<17x128xf32>
    %140 = arith.addf %12, %139 : vector<17x128xf32>
    %c0_52 = arith.constant 0 : index
    %c0_53 = arith.constant 0 : index
    %c0_54 = arith.constant 0 : index
    %141 = vector.load %arg11[%c0_52, %c0_53, %c0_54] : memref<2x1x128xf32, #tpu.memory_space<vmem>>, vector<1x1x128xf32>
    %142 = vector.shape_cast %141 : vector<1x1x128xf32> to vector<1x128xf32>
    %143 = vector.broadcast %142 : vector<1x128xf32> to vector<17x128xf32>
    %144 = arith.addf %140, %143 : vector<17x128xf32>
    %c0_55 = arith.constant 0 : index
    %c0_56 = arith.constant 0 : index
    %c0_57 = arith.constant 0 : index
    %145 = vector.load %arg12[%c0_55, %c0_56, %c0_57] : memref<2x1x128xf32, #tpu.memory_space<vmem>>, vector<1x1x128xf32>
    %146 = vector.shape_cast %145 : vector<1x1x128xf32> to vector<1x128xf32>
    %c0_58 = arith.constant 0 : index
    %c0_59 = arith.constant 0 : index
    %c0_60 = arith.constant 0 : index
    %147 = vector.load %arg13[%c0_58, %c0_59, %c0_60] : memref<2x1x128xf32, #tpu.memory_space<vmem>>, vector<1x1x128xf32>
    %148 = vector.shape_cast %147 : vector<1x1x128xf32> to vector<1x128xf32>
    %cst_61 = arith.constant dense<0.000000e+00> : vector<17xf32>
    %149 = vector.multi_reduction <add>, %144, %cst_61 [1] : vector<17x128xf32> to vector<17xf32>
    %150 = vector.shape_cast %149 : vector<17xf32> to vector<17x1xf32>
    %cst_62 = arith.constant 1.280000e+02 : f32
    %151 = vector.broadcast %cst_62 : f32 to vector<17x1xf32>
    %152 = arith.divf %150, %151 : vector<17x1xf32>
    %153 = vector.broadcast %152 : vector<17x1xf32> to vector<17x128xf32>
    %154 = arith.subf %144, %153 : vector<17x128xf32>
    %155 = vector.broadcast %152 : vector<17x1xf32> to vector<17x128xf32>
    %156 = arith.subf %144, %155 : vector<17x128xf32>
    %157 = arith.mulf %154, %156 : vector<17x128xf32>
    %cst_63 = arith.constant dense<0.000000e+00> : vector<17xf32>
    %158 = vector.multi_reduction <add>, %157, %cst_63 [1] : vector<17x128xf32> to vector<17xf32>
    %159 = vector.shape_cast %158 : vector<17xf32> to vector<17x1xf32>
    %cst_64 = arith.constant 1.280000e+02 : f32
    %160 = vector.broadcast %cst_64 : f32 to vector<17x1xf32>
    %161 = arith.divf %159, %160 : vector<17x1xf32>
    %162 = vector.broadcast %152 : vector<17x1xf32> to vector<17x128xf32>
    %163 = arith.subf %144, %162 : vector<17x128xf32>
    %cst_65 = arith.constant 9.99999997E-7 : f32
    %164 = vector.broadcast %cst_65 : f32 to vector<17x1xf32>
    %165 = arith.addf %161, %164 : vector<17x1xf32>
    %166 = math.rsqrt %165 : vector<17x1xf32>
    %167 = vector.broadcast %166 : vector<17x1xf32> to vector<17x128xf32>
    %168 = arith.mulf %163, %167 : vector<17x128xf32>
    %169 = vector.broadcast %146 : vector<1x128xf32> to vector<17x128xf32>
    %170 = arith.mulf %168, %169 : vector<17x128xf32>
    %171 = vector.broadcast %148 : vector<1x128xf32> to vector<17x128xf32>
    %172 = arith.addf %170, %171 : vector<17x128xf32>
    %c0_66 = arith.constant 0 : index
    %c0_67 = arith.constant 0 : index
    %c0_68 = arith.constant 0 : index
    %173 = vector.load %arg14[%c0_66, %c0_67, %c0_68] : memref<2x128x256xf32, #tpu.memory_space<vmem>>, vector<1x128x256xf32>
    %174 = vector.shape_cast %173 : vector<1x128x256xf32> to vector<128x256xf32>
    %175 = arith.truncf %172 : vector<17x128xf32> to vector<17x128xbf16>
    %176 = arith.truncf %174 : vector<128x256xf32> to vector<128x256xbf16>
    %cst_69 = arith.constant dense<0.000000e+00> : vector<17x256xf32>
    %177 = tpu.matmul %175, %176, %cst_69 {dimension_numbers = #tpu.dot_dimension_numbers<[1], [0], [0], [1], [0, 0, 1, 1], [], []>} : vector<17x128xbf16>, vector<128x256xbf16>, vector<17x256xf32> -> vector<17x256xf32>
    %c0_70 = arith.constant 0 : index
    %c0_71 = arith.constant 0 : index
    %c0_72 = arith.constant 0 : index
    %178 = vector.load %arg15[%c0_70, %c0_71, %c0_72] : memref<2x1x256xf32, #tpu.memory_space<vmem>>, vector<1x1x256xf32>
    %179 = vector.shape_cast %178 : vector<1x1x256xf32> to vector<1x256xf32>
    %180 = vector.broadcast %179 : vector<1x256xf32> to vector<17x256xf32>
    %181 = arith.addf %177, %180 : vector<17x256xf32>
    %182 = arith.mulf %181, %181 : vector<17x256xf32>
    %183 = arith.mulf %181, %182 : vector<17x256xf32>
    %cst_73 = arith.constant 4.471500e-02 : f32
    %184 = vector.broadcast %cst_73 : f32 to vector<17x256xf32>
    %185 = arith.mulf %184, %183 : vector<17x256xf32>
    %186 = arith.addf %181, %185 : vector<17x256xf32>
    %cst_74 = arith.constant 0.797884583 : f32
    %187 = vector.broadcast %cst_74 : f32 to vector<17x256xf32>
    %188 = arith.mulf %187, %186 : vector<17x256xf32>
    %189 = math.tanh %188 : vector<17x256xf32>
    %cst_75 = arith.constant 1.000000e+00 : f32
    %190 = vector.broadcast %cst_75 : f32 to vector<17x256xf32>
    %191 = arith.addf %190, %189 : vector<17x256xf32>
    %cst_76 = arith.constant 5.000000e-01 : f32
    %192 = vector.broadcast %cst_76 : f32 to vector<17x256xf32>
    %193 = arith.mulf %192, %191 : vector<17x256xf32>
    %194 = arith.mulf %181, %193 : vector<17x256xf32>
    %c0_77 = arith.constant 0 : index
    %c0_78 = arith.constant 0 : index
    %c0_79 = arith.constant 0 : index
    %195 = vector.load %arg16[%c0_77, %c0_78, %c0_79] : memref<2x256x128xf32, #tpu.memory_space<vmem>>, vector<1x256x128xf32>
    %196 = vector.shape_cast %195 : vector<1x256x128xf32> to vector<256x128xf32>
    %197 = arith.truncf %194 : vector<17x256xf32> to vector<17x256xbf16>
    %198 = arith.truncf %196 : vector<256x128xf32> to vector<256x128xbf16>
    %cst_80 = arith.constant dense<0.000000e+00> : vector<17x128xf32>
    %199 = tpu.matmul %197, %198, %cst_80 {dimension_numbers = #tpu.dot_dimension_numbers<[1], [0], [0], [1], [0, 0, 1, 1], [], []>} : vector<17x256xbf16>, vector<256x128xbf16>, vector<17x128xf32> -> vector<17x128xf32>
    %200 = arith.addf %144, %199 : vector<17x128xf32>
    %c0_81 = arith.constant 0 : index
    %c0_82 = arith.constant 0 : index
    %c0_83 = arith.constant 0 : index
    %201 = vector.load %arg17[%c0_81, %c0_82, %c0_83] : memref<2x1x128xf32, #tpu.memory_space<vmem>>, vector<1x1x128xf32>
    %202 = vector.shape_cast %201 : vector<1x1x128xf32> to vector<1x128xf32>
    %203 = vector.broadcast %202 : vector<1x128xf32> to vector<17x128xf32>
    %204 = arith.addf %200, %203 : vector<17x128xf32>
    %c1 = arith.constant 1 : index
    %c0_84 = arith.constant 0 : index
    %c0_85 = arith.constant 0 : index
    %205 = vector.load %arg6[%c1, %c0_84, %c0_85] : memref<2x1x128xf32, #tpu.memory_space<vmem>>, vector<1x1x128xf32>
    %206 = vector.shape_cast %205 : vector<1x1x128xf32> to vector<1x128xf32>
    %c1_86 = arith.constant 1 : index
    %c0_87 = arith.constant 0 : index
    %c0_88 = arith.constant 0 : index
    %207 = vector.load %arg7[%c1_86, %c0_87, %c0_88] : memref<2x1x128xf32, #tpu.memory_space<vmem>>, vector<1x1x128xf32>
    %208 = vector.shape_cast %207 : vector<1x1x128xf32> to vector<1x128xf32>
    %cst_89 = arith.constant dense<0.000000e+00> : vector<17xf32>
    %209 = vector.multi_reduction <add>, %204, %cst_89 [1] : vector<17x128xf32> to vector<17xf32>
    %210 = vector.shape_cast %209 : vector<17xf32> to vector<17x1xf32>
    %cst_90 = arith.constant 1.280000e+02 : f32
    %211 = vector.broadcast %cst_90 : f32 to vector<17x1xf32>
    %212 = arith.divf %210, %211 : vector<17x1xf32>
    %213 = vector.broadcast %212 : vector<17x1xf32> to vector<17x128xf32>
    %214 = arith.subf %204, %213 : vector<17x128xf32>
    %215 = vector.broadcast %212 : vector<17x1xf32> to vector<17x128xf32>
    %216 = arith.subf %204, %215 : vector<17x128xf32>
    %217 = arith.mulf %214, %216 : vector<17x128xf32>
    %cst_91 = arith.constant dense<0.000000e+00> : vector<17xf32>
    %218 = vector.multi_reduction <add>, %217, %cst_91 [1] : vector<17x128xf32> to vector<17xf32>
    %219 = vector.shape_cast %218 : vector<17xf32> to vector<17x1xf32>
    %cst_92 = arith.constant 1.280000e+02 : f32
    %220 = vector.broadcast %cst_92 : f32 to vector<17x1xf32>
    %221 = arith.divf %219, %220 : vector<17x1xf32>
    %222 = vector.broadcast %212 : vector<17x1xf32> to vector<17x128xf32>
    %223 = arith.subf %204, %222 : vector<17x128xf32>
    %cst_93 = arith.constant 9.99999997E-7 : f32
    %224 = vector.broadcast %cst_93 : f32 to vector<17x1xf32>
    %225 = arith.addf %221, %224 : vector<17x1xf32>
    %226 = math.rsqrt %225 : vector<17x1xf32>
    %227 = vector.broadcast %226 : vector<17x1xf32> to vector<17x128xf32>
    %228 = arith.mulf %223, %227 : vector<17x128xf32>
    %229 = vector.broadcast %206 : vector<1x128xf32> to vector<17x128xf32>
    %230 = arith.mulf %228, %229 : vector<17x128xf32>
    %231 = vector.broadcast %208 : vector<1x128xf32> to vector<17x128xf32>
    %232 = arith.addf %230, %231 : vector<17x128xf32>
    %c1_94 = arith.constant 1 : index
    %c0_95 = arith.constant 0 : index
    %c0_96 = arith.constant 0 : index
    %233 = vector.load %arg8[%c1_94, %c0_95, %c0_96] : memref<2x128x384xf32, #tpu.memory_space<vmem>>, vector<1x128x384xf32>
    %234 = vector.shape_cast %233 : vector<1x128x384xf32> to vector<128x384xf32>
    %235 = arith.truncf %232 : vector<17x128xf32> to vector<17x128xbf16>
    %236 = arith.truncf %234 : vector<128x384xf32> to vector<128x384xbf16>
    %cst_97 = arith.constant dense<0.000000e+00> : vector<17x384xf32>
    %237 = tpu.matmul %235, %236, %cst_97 {dimension_numbers = #tpu.dot_dimension_numbers<[1], [0], [0], [1], [0, 0, 1, 1], [], []>} : vector<17x128xbf16>, vector<128x384xbf16>, vector<17x384xf32> -> vector<17x384xf32>
    %c1_98 = arith.constant 1 : index
    %c0_99 = arith.constant 0 : index
    %c0_100 = arith.constant 0 : index
    %238 = vector.load %arg9[%c1_98, %c0_99, %c0_100] : memref<2x1x384xf32, #tpu.memory_space<vmem>>, vector<1x1x384xf32>
    %239 = vector.shape_cast %238 : vector<1x1x384xf32> to vector<1x384xf32>
    %240 = vector.broadcast %239 : vector<1x384xf32> to vector<17x384xf32>
    %241 = arith.addf %237, %240 : vector<17x384xf32>
    %242 = vector.extract_strided_slice %241 {offsets = [0, 0], sizes = [17, 32], strides = [1, 1]} : vector<17x384xf32> to vector<17x32xf32>
    %243 = vector.extract_strided_slice %241 {offsets = [0, 128], sizes = [17, 32], strides = [1, 1]} : vector<17x384xf32> to vector<17x32xf32>
    %244 = vector.extract_strided_slice %241 {offsets = [0, 256], sizes = [17, 32], strides = [1, 1]} : vector<17x384xf32> to vector<17x32xf32>
    %245 = arith.truncf %242 : vector<17x32xf32> to vector<17x32xbf16>
    %246 = arith.truncf %243 : vector<17x32xf32> to vector<17x32xbf16>
    %cst_101 = arith.constant dense<0.000000e+00> : vector<17x17xf32>
    %247 = tpu.matmul %245, %246, %cst_101 {dimension_numbers = #tpu.dot_dimension_numbers<[1], [1], [0], [0], [0, 0, 1, 0], [], []>} : vector<17x32xbf16>, vector<17x32xbf16>, vector<17x17xf32> -> vector<17x17xf32>
    %cst_102 = arith.constant 0.176776692 : f32
    %248 = vector.broadcast %cst_102 : f32 to vector<17x17xf32>
    %249 = arith.mulf %247, %248 : vector<17x17xf32>
    %cst_103 = arith.constant dense<0xFF800000> : vector<17xf32>
    %250 = vector.multi_reduction <maximumf>, %249, %cst_103 [1] : vector<17x17xf32> to vector<17xf32>
    %251 = vector.shape_cast %250 : vector<17xf32> to vector<17x1xf32>
    %252 = vector.broadcast %251 : vector<17x1xf32> to vector<17x17xf32>
    %253 = arith.subf %249, %252 : vector<17x17xf32>
    %254 = math.exp %253 : vector<17x17xf32>
    %cst_104 = arith.constant dense<0.000000e+00> : vector<17xf32>
    %255 = vector.multi_reduction <add>, %254, %cst_104 [1] : vector<17x17xf32> to vector<17xf32>
    %256 = vector.shape_cast %255 : vector<17xf32> to vector<17x1xf32>
    %257 = tpu.reciprocal %256 {approx = true} : vector<17x1xf32> -> vector<17x1xf32>
    %258 = vector.broadcast %257 : vector<17x1xf32> to vector<17x17xf32>
    %259 = arith.mulf %254, %258 : vector<17x17xf32>
    %260 = arith.truncf %259 : vector<17x17xf32> to vector<17x17xbf16>
    %261 = arith.truncf %244 : vector<17x32xf32> to vector<17x32xbf16>
    %cst_105 = arith.constant dense<0.000000e+00> : vector<17x32xf32>
    %262 = tpu.matmul %260, %261, %cst_105 {dimension_numbers = #tpu.dot_dimension_numbers<[1], [0], [0], [1], [0, 0, 1, 1], [], []>} : vector<17x17xbf16>, vector<17x32xbf16>, vector<17x32xf32> -> vector<17x32xf32>
    %263 = vector.extract_strided_slice %241 {offsets = [0, 32], sizes = [17, 32], strides = [1, 1]} : vector<17x384xf32> to vector<17x32xf32>
    %264 = vector.extract_strided_slice %241 {offsets = [0, 160], sizes = [17, 32], strides = [1, 1]} : vector<17x384xf32> to vector<17x32xf32>
    %265 = vector.extract_strided_slice %241 {offsets = [0, 288], sizes = [17, 32], strides = [1, 1]} : vector<17x384xf32> to vector<17x32xf32>
    %266 = arith.truncf %263 : vector<17x32xf32> to vector<17x32xbf16>
    %267 = arith.truncf %264 : vector<17x32xf32> to vector<17x32xbf16>
    %cst_106 = arith.constant dense<0.000000e+00> : vector<17x17xf32>
    %268 = tpu.matmul %266, %267, %cst_106 {dimension_numbers = #tpu.dot_dimension_numbers<[1], [1], [0], [0], [0, 0, 1, 0], [], []>} : vector<17x32xbf16>, vector<17x32xbf16>, vector<17x17xf32> -> vector<17x17xf32>
    %cst_107 = arith.constant 0.176776692 : f32
    %269 = vector.broadcast %cst_107 : f32 to vector<17x17xf32>
    %270 = arith.mulf %268, %269 : vector<17x17xf32>
    %cst_108 = arith.constant dense<0xFF800000> : vector<17xf32>
    %271 = vector.multi_reduction <maximumf>, %270, %cst_108 [1] : vector<17x17xf32> to vector<17xf32>
    %272 = vector.shape_cast %271 : vector<17xf32> to vector<17x1xf32>
    %273 = vector.broadcast %272 : vector<17x1xf32> to vector<17x17xf32>
    %274 = arith.subf %270, %273 : vector<17x17xf32>
    %275 = math.exp %274 : vector<17x17xf32>
    %cst_109 = arith.constant dense<0.000000e+00> : vector<17xf32>
    %276 = vector.multi_reduction <add>, %275, %cst_109 [1] : vector<17x17xf32> to vector<17xf32>
    %277 = vector.shape_cast %276 : vector<17xf32> to vector<17x1xf32>
    %278 = tpu.reciprocal %277 {approx = true} : vector<17x1xf32> -> vector<17x1xf32>
    %279 = vector.broadcast %278 : vector<17x1xf32> to vector<17x17xf32>
    %280 = arith.mulf %275, %279 : vector<17x17xf32>
    %281 = arith.truncf %280 : vector<17x17xf32> to vector<17x17xbf16>
    %282 = arith.truncf %265 : vector<17x32xf32> to vector<17x32xbf16>
    %cst_110 = arith.constant dense<0.000000e+00> : vector<17x32xf32>
    %283 = tpu.matmul %281, %282, %cst_110 {dimension_numbers = #tpu.dot_dimension_numbers<[1], [0], [0], [1], [0, 0, 1, 1], [], []>} : vector<17x17xbf16>, vector<17x32xbf16>, vector<17x32xf32> -> vector<17x32xf32>
    %284 = vector.extract_strided_slice %241 {offsets = [0, 64], sizes = [17, 32], strides = [1, 1]} : vector<17x384xf32> to vector<17x32xf32>
    %285 = vector.extract_strided_slice %241 {offsets = [0, 192], sizes = [17, 32], strides = [1, 1]} : vector<17x384xf32> to vector<17x32xf32>
    %286 = vector.extract_strided_slice %241 {offsets = [0, 320], sizes = [17, 32], strides = [1, 1]} : vector<17x384xf32> to vector<17x32xf32>
    %287 = arith.truncf %284 : vector<17x32xf32> to vector<17x32xbf16>
    %288 = arith.truncf %285 : vector<17x32xf32> to vector<17x32xbf16>
    %cst_111 = arith.constant dense<0.000000e+00> : vector<17x17xf32>
    %289 = tpu.matmul %287, %288, %cst_111 {dimension_numbers = #tpu.dot_dimension_numbers<[1], [1], [0], [0], [0, 0, 1, 0], [], []>} : vector<17x32xbf16>, vector<17x32xbf16>, vector<17x17xf32> -> vector<17x17xf32>
    %cst_112 = arith.constant 0.176776692 : f32
    %290 = vector.broadcast %cst_112 : f32 to vector<17x17xf32>
    %291 = arith.mulf %289, %290 : vector<17x17xf32>
    %cst_113 = arith.constant dense<0xFF800000> : vector<17xf32>
    %292 = vector.multi_reduction <maximumf>, %291, %cst_113 [1] : vector<17x17xf32> to vector<17xf32>
    %293 = vector.shape_cast %292 : vector<17xf32> to vector<17x1xf32>
    %294 = vector.broadcast %293 : vector<17x1xf32> to vector<17x17xf32>
    %295 = arith.subf %291, %294 : vector<17x17xf32>
    %296 = math.exp %295 : vector<17x17xf32>
    %cst_114 = arith.constant dense<0.000000e+00> : vector<17xf32>
    %297 = vector.multi_reduction <add>, %296, %cst_114 [1] : vector<17x17xf32> to vector<17xf32>
    %298 = vector.shape_cast %297 : vector<17xf32> to vector<17x1xf32>
    %299 = tpu.reciprocal %298 {approx = true} : vector<17x1xf32> -> vector<17x1xf32>
    %300 = vector.broadcast %299 : vector<17x1xf32> to vector<17x17xf32>
    %301 = arith.mulf %296, %300 : vector<17x17xf32>
    %302 = arith.truncf %301 : vector<17x17xf32> to vector<17x17xbf16>
    %303 = arith.truncf %286 : vector<17x32xf32> to vector<17x32xbf16>
    %cst_115 = arith.constant dense<0.000000e+00> : vector<17x32xf32>
    %304 = tpu.matmul %302, %303, %cst_115 {dimension_numbers = #tpu.dot_dimension_numbers<[1], [0], [0], [1], [0, 0, 1, 1], [], []>} : vector<17x17xbf16>, vector<17x32xbf16>, vector<17x32xf32> -> vector<17x32xf32>
    %305 = vector.extract_strided_slice %241 {offsets = [0, 96], sizes = [17, 32], strides = [1, 1]} : vector<17x384xf32> to vector<17x32xf32>
    %306 = vector.extract_strided_slice %241 {offsets = [0, 224], sizes = [17, 32], strides = [1, 1]} : vector<17x384xf32> to vector<17x32xf32>
    %307 = vector.extract_strided_slice %241 {offsets = [0, 352], sizes = [17, 32], strides = [1, 1]} : vector<17x384xf32> to vector<17x32xf32>
    %308 = arith.truncf %305 : vector<17x32xf32> to vector<17x32xbf16>
    %309 = arith.truncf %306 : vector<17x32xf32> to vector<17x32xbf16>
    %cst_116 = arith.constant dense<0.000000e+00> : vector<17x17xf32>
    %310 = tpu.matmul %308, %309, %cst_116 {dimension_numbers = #tpu.dot_dimension_numbers<[1], [1], [0], [0], [0, 0, 1, 0], [], []>} : vector<17x32xbf16>, vector<17x32xbf16>, vector<17x17xf32> -> vector<17x17xf32>
    %cst_117 = arith.constant 0.176776692 : f32
    %311 = vector.broadcast %cst_117 : f32 to vector<17x17xf32>
    %312 = arith.mulf %310, %311 : vector<17x17xf32>
    %cst_118 = arith.constant dense<0xFF800000> : vector<17xf32>
    %313 = vector.multi_reduction <maximumf>, %312, %cst_118 [1] : vector<17x17xf32> to vector<17xf32>
    %314 = vector.shape_cast %313 : vector<17xf32> to vector<17x1xf32>
    %315 = vector.broadcast %314 : vector<17x1xf32> to vector<17x17xf32>
    %316 = arith.subf %312, %315 : vector<17x17xf32>
    %317 = math.exp %316 : vector<17x17xf32>
    %cst_119 = arith.constant dense<0.000000e+00> : vector<17xf32>
    %318 = vector.multi_reduction <add>, %317, %cst_119 [1] : vector<17x17xf32> to vector<17xf32>
    %319 = vector.shape_cast %318 : vector<17xf32> to vector<17x1xf32>
    %320 = tpu.reciprocal %319 {approx = true} : vector<17x1xf32> -> vector<17x1xf32>
    %321 = vector.broadcast %320 : vector<17x1xf32> to vector<17x17xf32>
    %322 = arith.mulf %317, %321 : vector<17x17xf32>
    %323 = arith.truncf %322 : vector<17x17xf32> to vector<17x17xbf16>
    %324 = arith.truncf %307 : vector<17x32xf32> to vector<17x32xbf16>
    %cst_120 = arith.constant dense<0.000000e+00> : vector<17x32xf32>
    %325 = tpu.matmul %323, %324, %cst_120 {dimension_numbers = #tpu.dot_dimension_numbers<[1], [0], [0], [1], [0, 0, 1, 1], [], []>} : vector<17x17xbf16>, vector<17x32xbf16>, vector<17x32xf32> -> vector<17x32xf32>
    %326 = tpu.concatenate %262, %283, %304, %325 in 1 : vector<17x32xf32>, vector<17x32xf32>, vector<17x32xf32>, vector<17x32xf32> -> vector<17x128xf32>
    %c1_121 = arith.constant 1 : index
    %c0_122 = arith.constant 0 : index
    %c0_123 = arith.constant 0 : index
    %327 = vector.load %arg10[%c1_121, %c0_122, %c0_123] : memref<2x128x128xf32, #tpu.memory_space<vmem>>, vector<1x128x128xf32>
    %328 = vector.shape_cast %327 : vector<1x128x128xf32> to vector<128x128xf32>
    %329 = arith.truncf %326 : vector<17x128xf32> to vector<17x128xbf16>
    %330 = arith.truncf %328 : vector<128x128xf32> to vector<128x128xbf16>
    %cst_124 = arith.constant dense<0.000000e+00> : vector<17x128xf32>
    %331 = tpu.matmul %329, %330, %cst_124 {dimension_numbers = #tpu.dot_dimension_numbers<[1], [0], [0], [1], [0, 0, 1, 1], [], []>} : vector<17x128xbf16>, vector<128x128xbf16>, vector<17x128xf32> -> vector<17x128xf32>
    %332 = arith.addf %204, %331 : vector<17x128xf32>
    %c1_125 = arith.constant 1 : index
    %c0_126 = arith.constant 0 : index
    %c0_127 = arith.constant 0 : index
    %333 = vector.load %arg11[%c1_125, %c0_126, %c0_127] : memref<2x1x128xf32, #tpu.memory_space<vmem>>, vector<1x1x128xf32>
    %334 = vector.shape_cast %333 : vector<1x1x128xf32> to vector<1x128xf32>
    %335 = vector.broadcast %334 : vector<1x128xf32> to vector<17x128xf32>
    %336 = arith.addf %332, %335 : vector<17x128xf32>
    %c1_128 = arith.constant 1 : index
    %c0_129 = arith.constant 0 : index
    %c0_130 = arith.constant 0 : index
    %337 = vector.load %arg12[%c1_128, %c0_129, %c0_130] : memref<2x1x128xf32, #tpu.memory_space<vmem>>, vector<1x1x128xf32>
    %338 = vector.shape_cast %337 : vector<1x1x128xf32> to vector<1x128xf32>
    %c1_131 = arith.constant 1 : index
    %c0_132 = arith.constant 0 : index
    %c0_133 = arith.constant 0 : index
    %339 = vector.load %arg13[%c1_131, %c0_132, %c0_133] : memref<2x1x128xf32, #tpu.memory_space<vmem>>, vector<1x1x128xf32>
    %340 = vector.shape_cast %339 : vector<1x1x128xf32> to vector<1x128xf32>
    %cst_134 = arith.constant dense<0.000000e+00> : vector<17xf32>
    %341 = vector.multi_reduction <add>, %336, %cst_134 [1] : vector<17x128xf32> to vector<17xf32>
    %342 = vector.shape_cast %341 : vector<17xf32> to vector<17x1xf32>
    %cst_135 = arith.constant 1.280000e+02 : f32
    %343 = vector.broadcast %cst_135 : f32 to vector<17x1xf32>
    %344 = arith.divf %342, %343 : vector<17x1xf32>
    %345 = vector.broadcast %344 : vector<17x1xf32> to vector<17x128xf32>
    %346 = arith.subf %336, %345 : vector<17x128xf32>
    %347 = vector.broadcast %344 : vector<17x1xf32> to vector<17x128xf32>
    %348 = arith.subf %336, %347 : vector<17x128xf32>
    %349 = arith.mulf %346, %348 : vector<17x128xf32>
    %cst_136 = arith.constant dense<0.000000e+00> : vector<17xf32>
    %350 = vector.multi_reduction <add>, %349, %cst_136 [1] : vector<17x128xf32> to vector<17xf32>
    %351 = vector.shape_cast %350 : vector<17xf32> to vector<17x1xf32>
    %cst_137 = arith.constant 1.280000e+02 : f32
    %352 = vector.broadcast %cst_137 : f32 to vector<17x1xf32>
    %353 = arith.divf %351, %352 : vector<17x1xf32>
    %354 = vector.broadcast %344 : vector<17x1xf32> to vector<17x128xf32>
    %355 = arith.subf %336, %354 : vector<17x128xf32>
    %cst_138 = arith.constant 9.99999997E-7 : f32
    %356 = vector.broadcast %cst_138 : f32 to vector<17x1xf32>
    %357 = arith.addf %353, %356 : vector<17x1xf32>
    %358 = math.rsqrt %357 : vector<17x1xf32>
    %359 = vector.broadcast %358 : vector<17x1xf32> to vector<17x128xf32>
    %360 = arith.mulf %355, %359 : vector<17x128xf32>
    %361 = vector.broadcast %338 : vector<1x128xf32> to vector<17x128xf32>
    %362 = arith.mulf %360, %361 : vector<17x128xf32>
    %363 = vector.broadcast %340 : vector<1x128xf32> to vector<17x128xf32>
    %364 = arith.addf %362, %363 : vector<17x128xf32>
    %c1_139 = arith.constant 1 : index
    %c0_140 = arith.constant 0 : index
    %c0_141 = arith.constant 0 : index
    %365 = vector.load %arg14[%c1_139, %c0_140, %c0_141] : memref<2x128x256xf32, #tpu.memory_space<vmem>>, vector<1x128x256xf32>
    %366 = vector.shape_cast %365 : vector<1x128x256xf32> to vector<128x256xf32>
    %367 = arith.truncf %364 : vector<17x128xf32> to vector<17x128xbf16>
    %368 = arith.truncf %366 : vector<128x256xf32> to vector<128x256xbf16>
    %cst_142 = arith.constant dense<0.000000e+00> : vector<17x256xf32>
    %369 = tpu.matmul %367, %368, %cst_142 {dimension_numbers = #tpu.dot_dimension_numbers<[1], [0], [0], [1], [0, 0, 1, 1], [], []>} : vector<17x128xbf16>, vector<128x256xbf16>, vector<17x256xf32> -> vector<17x256xf32>
    %c1_143 = arith.constant 1 : index
    %c0_144 = arith.constant 0 : index
    %c0_145 = arith.constant 0 : index
    %370 = vector.load %arg15[%c1_143, %c0_144, %c0_145] : memref<2x1x256xf32, #tpu.memory_space<vmem>>, vector<1x1x256xf32>
    %371 = vector.shape_cast %370 : vector<1x1x256xf32> to vector<1x256xf32>
    %372 = vector.broadcast %371 : vector<1x256xf32> to vector<17x256xf32>
    %373 = arith.addf %369, %372 : vector<17x256xf32>
    %374 = arith.mulf %373, %373 : vector<17x256xf32>
    %375 = arith.mulf %373, %374 : vector<17x256xf32>
    %cst_146 = arith.constant 4.471500e-02 : f32
    %376 = vector.broadcast %cst_146 : f32 to vector<17x256xf32>
    %377 = arith.mulf %376, %375 : vector<17x256xf32>
    %378 = arith.addf %373, %377 : vector<17x256xf32>
    %cst_147 = arith.constant 0.797884583 : f32
    %379 = vector.broadcast %cst_147 : f32 to vector<17x256xf32>
    %380 = arith.mulf %379, %378 : vector<17x256xf32>
    %381 = math.tanh %380 : vector<17x256xf32>
    %cst_148 = arith.constant 1.000000e+00 : f32
    %382 = vector.broadcast %cst_148 : f32 to vector<17x256xf32>
    %383 = arith.addf %382, %381 : vector<17x256xf32>
    %cst_149 = arith.constant 5.000000e-01 : f32
    %384 = vector.broadcast %cst_149 : f32 to vector<17x256xf32>
    %385 = arith.mulf %384, %383 : vector<17x256xf32>
    %386 = arith.mulf %373, %385 : vector<17x256xf32>
    %c1_150 = arith.constant 1 : index
    %c0_151 = arith.constant 0 : index
    %c0_152 = arith.constant 0 : index
    %387 = vector.load %arg16[%c1_150, %c0_151, %c0_152] : memref<2x256x128xf32, #tpu.memory_space<vmem>>, vector<1x256x128xf32>
    %388 = vector.shape_cast %387 : vector<1x256x128xf32> to vector<256x128xf32>
    %389 = arith.truncf %386 : vector<17x256xf32> to vector<17x256xbf16>
    %390 = arith.truncf %388 : vector<256x128xf32> to vector<256x128xbf16>
    %cst_153 = arith.constant dense<0.000000e+00> : vector<17x128xf32>
    %391 = tpu.matmul %389, %390, %cst_153 {dimension_numbers = #tpu.dot_dimension_numbers<[1], [0], [0], [1], [0, 0, 1, 1], [], []>} : vector<17x256xbf16>, vector<256x128xbf16>, vector<17x128xf32> -> vector<17x128xf32>
    %392 = arith.addf %336, %391 : vector<17x128xf32>
    %c1_154 = arith.constant 1 : index
    %c0_155 = arith.constant 0 : index
    %c0_156 = arith.constant 0 : index
    %393 = vector.load %arg17[%c1_154, %c0_155, %c0_156] : memref<2x1x128xf32, #tpu.memory_space<vmem>>, vector<1x1x128xf32>
    %394 = vector.shape_cast %393 : vector<1x1x128xf32> to vector<1x128xf32>
    %395 = vector.broadcast %394 : vector<1x128xf32> to vector<17x128xf32>
    %396 = arith.addf %392, %395 : vector<17x128xf32>
    %c0_157 = arith.constant 0 : index
    %c0_158 = arith.constant 0 : index
    %397 = vector.load %arg18[%c0_157, %c0_158] : memref<1x128xf32, #tpu.memory_space<vmem>>, vector<1x128xf32>
    %c0_159 = arith.constant 0 : index
    %c0_160 = arith.constant 0 : index
    %398 = vector.load %arg19[%c0_159, %c0_160] : memref<1x128xf32, #tpu.memory_space<vmem>>, vector<1x128xf32>
    %cst_161 = arith.constant dense<0.000000e+00> : vector<17xf32>
    %399 = vector.multi_reduction <add>, %396, %cst_161 [1] : vector<17x128xf32> to vector<17xf32>
    %400 = vector.shape_cast %399 : vector<17xf32> to vector<17x1xf32>
    %cst_162 = arith.constant 1.280000e+02 : f32
    %401 = vector.broadcast %cst_162 : f32 to vector<17x1xf32>
    %402 = arith.divf %400, %401 : vector<17x1xf32>
    %403 = vector.broadcast %402 : vector<17x1xf32> to vector<17x128xf32>
    %404 = arith.subf %396, %403 : vector<17x128xf32>
    %405 = vector.broadcast %402 : vector<17x1xf32> to vector<17x128xf32>
    %406 = arith.subf %396, %405 : vector<17x128xf32>
    %407 = arith.mulf %404, %406 : vector<17x128xf32>
    %cst_163 = arith.constant dense<0.000000e+00> : vector<17xf32>
    %408 = vector.multi_reduction <add>, %407, %cst_163 [1] : vector<17x128xf32> to vector<17xf32>
    %409 = vector.shape_cast %408 : vector<17xf32> to vector<17x1xf32>
    %cst_164 = arith.constant 1.280000e+02 : f32
    %410 = vector.broadcast %cst_164 : f32 to vector<17x1xf32>
    %411 = arith.divf %409, %410 : vector<17x1xf32>
    %412 = vector.broadcast %402 : vector<17x1xf32> to vector<17x128xf32>
    %413 = arith.subf %396, %412 : vector<17x128xf32>
    %cst_165 = arith.constant 9.99999997E-7 : f32
    %414 = vector.broadcast %cst_165 : f32 to vector<17x1xf32>
    %415 = arith.addf %411, %414 : vector<17x1xf32>
    %416 = math.rsqrt %415 : vector<17x1xf32>
    %417 = vector.broadcast %416 : vector<17x1xf32> to vector<17x128xf32>
    %418 = arith.mulf %413, %417 : vector<17x128xf32>
    %419 = vector.broadcast %397 : vector<1x128xf32> to vector<17x128xf32>
    %420 = arith.mulf %418, %419 : vector<17x128xf32>
    %421 = vector.broadcast %398 : vector<1x128xf32> to vector<17x128xf32>
    %422 = arith.addf %420, %421 : vector<17x128xf32>
    %423 = vector.extract_strided_slice %422 {offsets = [1, 0], sizes = [16, 128], strides = [1, 1]} : vector<17x128xf32> to vector<16x128xf32>
    %c0_166 = arith.constant 0 : index
    %c0_167 = arith.constant 0 : index
    %c0_168 = arith.constant 0 : index
    %424 = vector.load %arg20[%c0_166, %c0_167, %c0_168] : memref<1x16x128xf32, #tpu.memory_space<vmem>>, vector<1x16x128xf32>
    %425 = vector.shape_cast %424 : vector<1x16x128xf32> to vector<16x128xf32>
    %426 = vector.shape_cast %423 : vector<16x128xf32> to vector<1x16x128xf32>
    tpu.vector_store %arg20[%c0_166, %c0_167, %c0_168], %426 {strides = array<i32>} : memref<1x16x128xf32, #tpu.memory_space<vmem>>, vector<1x16x128xf32>,
    %cst_169 = arith.constant dense<0.000000e+00> : vector<16xf32>
    %427 = vector.multi_reduction <add>, %423, %cst_169 [1] : vector<16x128xf32> to vector<16xf32>
    %428 = vector.shape_cast %427 : vector<16xf32> to vector<16x1xf32>
    %cst_170 = arith.constant 1.280000e+02 : f32
    %429 = vector.broadcast %cst_170 : f32 to vector<16x1xf32>
    %430 = arith.divf %428, %429 : vector<16x1xf32>
    %c0_171 = arith.constant 0 : index
    %c0_172 = arith.constant 0 : index
    %c0_173 = arith.constant 0 : index
    %431 = vector.load %arg21[%c0_171, %c0_172, %c0_173] : memref<1x16x1xf32, #tpu.memory_space<vmem>>, vector<1x16x1xf32>
    %432 = vector.shape_cast %431 : vector<1x16x1xf32> to vector<16x1xf32>
    %433 = vector.shape_cast %430 : vector<16x1xf32> to vector<1x16x1xf32>
    tpu.vector_store %arg21[%c0_171, %c0_172, %c0_173], %433 {strides = array<i32>} : memref<1x16x1xf32, #tpu.memory_space<vmem>>, vector<1x16x1xf32>,
    return
  }
  func.func @transform_0(%arg0: i32) -> (i32, i32, i32) {
    %c0_i32 = arith.constant 0 : i32
    %c0_i32_0 = arith.constant 0 : i32
    %c0_i32_1 = arith.constant 0 : i32
    return %arg0, %c0_i32, %c0_i32_0 : i32, i32, i32
  }
  func.func @transform_1(%arg0: i32) -> (i32, i32) {
    %c0_i32 = arith.constant 0 : i32
    %c0_i32_0 = arith.constant 0 : i32
    %c0_i32_1 = arith.constant 0 : i32
    return %c0_i32, %c0_i32_0 : i32, i32
  }
  func.func @transform_2(%arg0: i32) -> (i32, i32) {
    %c0_i32 = arith.constant 0 : i32
    %c0_i32_0 = arith.constant 0 : i32
    %c0_i32_1 = arith.constant 0 : i32
    return %c0_i32, %c0_i32_0 : i32, i32
  }
  func.func @transform_3(%arg0: i32) -> (i32, i32) {
    %c0_i32 = arith.constant 0 : i32
    %c0_i32_0 = arith.constant 0 : i32
    %c0_i32_1 = arith.constant 0 : i32
    return %c0_i32, %c0_i32_0 : i32, i32
  }
  func.func @transform_4(%arg0: i32) -> (i32, i32) {
    %c0_i32 = arith.constant 0 : i32
    %c0_i32_0 = arith.constant 0 : i32
    %c0_i32_1 = arith.constant 0 : i32
    return %c0_i32, %c0_i32_0 : i32, i32
  }
  func.func @transform_5(%arg0: i32) -> (i32, i32, i32) {
    %c0_i32 = arith.constant 0 : i32
    %c0_i32_0 = arith.constant 0 : i32
    %c0_i32_1 = arith.constant 0 : i32
    %c0_i32_2 = arith.constant 0 : i32
    return %c0_i32, %c0_i32_0, %c0_i32_1 : i32, i32, i32
  }
  func.func @transform_6(%arg0: i32) -> (i32, i32, i32) {
    %c0_i32 = arith.constant 0 : i32
    %c0_i32_0 = arith.constant 0 : i32
    %c0_i32_1 = arith.constant 0 : i32
    %c0_i32_2 = arith.constant 0 : i32
    return %c0_i32, %c0_i32_0, %c0_i32_1 : i32, i32, i32
  }
  func.func @transform_7(%arg0: i32) -> (i32, i32, i32) {
    %c0_i32 = arith.constant 0 : i32
    %c0_i32_0 = arith.constant 0 : i32
    %c0_i32_1 = arith.constant 0 : i32
    %c0_i32_2 = arith.constant 0 : i32
    return %c0_i32, %c0_i32_0, %c0_i32_1 : i32, i32, i32
  }
  func.func @transform_8(%arg0: i32) -> (i32, i32, i32) {
    %c0_i32 = arith.constant 0 : i32
    %c0_i32_0 = arith.constant 0 : i32
    %c0_i32_1 = arith.constant 0 : i32
    %c0_i32_2 = arith.constant 0 : i32
    return %c0_i32, %c0_i32_0, %c0_i32_1 : i32, i32, i32
  }
  func.func @transform_9(%arg0: i32) -> (i32, i32, i32) {
    %c0_i32 = arith.constant 0 : i32
    %c0_i32_0 = arith.constant 0 : i32
    %c0_i32_1 = arith.constant 0 : i32
    %c0_i32_2 = arith.constant 0 : i32
    return %c0_i32, %c0_i32_0, %c0_i32_1 : i32, i32, i32
  }
  func.func @transform_10(%arg0: i32) -> (i32, i32, i32) {
    %c0_i32 = arith.constant 0 : i32
    %c0_i32_0 = arith.constant 0 : i32
    %c0_i32_1 = arith.constant 0 : i32
    %c0_i32_2 = arith.constant 0 : i32
    return %c0_i32, %c0_i32_0, %c0_i32_1 : i32, i32, i32
  }
  func.func @transform_11(%arg0: i32) -> (i32, i32, i32) {
    %c0_i32 = arith.constant 0 : i32
    %c0_i32_0 = arith.constant 0 : i32
    %c0_i32_1 = arith.constant 0 : i32
    %c0_i32_2 = arith.constant 0 : i32
    return %c0_i32, %c0_i32_0, %c0_i32_1 : i32, i32, i32
  }
  func.func @transform_12(%arg0: i32) -> (i32, i32, i32) {
    %c0_i32 = arith.constant 0 : i32
    %c0_i32_0 = arith.constant 0 : i32
    %c0_i32_1 = arith.constant 0 : i32
    %c0_i32_2 = arith.constant 0 : i32
    return %c0_i32, %c0_i32_0, %c0_i32_1 : i32, i32, i32
  }
  func.func @transform_13(%arg0: i32) -> (i32, i32, i32) {
    %c0_i32 = arith.constant 0 : i32
    %c0_i32_0 = arith.constant 0 : i32
    %c0_i32_1 = arith.constant 0 : i32
    %c0_i32_2 = arith.constant 0 : i32
    return %c0_i32, %c0_i32_0, %c0_i32_1 : i32, i32, i32
  }
  func.func @transform_14(%arg0: i32) -> (i32, i32, i32) {
    %c0_i32 = arith.constant 0 : i32
    %c0_i32_0 = arith.constant 0 : i32
    %c0_i32_1 = arith.constant 0 : i32
    %c0_i32_2 = arith.constant 0 : i32
    return %c0_i32, %c0_i32_0, %c0_i32_1 : i32, i32, i32
  }
  func.func @transform_15(%arg0: i32) -> (i32, i32, i32) {
    %c0_i32 = arith.constant 0 : i32
    %c0_i32_0 = arith.constant 0 : i32
    %c0_i32_1 = arith.constant 0 : i32
    %c0_i32_2 = arith.constant 0 : i32
    return %c0_i32, %c0_i32_0, %c0_i32_1 : i32, i32, i32
  }
  func.func @transform_16(%arg0: i32) -> (i32, i32, i32) {
    %c0_i32 = arith.constant 0 : i32
    %c0_i32_0 = arith.constant 0 : i32
    %c0_i32_1 = arith.constant 0 : i32
    %c0_i32_2 = arith.constant 0 : i32
    return %c0_i32, %c0_i32_0, %c0_i32_1 : i32, i32, i32
  }
  func.func @transform_17(%arg0: i32) -> (i32, i32) {
    %c0_i32 = arith.constant 0 : i32
    %c0_i32_0 = arith.constant 0 : i32
    %c0_i32_1 = arith.constant 0 : i32
    return %c0_i32, %c0_i32_0 : i32, i32
  }
  func.func @transform_18(%arg0: i32) -> (i32, i32) {
    %c0_i32 = arith.constant 0 : i32
    %c0_i32_0 = arith.constant 0 : i32
    %c0_i32_1 = arith.constant 0 : i32
    return %c0_i32, %c0_i32_0 : i32, i32
  }
  func.func @transform_19(%arg0: i32) -> (i32, i32, i32) {
    %c0_i32 = arith.constant 0 : i32
    %c0_i32_0 = arith.constant 0 : i32
    %c0_i32_1 = arith.constant 0 : i32
    return %arg0, %c0_i32, %c0_i32_0 : i32, i32, i32
  }
  func.func @transform_20(%arg0: i32) -> (i32, i32, i32) {
    %c0_i32 = arith.constant 0 : i32
    %c0_i32_0 = arith.constant 0 : i32
    %c0_i32_1 = arith.constant 0 : i32
    return %arg0, %c0_i32, %c0_i32_0 : i32, i32, i32
  }
}

module attributes {stable_mosaic.version = 11 : i64} {
  func.func @_pool_classify_kernel(%arg0: i32, %arg1: memref<1x4x16xf32, #tpu.memory_space<vmem>>, %arg2: memref<1x16x128xf32, #tpu.memory_space<vmem>>, %arg3: memref<4x128x128xf32, #tpu.memory_space<vmem>>, %arg4: memref<4x128xf32, #tpu.memory_space<vmem>>, %arg5: memref<4x128xf32, #tpu.memory_space<vmem>>, %arg6: memref<4x128xf32, #tpu.memory_space<vmem>>, %arg7: memref<1x4x128xf32, #tpu.memory_space<vmem>>) attributes {dimension_semantics = [#tpu.dimension_semantics<parallel>], iteration_bounds = array<i64: 2>, scalar_prefetch = 0 : i64, scratch_operands = 0 : i64, tpu.core_type = #tpu.core_type<tc>, window_params = [{transform_indices = @transform_0, window_bounds = array<i64: 1, 4, 16>}, {transform_indices = @transform_1, window_bounds = array<i64: 1, 16, 128>}, {pipeline_mode = #tpu.pipeline_mode<synchronous>, transform_indices = @transform_2, window_bounds = array<i64: 4, 128, 128>}, {pipeline_mode = #tpu.pipeline_mode<synchronous>, transform_indices = @transform_3, window_bounds = array<i64: 4, 128>}, {pipeline_mode = #tpu.pipeline_mode<synchronous>, transform_indices = @transform_4, window_bounds = array<i64: 4, 128>}, {pipeline_mode = #tpu.pipeline_mode<synchronous>, transform_indices = @transform_5, window_bounds = array<i64: 4, 128>}, {transform_indices = @transform_6, window_bounds = array<i64: 1, 4, 128>}]} {
    %c0 = arith.constant 0 : index
    %c0_0 = arith.constant 0 : index
    %c0_1 = arith.constant 0 : index
    %0 = vector.load %arg2[%c0, %c0_0, %c0_1] : memref<1x16x128xf32, #tpu.memory_space<vmem>>, vector<1x16x128xf32>
    %1 = vector.shape_cast %0 : vector<1x16x128xf32> to vector<16x128xf32>
    %c0_2 = arith.constant 0 : index
    %c0_3 = arith.constant 0 : index
    %c0_4 = arith.constant 0 : index
    %2 = vector.load %arg1[%c0_2, %c0_3, %c0_4] : memref<1x4x16xf32, #tpu.memory_space<vmem>>, vector<1x4x16xf32>
    %3 = vector.shape_cast %2 : vector<1x4x16xf32> to vector<4x16xf32>
    %cst = arith.constant dense<0.000000e+00> : vector<4x128xf32>
    %4 = tpu.matmul %3, %1, %cst {dimension_numbers = #tpu.dot_dimension_numbers<[1], [0], [0], [1], [0, 0, 1, 1], [], []>} : vector<4x16xf32>, vector<16x128xf32>, vector<4x128xf32> -> vector<4x128xf32>
    %5 = vector.extract_strided_slice %4 {offsets = [0, 0], sizes = [1, 128], strides = [1, 1]} : vector<4x128xf32> to vector<1x128xf32>
    %c0_5 = arith.constant 0 : index
    %c0_6 = arith.constant 0 : index
    %c0_7 = arith.constant 0 : index
    %6 = vector.load %arg3[%c0_5, %c0_6, %c0_7] : memref<4x128x128xf32, #tpu.memory_space<vmem>>, vector<1x128x128xf32>
    %7 = vector.shape_cast %6 : vector<1x128x128xf32> to vector<128x128xf32>
    %cst_8 = arith.constant dense<0.000000e+00> : vector<1x128xf32>
    %8 = tpu.matmul %5, %7, %cst_8 {dimension_numbers = #tpu.dot_dimension_numbers<[1], [0], [0], [1], [0, 0, 1, 1], [], []>} : vector<1x128xf32>, vector<128x128xf32>, vector<1x128xf32> -> vector<1x128xf32>
    %9 = vector.extract_strided_slice %4 {offsets = [1, 0], sizes = [1, 128], strides = [1, 1]} : vector<4x128xf32> to vector<1x128xf32>
    %c1 = arith.constant 1 : index
    %c0_9 = arith.constant 0 : index
    %c0_10 = arith.constant 0 : index
    %10 = vector.load %arg3[%c1, %c0_9, %c0_10] : memref<4x128x128xf32, #tpu.memory_space<vmem>>, vector<1x128x128xf32>
    %11 = vector.shape_cast %10 : vector<1x128x128xf32> to vector<128x128xf32>
    %cst_11 = arith.constant dense<0.000000e+00> : vector<1x128xf32>
    %12 = tpu.matmul %9, %11, %cst_11 {dimension_numbers = #tpu.dot_dimension_numbers<[1], [0], [0], [1], [0, 0, 1, 1], [], []>} : vector<1x128xf32>, vector<128x128xf32>, vector<1x128xf32> -> vector<1x128xf32>
    %13 = vector.extract_strided_slice %4 {offsets = [2, 0], sizes = [1, 128], strides = [1, 1]} : vector<4x128xf32> to vector<1x128xf32>
    %c2 = arith.constant 2 : index
    %c0_12 = arith.constant 0 : index
    %c0_13 = arith.constant 0 : index
    %14 = vector.load %arg3[%c2, %c0_12, %c0_13] : memref<4x128x128xf32, #tpu.memory_space<vmem>>, vector<1x128x128xf32>
    %15 = vector.shape_cast %14 : vector<1x128x128xf32> to vector<128x128xf32>
    %cst_14 = arith.constant dense<0.000000e+00> : vector<1x128xf32>
    %16 = tpu.matmul %13, %15, %cst_14 {dimension_numbers = #tpu.dot_dimension_numbers<[1], [0], [0], [1], [0, 0, 1, 1], [], []>} : vector<1x128xf32>, vector<128x128xf32>, vector<1x128xf32> -> vector<1x128xf32>
    %17 = vector.extract_strided_slice %4 {offsets = [3, 0], sizes = [1, 128], strides = [1, 1]} : vector<4x128xf32> to vector<1x128xf32>
    %c3 = arith.constant 3 : index
    %c0_15 = arith.constant 0 : index
    %c0_16 = arith.constant 0 : index
    %18 = vector.load %arg3[%c3, %c0_15, %c0_16] : memref<4x128x128xf32, #tpu.memory_space<vmem>>, vector<1x128x128xf32>
    %19 = vector.shape_cast %18 : vector<1x128x128xf32> to vector<128x128xf32>
    %cst_17 = arith.constant dense<0.000000e+00> : vector<1x128xf32>
    %20 = tpu.matmul %17, %19, %cst_17 {dimension_numbers = #tpu.dot_dimension_numbers<[1], [0], [0], [1], [0, 0, 1, 1], [], []>} : vector<1x128xf32>, vector<128x128xf32>, vector<1x128xf32> -> vector<1x128xf32>
    %21 = tpu.concatenate %8, %12, %16, %20 in 0 : vector<1x128xf32>, vector<1x128xf32>, vector<1x128xf32>, vector<1x128xf32> -> vector<4x128xf32>
    %c0_18 = arith.constant 0 : index
    %c0_19 = arith.constant 0 : index
    %22 = vector.load %arg4[%c0_18, %c0_19] : memref<4x128xf32, #tpu.memory_space<vmem>>, vector<4x128xf32>
    %23 = arith.addf %21, %22 : vector<4x128xf32>
    %c0_20 = arith.constant 0 : index
    %c0_21 = arith.constant 0 : index
    %24 = vector.load %arg5[%c0_20, %c0_21] : memref<4x128xf32, #tpu.memory_space<vmem>>, vector<4x128xf32>
    %25 = arith.mulf %23, %24 : vector<4x128xf32>
    %c0_22 = arith.constant 0 : index
    %c0_23 = arith.constant 0 : index
    %26 = vector.load %arg6[%c0_22, %c0_23] : memref<4x128xf32, #tpu.memory_space<vmem>>, vector<4x128xf32>
    %27 = arith.addf %25, %26 : vector<4x128xf32>
    %c0_24 = arith.constant 0 : index
    %c0_25 = arith.constant 0 : index
    %c0_26 = arith.constant 0 : index
    %28 = vector.load %arg7[%c0_24, %c0_25, %c0_26] : memref<1x4x128xf32, #tpu.memory_space<vmem>>, vector<1x4x128xf32>
    %29 = vector.shape_cast %28 : vector<1x4x128xf32> to vector<4x128xf32>
    %30 = vector.shape_cast %27 : vector<4x128xf32> to vector<1x4x128xf32>
    tpu.vector_store %arg7[%c0_24, %c0_25, %c0_26], %30 {strides = array<i32>} : memref<1x4x128xf32, #tpu.memory_space<vmem>>, vector<1x4x128xf32>,
    return
  }
  func.func @transform_0(%arg0: i32) -> (i32, i32, i32) {
    %c0_i32 = arith.constant 0 : i32
    %c0_i32_0 = arith.constant 0 : i32
    %c0_i32_1 = arith.constant 0 : i32
    return %arg0, %c0_i32, %c0_i32_0 : i32, i32, i32
  }
  func.func @transform_1(%arg0: i32) -> (i32, i32, i32) {
    %c0_i32 = arith.constant 0 : i32
    %c0_i32_0 = arith.constant 0 : i32
    %c0_i32_1 = arith.constant 0 : i32
    return %arg0, %c0_i32, %c0_i32_0 : i32, i32, i32
  }
  func.func @transform_2(%arg0: i32) -> (i32, i32, i32) {
    %c0_i32 = arith.constant 0 : i32
    %c0_i32_0 = arith.constant 0 : i32
    %c0_i32_1 = arith.constant 0 : i32
    %c0_i32_2 = arith.constant 0 : i32
    return %c0_i32, %c0_i32_0, %c0_i32_1 : i32, i32, i32
  }
  func.func @transform_3(%arg0: i32) -> (i32, i32) {
    %c0_i32 = arith.constant 0 : i32
    %c0_i32_0 = arith.constant 0 : i32
    %c0_i32_1 = arith.constant 0 : i32
    return %c0_i32, %c0_i32_0 : i32, i32
  }
  func.func @transform_4(%arg0: i32) -> (i32, i32) {
    %c0_i32 = arith.constant 0 : i32
    %c0_i32_0 = arith.constant 0 : i32
    %c0_i32_1 = arith.constant 0 : i32
    return %c0_i32, %c0_i32_0 : i32, i32
  }
  func.func @transform_5(%arg0: i32) -> (i32, i32) {
    %c0_i32 = arith.constant 0 : i32
    %c0_i32_0 = arith.constant 0 : i32
    %c0_i32_1 = arith.constant 0 : i32
    return %c0_i32, %c0_i32_0 : i32, i32
  }
  func.func @transform_6(%arg0: i32) -> (i32, i32, i32) {
    %c0_i32 = arith.constant 0 : i32
    %c0_i32_0 = arith.constant 0 : i32
    %c0_i32_1 = arith.constant 0 : i32
    return %arg0, %c0_i32, %c0_i32_0 : i32, i32, i32
  }
}

</mosaic_0001>

<llo_original>
// kernel: neg.0
$region0: #{neg.0}
  #allocation0 [shape = 's32[1]{0}', space=sflag, size = 0x4, scoped, tag = 'scoped memory for neg.0']
  %s0 = inlined_call_operand.vmem [shape: f32[2,16,1], index: 0, kind: input, shape index: {}]
  %s1 = inlined_call_operand.vmem [shape: f32[2,16,1], index: 1, kind: output, shape index: {}]
  %v2 = vld [vmem:[%s0] sm:$0xff]
  %3 = xla_tuple %v2
  %4 = xla_tuple %3
  %v5 = vxor.u32 %v2, 2147483648
  %6 = xla_tuple %v5
  %7 = vst [vmem:[%s1] sm:$0xff] %v5
  %s8 = scalar_lea.vmem %s0, 16
  %v9 = vld [vmem:[%s8] sm:$0xff]
  %10 = xla_tuple %v9
  %11 = xla_tuple %10
  %v12 = vxor.u32 %v9, 2147483648
  %13 = xla_tuple %v12
  %s14 = scalar_lea.vmem %s1, 16
  %15 = vst [vmem:[%s14] sm:$0xff] %v12
  %s16 = scalar_lea.vmem %s0, 8
  %v17 = vld [vmem:[%s16] sm:$0xff]
  %18 = xla_tuple %v17
  %19 = xla_tuple %18
  %v20 = vxor.u32 %v17, 2147483648
  %21 = xla_tuple %v20
  %s22 = scalar_lea.vmem %s1, 8
  %23 = vst [vmem:[%s22] sm:$0xff] %v20
  %s24 = scalar_lea.vmem %s0, 24
  %v25 = vld [vmem:[%s24] sm:$0xff]
  %26 = xla_tuple %v25
  %27 = xla_tuple %26
  %v28 = vxor.u32 %v25, 2147483648
  %29 = xla_tuple %v28
  %s30 = scalar_lea.vmem %s1, 24
  %31 = vst [vmem:[%s30] sm:$0xff] %v28

// kernel: build_transformer_forward.3
$region0: #{build_transformer_forward.3}
  #allocation0 [shape = 'u32[]', space=smem, size = 0x4, offset = 0x4, fixed_abs, tag = 'smem constant byte address 0x4 - core index']
  #allocation1 [shape = 'u32[144,128]{1,0:T(1,128)}', space=vmem, size = 0x12000, scoped, tag = 'internal scratch']
  %s0 = inlined_call_operand.vmem [shape: f32[2,4,16], index: 0, kind: input, shape index: {}]
  %s1 = inlined_call_operand.vmem [shape: f32[2,16,128], index: 1, kind: input, shape index: {}]
  %s2 = inlined_call_operand.vmem [shape: f32[4,128,128], index: 2, kind: input, shape index: {}]
  %s3 = inlined_call_operand.vmem [shape: f32[4,128], index: 3, kind: input, shape index: {}]
  %s4 = inlined_call_operand.vmem [shape: f32[4,128], index: 4, kind: input, shape index: {}]
  %s5 = inlined_call_operand.vmem [shape: f32[4,128], index: 5, kind: input, shape index: {}]
  %s6 = inlined_call_operand.hbm [shape: f32[2,4,128], index: 6, kind: output, shape index: {}]
  %s7 = sld [smem:[#allocation0]]
  $region57: #{build_transformer_forward.3} parent=0
    _
  %s9 = ssub.s32 1, %s7
  %s10 = scalar_select 0, %s9, %s7
  $region1: #{build_transformer_forward.3} parent=0
    #allocation2 [shape = 'u8[4096]{0}', space=vmem, size = 0x1000, scoped, tag = 'output window, operand 0']
    #allocation3 [shape = 's32[2]{0}', space=sflag, size = 0x8, scoped, tag = 'scoped memory for build_transformer_forward.3']
    %11 = vsyncpa [#allocation3], 0
    %s12 = scalar_lea.sflag [#allocation3], 1
    %13 = vsyncpa %s12, 0
    loop: start=0, step=1, limit=4
    $region2: #{build_transformer_forward.3} parent=1 // loop_pre_header
      _
    $region3: #{build_transformer_forward.3} parent=1 // loop_header
      %s15 = sphi 0, %s19
      %p16 = scmp.ge.s32.totalorder %s15, 4
      %s25 = sphi 0, %s27
      %s28 = sphi 0, %s25
      %s29 = sphi 0, %s28
      %s45 = sphi 0, %s29
      %s51 = sphi 0, %s53
      %s54 = sphi 0, %s51
      %s55 = sphi 0, %s54
      %s71 = sphi 0, %s55
      %s75 = sphi 0, %s75
      %s77 = sphi 0, %s75
      %s78 = sphi 0, %s77
      %s92 = sphi 0, %s78
      %s96 = sphi 0, %s96
      %s98 = sphi 0, %s96
      %s99 = sphi 0, %s98
      %s113 = sphi 0, %s99
      %s117 = sphi 0, %s117
      %s119 = sphi 0, %s117
      %s120 = sphi 0, %s119
      %s134 = sphi 0, %s120
      %s138 = sphi 0, %s138
      %s140 = sphi 0, %s138
      %s141 = sphi 0, %s140
      %s155 = sphi 0, %s141
      %s161 = sphi 0, %s163
      %s164 = sphi 0, %s161
      %s165 = sphi 0, %s164
      %s181 = sphi 0, %s165
    $region4: #{build_transformer_forward.3} parent=1 // loop_header_branch
      %18 = sbr.rel (%p16) target = $region8
    $region5: #{build_transformer_forward.3} parent=1 // loop_body
      %s20 = ssub.s32 %s15, 1
      %s21 = ssub.s32 %s15, 2
      %s22 = sadd.s32 %s15, 1
      %s23 = ssub.s32 %s15, %s22
      %p24 = scmp.eq.s32.totalorder %s23, 0
      %s26 = sadd.s32 %s25, 1
      %s27 = scalar_select %p24, %s25, %s26
      %p30 = pneg %p24
      %p31 = scmp.eq.s32.totalorder %s15, 1
      %p32 = por %p30, %p31
      %p33 = scmp.ne.s32.totalorder %s25, %s28
      %p34 = scmp.eq.s32.totalorder %s15, 0
      %p35 = por %p33, %p34
      %p36 = scmp.ne.s32.totalorder %s25, %s28
      %p37 = scmp.eq.s32.totalorder %s20, 1
      %p38 = por %p36, %p37
      %p39 = scmp.ne.s32.totalorder %s28, %s29
      %p40 = scmp.eq.s32.totalorder %s20, 0
      %p41 = por %p39, %p40
      %p42 = scmp.ne.s32.totalorder %s28, %s29
      %p43 = scmp.eq.s32.totalorder %s21, 1
      %p44 = por %p42, %p43
      %p46 = scmp.ne.s32.totalorder %s29, %s45
      %p47 = scmp.eq.s32.totalorder %s21, 0
      %p48 = por %p46, %p47
      %s49 = ssub.s32 %s15, %s22
      %p50 = scmp.eq.s32.totalorder %s49, 0
      %s52 = sadd.s32 %s51, 1
      %s53 = scalar_select %p50, %s51, %s52
      %p56 = pneg %p50
      %p57 = scmp.eq.s32.totalorder %s15, 1
      %p58 = por %p56, %p57
      %p59 = scmp.ne.s32.totalorder %s51, %s54
      %p60 = scmp.eq.s32.totalorder %s15, 0
      %p61 = por %p59, %p60
      %p62 = scmp.ne.s32.totalorder %s51, %s54
      %p63 = scmp.eq.s32.totalorder %s20, 1
      %p64 = por %p62, %p63
      %p65 = scmp.ne.s32.totalorder %s54, %s55
      %p66 = scmp.eq.s32.totalorder %s20, 0
      %p67 = por %p65, %p66
      %p68 = scmp.ne.s32.totalorder %s54, %s55
      %p69 = scmp.eq.s32.totalorder %s21, 1
      %p70 = por %p68, %p69
      %p72 = scmp.ne.s32.totalorder %s55, %s71
      %p73 = scmp.eq.s32.totalorder %s21, 0
      %p74 = por %p72, %p73
      %s76 = sadd.s32 %s75, 1
      %p79 = scmp.eq.s32.totalorder %s15, 1
      %p80 = scmp.ne.s32.totalorder %s75, %s77
      %p81 = scmp.eq.s32.totalorder %s15, 0
      %p82 = por %p80, %p81
      %p83 = scmp.ne.s32.totalorder %s75, %s77
      %p84 = scmp.eq.s32.totalorder %s20, 1
      %p85 = por %p83, %p84
      %p86 = scmp.ne.s32.totalorder %s77, %s78
      %p87 = scmp.eq.s32.totalorder %s20, 0
      %p88 = por %p86, %p87
      %p89 = scmp.ne.s32.totalorder %s77, %s78
      %p90 = scmp.eq.s32.totalorder %s21, 1
      %p91 = por %p89, %p90
      %p93 = scmp.ne.s32.totalorder %s78, %s92
      %p94 = scmp.eq.s32.totalorder %s21, 0
      %p95 = por %p93, %p94
      %s97 = sadd.s32 %s96, 1
      %p100 = scmp.eq.s32.totalorder %s15, 1
      %p101 = scmp.ne.s32.totalorder %s96, %s98
      %p102 = scmp.eq.s32.totalorder %s15, 0
      %p103 = por %p101, %p102
      %p104 = scmp.ne.s32.totalorder %s96, %s98
      %p105 = scmp.eq.s32.totalorder %s20, 1
      %p106 = por %p104, %p105
      %p107 = scmp.ne.s32.totalorder %s98, %s99
      %p108 = scmp.eq.s32.totalorder %s20, 0
      %p109 = por %p107, %p108
      %p110 = scmp.ne.s32.totalorder %s98, %s99
      %p111 = scmp.eq.s32.totalorder %s21, 1
      %p112 = por %p110, %p111
      %p114 = scmp.ne.s32.totalorder %s99, %s113
      %p115 = scmp.eq.s32.totalorder %s21, 0
      %p116 = por %p114, %p115
      %s118 = sadd.s32 %s117, 1
      %p121 = scmp.eq.s32.totalorder %s15, 1
      %p122 = scmp.ne.s32.totalorder %s117, %s119
      %p123 = scmp.eq.s32.totalorder %s15, 0
      %p124 = por %p122, %p123
      %p125 = scmp.ne.s32.totalorder %s117, %s119
      %p126 = scmp.eq.s32.totalorder %s20, 1
      %p127 = por %p125, %p126
      %p128 = scmp.ne.s32.totalorder %s119, %s120
      %p129 = scmp.eq.s32.totalorder %s20, 0
      %p130 = por %p128, %p129
      %p131 = scmp.ne.s32.totalorder %s119, %s120
      %p132 = scmp.eq.s32.totalorder %s21, 1
      %p133 = por %p131, %p132
      %p135 = scmp.ne.s32.totalorder %s120, %s134
      %p136 = scmp.eq.s32.totalorder %s21, 0
      %p137 = por %p135, %p136
      %s139 = sadd.s32 %s138, 1
      %p142 = scmp.eq.s32.totalorder %s15, 1
      %p143 = scmp.ne.s32.totalorder %s138, %s140
      %p144 = scmp.eq.s32.totalorder %s15, 0
      %p145 = por %p143, %p144
      %p146 = scmp.ne.s32.totalorder %s138, %s140
      %p147 = scmp.eq.s32.totalorder %s20, 1
      %p148 = por %p146, %p147
      %p149 = scmp.ne.s32.totalorder %s140, %s141
      %p150 = scmp.eq.s32.totalorder %s20, 0
      %p151 = por %p149, %p150
      %p152 = scmp.ne.s32.totalorder %s140, %s141
      %p153 = scmp.eq.s32.totalorder %s21, 1
      %p154 = por %p152, %p153
      %p156 = scmp.ne.s32.totalorder %s141, %s155
      %p157 = scmp.eq.s32.totalorder %s21, 0
      %p158 = por %p156, %p157
      %s159 = ssub.s32 %s15, %s22
      %p160 = scmp.eq.s32.totalorder %s159, 0
      %s162 = sadd.s32 %s161, 1
      %s163 = scalar_select %p160, %s161, %s162
      %p166 = pneg %p160
      %p167 = scmp.eq.s32.totalorder %s15, 1
      %p168 = por %p166, %p167
      %p169 = scmp.ne.s32.totalorder %s161, %s164
      %p170 = scmp.eq.s32.totalorder %s15, 0
      %p171 = por %p169, %p170
      %p172 = scmp.ne.s32.totalorder %s161, %s164
      %p173 = scmp.eq.s32.totalorder %s20, 1
      %p174 = por %p172, %p173
      %p175 = scmp.ne.s32.totalorder %s164, %s165
      %p176 = scmp.eq.s32.totalorder %s20, 0
      %p177 = por %p175, %p176
      %p178 = scmp.ne.s32.totalorder %s164, %s165
      %p179 = scmp.eq.s32.totalorder %s21, 1
      %p180 = por %p178, %p179
      %p182 = scmp.ne.s32.totalorder %s165, %s181
      %p183 = scmp.eq.s32.totalorder %s21, 0
      %p184 = por %p182, %p183
      %p185 = scmp.le.s32.totalorder 1, %s15
      %p186 = scmp.lt.s32.totalorder %s15, 3
      %p187 = pnand %p185, %p186
      %p188 = pneg %p187
      // Predicated region
      $region9: #{build_transformer_forward.3} parent=5 // pred_check
        _
      $region10: #{build_transformer_forward.3} parent=5 // pred_check_branch
        %190 = sbr.rel (%p187) target = $region12
      $region11: #{build_transformer_forward.3} parent=5 // pred_region
        %s191 = ssub.s32 %s15, 1
        // Predicated region
        $region13: #{build_transformer_forward.3} parent=11 // pred_check
          %p192 = pneg %p88
        $region14: #{build_transformer_forward.3} parent=11 // pred_check_branch
          %194 = sbr.rel (%p192) target = $region16
        $region15: #{build_transformer_forward.3} parent=11 // pred_region
          _
        $region16: #{build_transformer_forward.3} parent=11 // pred_fallthru
          _
        // Predicated region
        $region17: #{build_transformer_forward.3} parent=11 // pred_check
          %p195 = pneg %p109
        $region18: #{build_transformer_forward.3} parent=11 // pred_check_branch
          %197 = sbr.rel (%p195) target = $region20
        $region19: #{build_transformer_forward.3} parent=11 // pred_region
          _
        $region20: #{build_transformer_forward.3} parent=11 // pred_fallthru
          _
        // Predicated region
        $region21: #{build_transformer_forward.3} parent=11 // pred_check
          %p198 = pneg %p130
        $region22: #{build_transformer_forward.3} parent=11 // pred_check_branch
          %200 = sbr.rel (%p198) target = $region24
        $region23: #{build_transformer_forward.3} parent=11 // pred_region
          _
        $region24: #{build_transformer_forward.3} parent=11 // pred_fallthru
          _
        // Predicated region
        $region25: #{build_transformer_forward.3} parent=11 // pred_check
          %p201 = pneg %p151
        $region26: #{build_transformer_forward.3} parent=11 // pred_check_branch
          %203 = sbr.rel (%p201) target = $region28
        $region27: #{build_transformer_forward.3} parent=11 // pred_region
          _
        $region28: #{build_transformer_forward.3} parent=11 // pred_fallthru
          _
      $region12: #{build_transformer_forward.3} parent=5 // pred_fallthru
        _
      %p204 = scmp.lt.s32.totalorder %s15, 2
      // Predicated region
      $region29: #{build_transformer_forward.3} parent=5 // pred_check
        %p205 = pneg %p204
      $region30: #{build_transformer_forward.3} parent=5 // pred_check_branch
        %207 = sbr.rel (%p205) target = $region32
      $region31: #{build_transformer_forward.3} parent=5 // pred_region
        // Predicated region
        $region33: #{build_transformer_forward.3} parent=31 // pred_check
          %p208 = pneg %p35
        $region34: #{build_transformer_forward.3} parent=31 // pred_check_branch
          %210 = sbr.rel (%p208) target = $region36
        $region35: #{build_transformer_forward.3} parent=31 // pred_region
          %p211 = scmp.lt.s32.totalorder %s15, 1
          %s212 = scalar_select %p211, %s15, 1
          %s213 = smul.addr %s212, 4
          %s214 = scalar_lea.vmem %s0, %s213
        $region36: #{build_transformer_forward.3} parent=31 // pred_fallthru
          _
        // Predicated region
        $region37: #{build_transformer_forward.3} parent=31 // pred_check
          %p215 = pneg %p61
        $region38: #{build_transformer_forward.3} parent=31 // pred_check_branch
          %217 = sbr.rel (%p215) target = $region40
        $region39: #{build_transformer_forward.3} parent=31 // pred_region
          %p218 = scmp.lt.s32.totalorder %s15, 1
          %s219 = scalar_select %p218, %s15, 1
          %s220 = smul.addr %s219, 2
          %s221 = smul.addr %s220, 8
          %s222 = scalar_lea.vmem %s1, %s221
        $region40: #{build_transformer_forward.3} parent=31 // pred_fallthru
          _
      $region32: #{build_transformer_forward.3} parent=5 // pred_fallthru
        _
      %p223 = scmp.le.s32.totalorder 1, %s15
      %p224 = scmp.lt.s32.totalorder %s15, 3
      %p225 = pnand %p223, %p224
      %p226 = pneg %p225
      // Predicated region
      $region41: #{build_transformer_forward.3} parent=5 // pred_check
        _
      $region42: #{build_transformer_forward.3} parent=5 // pred_check_branch
        %228 = sbr.rel (%p225) target = $region44
      $region43: #{build_transformer_forward.3} parent=5 // pred_region
        %s229 = ssub.s32 %s15, 1
        %p230 = scmp.lt.s32.totalorder %s20, 1
        %s231 = scalar_select %p230, %s20, 1
        %s232 = smul.addr %s231, 4
        %s233 = scalar_lea.vmem %s0, %s232
        %p234 = pneg %p41
        %p235 = pneg %p38
        %p236 = scmp.lt.s32.totalorder %s20, 1
        %s237 = scalar_select %p236, %s20, 1
        %s238 = smul.addr %s237, 2
        %s239 = smul.addr %s238, 8
        %s240 = scalar_lea.vmem %s1, %s239
        %p241 = pneg %p67
        %p242 = pneg %p64
        %p243 = pneg %p88
        %p244 = pneg %p85
        %p245 = pneg %p109
        %p246 = pneg %p106
        %p247 = pneg %p130
        %p248 = pneg %p127
        %p249 = pneg %p151
        %p250 = pneg %p148
        %p251 = pneg %p177
        %p252 = pneg %p174
        %s253 = sand.u32 %s164, 1
        %s254 = scalar_lea.sflag [#allocation3], %s253
        %s255 = sand.u32 %s164, 1
        %s256 = smul.addr %s255, 4
        %s257 = scalar_lea.vmem [#allocation2], %s256
        %p258 = scmp.lt.s32.totalorder %s20, 1
        %s259 = scalar_select %p258, %s20, 1
        %s260 = smul.addr %s259, 4
        %s261 = scalar_lea.vmem %s0, %s260
        %p262 = scmp.lt.s32.totalorder %s20, 1
        %s263 = scalar_select %p262, %s20, 1
        %s264 = smul.addr %s263, 2
        %s265 = smul.addr %s264, 8
        %s266 = scalar_lea.vmem %s1, %s265
        %v267 = vld [vmem:[%s266] sm:$0xff]
        %v268 = vld [vmem:[%s266 + $0x8] sm:$0xff]
        %v269 = vld [vmem:[%s261] sm:$0xf]
        %vm270 = vcmask 130048
        %v272 = vsel %vm270, %v269, 0
        %274 = vmatprep.subr.mxu0 0.0
        %275 = vmatpush1.msra.mxu0 %v267
        %276 = vmatprep.subr.mxu0 0.0
        %277 = vmatpush1.msra.mxu0 %v268
        %278 = vmatprep.subr.mxu0 0.0
        %279 = vmatpush1.msra.mxu0 0.0
        %280 = vmatprep.subr.mxu0 0.0
        %281 = vmatpush1.msra.mxu0 0.0
        %282 = vmatprep.subr.mxu0 0.0
        %283 = vmatpush1.msra.mxu0 0.0
        %284 = vmatprep.subr.mxu0 0.0
        %285 = vmatpush1.msra.mxu0 0.0
        %286 = vmatprep.subr.mxu0 0.0
        %287 = vmatpush1.msra.mxu0 0.0
        %288 = vmatprep.subr.mxu0 0.0
        %289 = vmatpush1.msra.mxu0 0.0
        %290 = vmatprep.subr.mxu0 0.0
        %291 = vmatpush1.msra.mxu0 0.0
        %292 = vmatprep.subr.mxu0 0.0
        %293 = vmatpush1.msra.mxu0 0.0
        %294 = vmatprep.subr.mxu0 0.0
        %295 = vmatpush1.msra.mxu0 0.0
        %296 = vmatprep.subr.mxu0 0.0
        %297 = vmatpush1.msra.mxu0 0.0
        %298 = vmatprep.subr.mxu0 0.0
        %299 = vmatpush1.msra.mxu0 0.0
        %300 = vmatprep.subr.mxu0 0.0
        %301 = vmatpush1.msra.mxu0 0.0
        %302 = vmatprep.subr.mxu0 0.0
        %303 = vmatpush1.msra.mxu0 0.0
        %304 = vmatprep.subr.mxu0 0.0
        %305 = vmatpush1.msra.mxu0 0.0
        %306 = vmatprep.subr.mxu0 0.0
        %307 = vmatpush1.msra.mxu0 0.0
        %308 = vmatprep.subr.mxu0 0.0
        %309 = vmatpush1.msra.mxu0 0.0
        %310 = vmatprep.subr.mxu0 0.0
        %311 = vmatpush1.msra.mxu0 0.0
        %312 = vmatprep.subr.mxu0 0.0
        %313 = vmatpush1.msra.mxu0 0.0
        %314 = vmatprep.subr.mxu0 0.0
        %315 = vmatpush1.msra.mxu0 0.0
        %316 = vmatprep.subr.mxu0 0.0
        %317 = vmatpush1.msra.mxu0 0.0
        %318 = vmatprep.subr.mxu0 0.0
        %319 = vmatpush1.msra.mxu0 0.0
        %320 = vmatprep.subr.mxu0 0.0
        %321 = vmatpush1.msra.mxu0 0.0
        %322 = vmatprep.subr.mxu0 0.0
        %323 = vmatpush1.msra.mxu0 0.0
        %324 = vmatprep.subr.mxu0 0.0
        %325 = vmatpush1.msra.mxu0 0.0
        %326 = vmatprep.subr.mxu0 0.0
        %327 = vmatpush1.msra.mxu0 0.0
        %328 = vmatprep.subr.mxu0 0.0
        %329 = vmatpush1.msra.mxu0 0.0
        %330 = vmatprep.subr.mxu0 0.0
        %331 = vmatpush1.msra.mxu0 0.0
        %332 = vmatprep.subr.mxu0 0.0
        %333 = vmatpush1.msra.mxu0 0.0
        %334 = vmatprep.subr.mxu0 0.0
        %335 = vmatpush1.msra.mxu0 0.0
        %336 = vmatprep.subr.mxu0 0.0
        %337 = vmatpush1.msra.mxu0 0.0
        %338 = vmatprep.mubr.f32.mxu0 0.0
        %339 = vmatmul.mubr.f32.gmra.mrb[0].mxu0 %v272
        %v340 = vpop.f32.mrb[0].mxu0
        %v341 = vadd.f32 0.0, %v340
        %v342 = vpop.f32.mrb[0].mxu0
        %343 = vdwg.mxu0
        %v344 = vld [vmem:[%s2] sm:$0xff]
        %v345 = vld [vmem:[%s2 + $0x8] sm:$0xff]
        %v346 = vld [vmem:[%s2 + $0x10] sm:$0xff]
        %v347 = vld [vmem:[%s2 + $0x18] sm:$0xff]
        %v348 = vld [vmem:[%s2 + $0x20] sm:$0xff]
        %v349 = vld [vmem:[%s2 + $0x28] sm:$0xff]
        %v350 = vld [vmem:[%s2 + $0x30] sm:$0xff]
        %v351 = vld [vmem:[%s2 + $0x38] sm:$0xff]
        %v352 = vld [vmem:[%s2 + $0x40] sm:$0xff]
        %v353 = vld [vmem:[%s2 + $0x48] sm:$0xff]
        %v354 = vld [vmem:[%s2 + $0x50] sm:$0xff]
        %v355 = vld [vmem:[%s2 + $0x58] sm:$0xff]
        %v356 = vld [vmem:[%s2 + $0x60] sm:$0xff]
        %v357 = vld [vmem:[%s2 + $0x68] sm:$0xff]
        %v358 = vld [vmem:[%s2 + $0x70] sm:$0xff]
        %v359 = vld [vmem:[%s2 + $0x78] sm:$0xff]
        %360 = vmatprep.subr.mxu0 0.0
        %361 = vmatpush1.msra.mxu0 %v344
        %362 = vmatprep.subr.mxu0 0.0
        %363 = vmatpush1.msra.mxu0 %v345
        %364 = vmatprep.subr.mxu0 0.0
        %365 = vmatpush1.msra.mxu0 %v346
        %366 = vmatprep.subr.mxu0 0.0
        %367 = vmatpush1.msra.mxu0 %v347
        %368 = vmatprep.subr.mxu0 0.0
        %369 = vmatpush1.msra.mxu0 %v348
        %370 = vmatprep.subr.mxu0 0.0
        %371 = vmatpush1.msra.mxu0 %v349
        %372 = vmatprep.subr.mxu0 0.0
        %373 = vmatpush1.msra.mxu0 %v350
        %374 = vmatprep.subr.mxu0 0.0
        %375 = vmatpush1.msra.mxu0 %v351
        %376 = vmatprep.subr.mxu0 0.0
        %377 = vmatpush1.msra.mxu0 %v352
        %378 = vmatprep.subr.mxu0 0.0
        %379 = vmatpush1.msra.mxu0 %v353
        %380 = vmatprep.subr.mxu0 0.0
        %381 = vmatpush1.msra.mxu0 %v354
        %382 = vmatprep.subr.mxu0 0.0
        %383 = vmatpush1.msra.mxu0 %v355
        %384 = vmatprep.subr.mxu0 0.0
        %385 = vmatpush1.msra.mxu0 %v356
        %386 = vmatprep.subr.mxu0 0.0
        %387 = vmatpush1.msra.mxu0 %v357
        %388 = vmatprep.subr.mxu0 0.0
        %389 = vmatpush1.msra.mxu0 %v358
        %390 = vmatprep.subr.mxu0 0.0
        %391 = vmatpush1.msra.mxu0 %v359
        %392 = vmatprep.subr.mxu0 0.0
        %393 = vmatpush1.msra.mxu0 0.0
        %394 = vmatprep.subr.mxu0 0.0
        %395 = vmatpush1.msra.mxu0 0.0
        %396 = vmatprep.subr.mxu0 0.0
        %397 = vmatpush1.msra.mxu0 0.0
        %398 = vmatprep.subr.mxu0 0.0
        %399 = vmatpush1.msra.mxu0 0.0
        %400 = vmatprep.subr.mxu0 0.0
        %401 = vmatpush1.msra.mxu0 0.0
        %402 = vmatprep.subr.mxu0 0.0
        %403 = vmatpush1.msra.mxu0 0.0
        %404 = vmatprep.subr.mxu0 0.0
        %405 = vmatpush1.msra.mxu0 0.0
        %406 = vmatprep.subr.mxu0 0.0
        %407 = vmatpush1.msra.mxu0 0.0
        %408 = vmatprep.subr.mxu0 0.0
        %409 = vmatpush1.msra.mxu0 0.0
        %410 = vmatprep.subr.mxu0 0.0
        %411 = vmatpush1.msra.mxu0 0.0
        %412 = vmatprep.subr.mxu0 0.0
        %413 = vmatpush1.msra.mxu0 0.0
        %414 = vmatprep.subr.mxu0 0.0
        %415 = vmatpush1.msra.mxu0 0.0
        %416 = vmatprep.subr.mxu0 0.0
        %417 = vmatpush1.msra.mxu0 0.0
        %418 = vmatprep.subr.mxu0 0.0
        %419 = vmatpush1.msra.mxu0 0.0
        %420 = vmatprep.subr.mxu0 0.0
        %421 = vmatpush1.msra.mxu0 0.0
        %422 = vmatprep.subr.mxu0 0.0
        %423 = vmatpush1.msra.mxu0 0.0
        %424 = vmatprep.mubr.f32.mxu0 0.0
        %425 = vmatmul.mubr.f32.gmra.mrb[0].mxu0 %v341
        %v426 = vpop.f32.mrb[0].mxu0
        %v427 = vadd.f32 0.0, %v426
        %v428 = vpop.f32.mrb[0].mxu0
        %429 = vdwg.mxu0
        %s430 = scalar_lea.vmem %s2, 128
        %v431 = vld [vmem:[%s430] sm:$0xff]
        %v432 = vld [vmem:[%s430 + $0x8] sm:$0xff]
        %v433 = vld [vmem:[%s430 + $0x10] sm:$0xff]
        %v434 = vld [vmem:[%s430 + $0x18] sm:$0xff]
        %v435 = vld [vmem:[%s430 + $0x20] sm:$0xff]
        %v436 = vld [vmem:[%s430 + $0x28] sm:$0xff]
        %v437 = vld [vmem:[%s430 + $0x30] sm:$0xff]
        %v438 = vld [vmem:[%s430 + $0x38] sm:$0xff]
        %v439 = vld [vmem:[%s430 + $0x40] sm:$0xff]
        %v440 = vld [vmem:[%s430 + $0x48] sm:$0xff]
        %v441 = vld [vmem:[%s430 + $0x50] sm:$0xff]
        %v442 = vld [vmem:[%s430 + $0x58] sm:$0xff]
        %v443 = vld [vmem:[%s430 + $0x60] sm:$0xff]
        %v444 = vld [vmem:[%s430 + $0x68] sm:$0xff]
        %v445 = vld [vmem:[%s430 + $0x70] sm:$0xff]
        %v446 = vld [vmem:[%s430 + $0x78] sm:$0xff]
        %v448 = vrot.slane %v341, 1
        %450 = vmatprep.subr.mxu0 0.0
        %451 = vmatpush1.msra.mxu0 %v431
        %452 = vmatprep.subr.mxu0 0.0
        %453 = vmatpush1.msra.mxu0 %v432
        %454 = vmatprep.subr.mxu0 0.0
        %455 = vmatpush1.msra.mxu0 %v433
        %456 = vmatprep.subr.mxu0 0.0
        %457 = vmatpush1.msra.mxu0 %v434
        %458 = vmatprep.subr.mxu0 0.0
        %459 = vmatpush1.msra.mxu0 %v435
        %460 = vmatprep.subr.mxu0 0.0
        %461 = vmatpush1.msra.mxu0 %v436
        %462 = vmatprep.subr.mxu0 0.0
        %463 = vmatpush1.msra.mxu0 %v437
        %464 = vmatprep.subr.mxu0 0.0
        %465 = vmatpush1.msra.mxu0 %v438
        %466 = vmatprep.subr.mxu0 0.0
        %467 = vmatpush1.msra.mxu0 %v439
        %468 = vmatprep.subr.mxu0 0.0
        %469 = vmatpush1.msra.mxu0 %v440
        %470 = vmatprep.subr.mxu0 0.0
        %471 = vmatpush1.msra.mxu0 %v441
        %472 = vmatprep.subr.mxu0 0.0
        %473 = vmatpush1.msra.mxu0 %v442
        %474 = vmatprep.subr.mxu0 0.0
        %475 = vmatpush1.msra.mxu0 %v443
        %476 = vmatprep.subr.mxu0 0.0
        %477 = vmatpush1.msra.mxu0 %v444
        %478 = vmatprep.subr.mxu0 0.0
        %479 = vmatpush1.msra.mxu0 %v445
        %480 = vmatprep.subr.mxu0 0.0
        %481 = vmatpush1.msra.mxu0 %v446
        %482 = vmatprep.subr.mxu0 0.0
        %483 = vmatpush1.msra.mxu0 0.0
        %484 = vmatprep.subr.mxu0 0.0
        %485 = vmatpush1.msra.mxu0 0.0
        %486 = vmatprep.subr.mxu0 0.0
        %487 = vmatpush1.msra.mxu0 0.0
        %488 = vmatprep.subr.mxu0 0.0
        %489 = vmatpush1.msra.mxu0 0.0
        %490 = vmatprep.subr.mxu0 0.0
        %491 = vmatpush1.msra.mxu0 0.0
        %492 = vmatprep.subr.mxu0 0.0
        %493 = vmatpush1.msra.mxu0 0.0
        %494 = vmatprep.subr.mxu0 0.0
        %495 = vmatpush1.msra.mxu0 0.0
        %496 = vmatprep.subr.mxu0 0.0
        %497 = vmatpush1.msra.mxu0 0.0
        %498 = vmatprep.subr.mxu0 0.0
        %499 = vmatpush1.msra.mxu0 0.0
        %500 = vmatprep.subr.mxu0 0.0
        %501 = vmatpush1.msra.mxu0 0.0
        %502 = vmatprep.subr.mxu0 0.0
        %503 = vmatpush1.msra.mxu0 0.0
        %504 = vmatprep.subr.mxu0 0.0
        %505 = vmatpush1.msra.mxu0 0.0
        %506 = vmatprep.subr.mxu0 0.0
        %507 = vmatpush1.msra.mxu0 0.0
        %508 = vmatprep.subr.mxu0 0.0
        %509 = vmatpush1.msra.mxu0 0.0
        %510 = vmatprep.subr.mxu0 0.0
        %511 = vmatpush1.msra.mxu0 0.0
        %512 = vmatprep.subr.mxu0 0.0
        %513 = vmatpush1.msra.mxu0 0.0
        %514 = vmatprep.mubr.f32.mxu0 0.0
        %515 = vmatmul.mubr.f32.gmra.mrb[0].mxu0 %v448
        %v516 = vpop.f32.mrb[0].mxu0
        %v517 = vadd.f32 0.0, %v516
        %v518 = vpop.f32.mrb[0].mxu0
        %519 = vdwg.mxu0
        %s520 = scalar_lea.vmem %s2, 256
        %v521 = vld [vmem:[%s520] sm:$0xff]
        %v522 = vld [vmem:[%s520 + $0x8] sm:$0xff]
        %v523 = vld [vmem:[%s520 + $0x10] sm:$0xff]
        %v524 = vld [vmem:[%s520 + $0x18] sm:$0xff]
        %v525 = vld [vmem:[%s520 + $0x20] sm:$0xff]
        %v526 = vld [vmem:[%s520 + $0x28] sm:$0xff]
        %v527 = vld [vmem:[%s520 + $0x30] sm:$0xff]
        %v528 = vld [vmem:[%s520 + $0x38] sm:$0xff]
        %v529 = vld [vmem:[%s520 + $0x40] sm:$0xff]
        %v530 = vld [vmem:[%s520 + $0x48] sm:$0xff]
        %v531 = vld [vmem:[%s520 + $0x50] sm:$0xff]
        %v532 = vld [vmem:[%s520 + $0x58] sm:$0xff]
        %v533 = vld [vmem:[%s520 + $0x60] sm:$0xff]
        %v534 = vld [vmem:[%s520 + $0x68] sm:$0xff]
        %v535 = vld [vmem:[%s520 + $0x70] sm:$0xff]
        %v536 = vld [vmem:[%s520 + $0x78] sm:$0xff]
        %v537 = vrot.slane %v341, 2
        %539 = vmatprep.subr.mxu0 0.0
        %540 = vmatpush1.msra.mxu0 %v521
        %541 = vmatprep.subr.mxu0 0.0
        %542 = vmatpush1.msra.mxu0 %v522
        %543 = vmatprep.subr.mxu0 0.0
        %544 = vmatpush1.msra.mxu0 %v523
        %545 = vmatprep.subr.mxu0 0.0
        %546 = vmatpush1.msra.mxu0 %v524
        %547 = vmatprep.subr.mxu0 0.0
        %548 = vmatpush1.msra.mxu0 %v525
        %549 = vmatprep.subr.mxu0 0.0
        %550 = vmatpush1.msra.mxu0 %v526
        %551 = vmatprep.subr.mxu0 0.0
        %552 = vmatpush1.msra.mxu0 %v527
        %553 = vmatprep.subr.mxu0 0.0
        %554 = vmatpush1.msra.mxu0 %v528
        %555 = vmatprep.subr.mxu0 0.0
        %556 = vmatpush1.msra.mxu0 %v529
        %557 = vmatprep.subr.mxu0 0.0
        %558 = vmatpush1.msra.mxu0 %v530
        %559 = vmatprep.subr.mxu0 0.0
        %560 = vmatpush1.msra.mxu0 %v531
        %561 = vmatprep.subr.mxu0 0.0
        %562 = vmatpush1.msra.mxu0 %v532
        %563 = vmatprep.subr.mxu0 0.0
        %564 = vmatpush1.msra.mxu0 %v533
        %565 = vmatprep.subr.mxu0 0.0
        %566 = vmatpush1.msra.mxu0 %v534
        %567 = vmatprep.subr.mxu0 0.0
        %568 = vmatpush1.msra.mxu0 %v535
        %569 = vmatprep.subr.mxu0 0.0
        %570 = vmatpush1.msra.mxu0 %v536
        %571 = vmatprep.subr.mxu0 0.0
        %572 = vmatpush1.msra.mxu0 0.0
        %573 = vmatprep.subr.mxu0 0.0
        %574 = vmatpush1.msra.mxu0 0.0
        %575 = vmatprep.subr.mxu0 0.0
        %576 = vmatpush1.msra.mxu0 0.0
        %577 = vmatprep.subr.mxu0 0.0
        %578 = vmatpush1.msra.mxu0 0.0
        %579 = vmatprep.subr.mxu0 0.0
        %580 = vmatpush1.msra.mxu0 0.0
        %581 = vmatprep.subr.mxu0 0.0
        %582 = vmatpush1.msra.mxu0 0.0
        %583 = vmatprep.subr.mxu0 0.0
        %584 = vmatpush1.msra.mxu0 0.0
        %585 = vmatprep.subr.mxu0 0.0
        %586 = vmatpush1.msra.mxu0 0.0
        %587 = vmatprep.subr.mxu0 0.0
        %588 = vmatpush1.msra.mxu0 0.0
        %589 = vmatprep.subr.mxu0 0.0
        %590 = vmatpush1.msra.mxu0 0.0
        %591 = vmatprep.subr.mxu0 0.0
        %592 = vmatpush1.msra.mxu0 0.0
        %593 = vmatprep.subr.mxu0 0.0
        %594 = vmatpush1.msra.mxu0 0.0
        %595 = vmatprep.subr.mxu0 0.0
        %596 = vmatpush1.msra.mxu0 0.0
        %597 = vmatprep.subr.mxu0 0.0
        %598 = vmatpush1.msra.mxu0 0.0
        %599 = vmatprep.subr.mxu0 0.0
        %600 = vmatpush1.msra.mxu0 0.0
        %601 = vmatprep.subr.mxu0 0.0
        %602 = vmatpush1.msra.mxu0 0.0
        %603 = vmatprep.mubr.f32.mxu0 0.0
        %604 = vmatmul.mubr.f32.gmra.mrb[0].mxu0 %v537
        %v605 = vpop.f32.mrb[0].mxu0
        %v606 = vadd.f32 0.0, %v605
        %v607 = vpop.f32.mrb[0].mxu0
        %608 = vdwg.mxu0
        %s609 = scalar_lea.vmem %s2, 384
        %v610 = vld [vmem:[%s609] sm:$0xff]
        %v611 = vld [vmem:[%s609 + $0x8] sm:$0xff]
        %v612 = vld [vmem:[%s609 + $0x10] sm:$0xff]
        %v613 = vld [vmem:[%s609 + $0x18] sm:$0xff]
        %v614 = vld [vmem:[%s609 + $0x20] sm:$0xff]
        %v615 = vld [vmem:[%s609 + $0x28] sm:$0xff]
        %v616 = vld [vmem:[%s609 + $0x30] sm:$0xff]
        %v617 = vld [vmem:[%s609 + $0x38] sm:$0xff]
        %v618 = vld [vmem:[%s609 + $0x40] sm:$0xff]
        %v619 = vld [vmem:[%s609 + $0x48] sm:$0xff]
        %v620 = vld [vmem:[%s609 + $0x50] sm:$0xff]
        %v621 = vld [vmem:[%s609 + $0x58] sm:$0xff]
        %v622 = vld [vmem:[%s609 + $0x60] sm:$0xff]
        %v623 = vld [vmem:[%s609 + $0x68] sm:$0xff]
        %v624 = vld [vmem:[%s609 + $0x70] sm:$0xff]
        %v625 = vld [vmem:[%s609 + $0x78] sm:$0xff]
        %v626 = vrot.slane %v341, 3
        %628 = vmatprep.subr.mxu0 0.0
        %629 = vmatpush1.msra.mxu0 %v610
        %630 = vmatprep.subr.mxu0 0.0
        %631 = vmatpush1.msra.mxu0 %v611
        %632 = vmatprep.subr.mxu0 0.0
        %633 = vmatpush1.msra.mxu0 %v612
        %634 = vmatprep.subr.mxu0 0.0
        %635 = vmatpush1.msra.mxu0 %v613
        %636 = vmatprep.subr.mxu0 0.0
        %637 = vmatpush1.msra.mxu0 %v614
        %638 = vmatprep.subr.mxu0 0.0
        %639 = vmatpush1.msra.mxu0 %v615
        %640 = vmatprep.subr.mxu0 0.0
        %641 = vmatpush1.msra.mxu0 %v616
        %642 = vmatprep.subr.mxu0 0.0
        %643 = vmatpush1.msra.mxu0 %v617
        %644 = vmatprep.subr.mxu0 0.0
        %645 = vmatpush1.msra.mxu0 %v618
        %646 = vmatprep.subr.mxu0 0.0
        %647 = vmatpush1.msra.mxu0 %v619
        %648 = vmatprep.subr.mxu0 0.0
        %649 = vmatpush1.msra.mxu0 %v620
        %650 = vmatprep.subr.mxu0 0.0
        %651 = vmatpush1.msra.mxu0 %v621
        %652 = vmatprep.subr.mxu0 0.0
        %653 = vmatpush1.msra.mxu0 %v622
        %654 = vmatprep.subr.mxu0 0.0
        %655 = vmatpush1.msra.mxu0 %v623
        %656 = vmatprep.subr.mxu0 0.0
        %657 = vmatpush1.msra.mxu0 %v624
        %658 = vmatprep.subr.mxu0 0.0
        %659 = vmatpush1.msra.mxu0 %v625
        %660 = vmatprep.subr.mxu0 0.0
        %661 = vmatpush1.msra.mxu0 0.0
        %662 = vmatprep.subr.mxu0 0.0
        %663 = vmatpush1.msra.mxu0 0.0
        %664 = vmatprep.subr.mxu0 0.0
        %665 = vmatpush1.msra.mxu0 0.0
        %666 = vmatprep.subr.mxu0 0.0
        %667 = vmatpush1.msra.mxu0 0.0
        %668 = vmatprep.subr.mxu0 0.0
        %669 = vmatpush1.msra.mxu0 0.0
        %670 = vmatprep.subr.mxu0 0.0
        %671 = vmatpush1.msra.mxu0 0.0
        %672 = vmatprep.subr.mxu0 0.0
        %673 = vmatpush1.msra.mxu0 0.0
        %674 = vmatprep.subr.mxu0 0.0
        %675 = vmatpush1.msra.mxu0 0.0
        %676 = vmatprep.subr.mxu0 0.0
        %677 = vmatpush1.msra.mxu0 0.0
        %678 = vmatprep.subr.mxu0 0.0
        %679 = vmatpush1.msra.mxu0 0.0
        %680 = vmatprep.subr.mxu0 0.0
        %681 = vmatpush1.msra.mxu0 0.0
        %682 = vmatprep.subr.mxu0 0.0
        %683 = vmatpush1.msra.mxu0 0.0
        %684 = vmatprep.subr.mxu0 0.0
        %685 = vmatpush1.msra.mxu0 0.0
        %686 = vmatprep.subr.mxu0 0.0
        %687 = vmatpush1.msra.mxu0 0.0
        %688 = vmatprep.subr.mxu0 0.0
        %689 = vmatpush1.msra.mxu0 0.0
        %690 = vmatprep.subr.mxu0 0.0
        %691 = vmatpush1.msra.mxu0 0.0
        %692 = vmatprep.mubr.f32.mxu0 0.0
        %693 = vmatmul.mubr.f32.gmra.mrb[0].mxu0 %v626
        %v694 = vpop.f32.mrb[0].mxu0
        %v695 = vadd.f32 0.0, %v694
        %v696 = vpop.f32.mrb[0].mxu0
        %697 = vdwg.mxu0
        %v699 = vrot.slane %v517, 7
        %v702 = vrot.slane %v606, 6
        %v705 = vrot.slane %v695, 5
        %vm707 = vcmask 1040384
        %v708 = vsel %vm707, %v427, %v699
        %vm709 = vcmask 1041408
        %v710 = vsel %vm709, %v708, %v702
        %vm711 = vcmask 1042432
        %v712 = vsel %vm711, %v710, %v705
        %v713 = vld [vmem:[%s3] sm:$0xf]
        %v714 = vadd.f32 %v712, %v713
        %v715 = vld [vmem:[%s4] sm:$0xf]
        %v716 = vmul.f32 %v714, %v715
        %v717 = vld [vmem:[%s5] sm:$0xf]
        %v718 = vadd.f32 %v716, %v717
        %719 = vst [vmem:[%s257] sm:$0xf] %v718
        %s720 = sand.u32 %s164, 1
        %s721 = scalar_lea.sflag [#allocation3], %s720
        %s722 = sand.u32 %s164, 1
        %s723 = smul.addr %s722, 4
        %s724 = scalar_lea.vmem [#allocation2], %s723
        // Predicated region
        $region45: #{build_transformer_forward.3} parent=43 // pred_check
          %p725 = pneg %p174
        $region46: #{build_transformer_forward.3} parent=43 // pred_check_branch
          %727 = sbr.rel (%p725) target = $region48
        $region47: #{build_transformer_forward.3} parent=43 // pred_region
          %s729 = ssub.s32 64, 64
          %730 = vsyncadd %s721, %s729
          %s731 = smul.addr %s20, 64
          %s732 = scalar_lea.hbm %s6, %s731
          %s734 = sshll.u32 %s724, 4
          %s735 = int_to_ptr.vmem [resolvable:$true] %s734
          %737 = dma.vmem_to_hbm [thread:$0]  %s735, 64, %s732, %s721
        $region48: #{build_transformer_forward.3} parent=43 // pred_fallthru
          _
      $region44: #{build_transformer_forward.3} parent=5 // pred_fallthru
        _
      %p738 = scmp.le.s32.totalorder 2, %s15
      // Predicated region
      $region49: #{build_transformer_forward.3} parent=5 // pred_check
        %p739 = pneg %p738
      $region50: #{build_transformer_forward.3} parent=5 // pred_check_branch
        %741 = sbr.rel (%p739) target = $region52
      $region51: #{build_transformer_forward.3} parent=5 // pred_region
        %s742 = ssub.s32 %s15, 2
        // Predicated region
        $region53: #{build_transformer_forward.3} parent=51 // pred_check
          %p743 = pneg %p180
        $region54: #{build_transformer_forward.3} parent=51 // pred_check_branch
          %745 = sbr.rel (%p743) target = $region56
        $region55: #{build_transformer_forward.3} parent=51 // pred_region
          %s746 = sand.u32 %s165, 1
          %s747 = scalar_lea.sflag [#allocation3], %s746
          %s748 = sand.u32 %s165, 1
          %s749 = smul.addr %s748, 4
          %s750 = scalar_lea.vmem [#allocation2], %s749
          %751 = dma.done %s747, 64
        $region56: #{build_transformer_forward.3} parent=51 // pred_fallthru
          _
      $region52: #{build_transformer_forward.3} parent=5 // pred_fallthru
        _
    $region6: #{build_transformer_forward.3} parent=1 // loop_footer
      %s19 = sadd.s32 1, %s15
    $region7: #{build_transformer_forward.3} parent=1 // loop_footer_branch
      %14 = sbr.rel target = $region3
    $region8: #{build_transformer_forward.3} parent=1 // loop_exit
      _
    %752 = vsyncpa [#allocation3], 1
    %s753 = scalar_lea.sflag [#allocation3], 1
    %754 = vsyncpa %s753, 1

// kernel: build_transformer_forward.2
$region0: #{build_transformer_forward.2}
  #allocation0 [shape = 'u32[]', space=smem, size = 0x4, offset = 0x4, fixed_abs, tag = 'smem constant byte address 0x4 - core index']
  #allocation1 [shape = 'u32[144,128]{1,0:T(1,128)}', space=vmem, size = 0x12000, scoped, tag = 'internal scratch']
  %s0 = inlined_call_operand.vmem [shape: f32[2,16,768], index: 0, kind: input, shape index: {}]
  %s1 = inlined_call_operand.vmem [shape: f32[768,128], index: 1, kind: input, shape index: {}]
  %s2 = inlined_call_operand.vmem [shape: f32[1,128], index: 2, kind: input, shape index: {}]
  %s3 = inlined_call_operand.vmem [shape: f32[1,128], index: 3, kind: input, shape index: {}]
  %s4 = inlined_call_operand.vmem [shape: f32[17,128], index: 4, kind: input, shape index: {}]
  %s5 = inlined_call_operand.vmem [shape: f32[2,1,128], index: 5, kind: input, shape index: {}]
  %s6 = inlined_call_operand.vmem [shape: f32[2,1,128], index: 6, kind: input, shape index: {}]
  %s7 = inlined_call_operand.vmem [shape: f32[2,128,384], index: 7, kind: input, shape index: {}]
  %s8 = inlined_call_operand.vmem [shape: f32[2,1,384], index: 8, kind: input, shape index: {}]
  %s9 = inlined_call_operand.vmem [shape: f32[2,128,128], index: 9, kind: input, shape index: {}]
  %s10 = inlined_call_operand.vmem [shape: f32[2,1,128], index: 10, kind: input, shape index: {}]
  %s11 = inlined_call_operand.vmem [shape: f32[2,1,128], index: 11, kind: input, shape index: {}]
  %s12 = inlined_call_operand.vmem [shape: f32[2,1,128], index: 12, kind: input, shape index: {}]
  %s13 = inlined_call_operand.vmem [shape: f32[2,128,256], index: 13, kind: input, shape index: {}]
  %s14 = inlined_call_operand.vmem [shape: f32[2,1,256], index: 14, kind: input, shape index: {}]
  %s15 = inlined_call_operand.vmem [shape: f32[2,256,128], index: 15, kind: input, shape index: {}]
  %s16 = inlined_call_operand.vmem [shape: f32[2,1,128], index: 16, kind: input, shape index: {}]
  %s17 = inlined_call_operand.vmem [shape: f32[1,128], index: 17, kind: input, shape index: {}]
  %s18 = inlined_call_operand.vmem [shape: f32[1,128], index: 18, kind: input, shape index: {}]
  %s19 = inlined_call_operand.vmem [shape: f32[2,16,128], index: 19, kind: output, shape index: {0}]
  %s20 = inlined_call_operand.vmem [shape: f32[2,16,1], index: 20, kind: output, shape index: {1}]
  %21 = xla_tuple %s19, %s20
  %s22 = sld [smem:[#allocation0]]
  $region117: #{build_transformer_forward.2} parent=0
    _
  %s24 = ssub.s32 1, %s22
  %s25 = scalar_select 0, %s24, %s22
  loop: start=0, step=1, limit=4
  $region2: #{build_transformer_forward.2} parent=0 // loop_pre_header
    _
  $region3: #{build_transformer_forward.2} parent=0 // loop_header
    %s27 = sphi 0, %s31
    %p28 = scmp.ge.s32.totalorder %s27, 4
    %s37 = sphi 0, %s39
    %s40 = sphi 0, %s37
    %s41 = sphi 0, %s40
    %s57 = sphi 0, %s41
    %s61 = sphi 0, %s61
    %s63 = sphi 0, %s61
    %s64 = sphi 0, %s63
    %s78 = sphi 0, %s64
    %s82 = sphi 0, %s82
    %s84 = sphi 0, %s82
    %s85 = sphi 0, %s84
    %s99 = sphi 0, %s85
    %s103 = sphi 0, %s103
    %s105 = sphi 0, %s103
    %s106 = sphi 0, %s105
    %s120 = sphi 0, %s106
    %s124 = sphi 0, %s124
    %s126 = sphi 0, %s124
    %s127 = sphi 0, %s126
    %s141 = sphi 0, %s127
    %s145 = sphi 0, %s145
    %s147 = sphi 0, %s145
    %s148 = sphi 0, %s147
    %s162 = sphi 0, %s148
    %s166 = sphi 0, %s166
    %s168 = sphi 0, %s166
    %s169 = sphi 0, %s168
    %s183 = sphi 0, %s169
    %s187 = sphi 0, %s187
    %s189 = sphi 0, %s187
    %s190 = sphi 0, %s189
    %s204 = sphi 0, %s190
    %s208 = sphi 0, %s208
    %s210 = sphi 0, %s208
    %s211 = sphi 0, %s210
    %s225 = sphi 0, %s211
    %s229 = sphi 0, %s229
    %s231 = sphi 0, %s229
    %s232 = sphi 0, %s231
    %s246 = sphi 0, %s232
    %s250 = sphi 0, %s250
    %s252 = sphi 0, %s250
    %s253 = sphi 0, %s252
    %s267 = sphi 0, %s253
    %s271 = sphi 0, %s271
    %s273 = sphi 0, %s271
    %s274 = sphi 0, %s273
    %s288 = sphi 0, %s274
    %s292 = sphi 0, %s292
    %s294 = sphi 0, %s292
    %s295 = sphi 0, %s294
    %s309 = sphi 0, %s295
    %s313 = sphi 0, %s313
    %s315 = sphi 0, %s313
    %s316 = sphi 0, %s315
    %s330 = sphi 0, %s316
    %s334 = sphi 0, %s334
    %s336 = sphi 0, %s334
    %s337 = sphi 0, %s336
    %s351 = sphi 0, %s337
    %s355 = sphi 0, %s355
    %s357 = sphi 0, %s355
    %s358 = sphi 0, %s357
    %s372 = sphi 0, %s358
    %s376 = sphi 0, %s376
    %s378 = sphi 0, %s376
    %s379 = sphi 0, %s378
    %s393 = sphi 0, %s379
    %s397 = sphi 0, %s397
    %s399 = sphi 0, %s397
    %s400 = sphi 0, %s399
    %s414 = sphi 0, %s400
    %s418 = sphi 0, %s418
    %s420 = sphi 0, %s418
    %s421 = sphi 0, %s420
    %s435 = sphi 0, %s421
    %s441 = sphi 0, %s443
    %s444 = sphi 0, %s441
    %s445 = sphi 0, %s444
    %s461 = sphi 0, %s445
    %s467 = sphi 0, %s469
    %s470 = sphi 0, %s467
    %s471 = sphi 0, %s470
    %s487 = sphi 0, %s471
  $region4: #{build_transformer_forward.2} parent=0 // loop_header_branch
    %30 = sbr.rel (%p28) target = $region8
  $region5: #{build_transformer_forward.2} parent=0 // loop_body
    %s32 = ssub.s32 %s27, 1
    %s33 = ssub.s32 %s27, 2
    %s34 = sadd.s32 %s27, 1
    %s35 = ssub.s32 %s27, %s34
    %p36 = scmp.eq.s32.totalorder %s35, 0
    %s38 = sadd.s32 %s37, 1
    %s39 = scalar_select %p36, %s37, %s38
    %p42 = pneg %p36
    %p43 = scmp.eq.s32.totalorder %s27, 1
    %p44 = por %p42, %p43
    %p45 = scmp.ne.s32.totalorder %s37, %s40
    %p46 = scmp.eq.s32.totalorder %s27, 0
    %p47 = por %p45, %p46
    %p48 = scmp.ne.s32.totalorder %s37, %s40
    %p49 = scmp.eq.s32.totalorder %s32, 1
    %p50 = por %p48, %p49
    %p51 = scmp.ne.s32.totalorder %s40, %s41
    %p52 = scmp.eq.s32.totalorder %s32, 0
    %p53 = por %p51, %p52
    %p54 = scmp.ne.s32.totalorder %s40, %s41
    %p55 = scmp.eq.s32.totalorder %s33, 1
    %p56 = por %p54, %p55
    %p58 = scmp.ne.s32.totalorder %s41, %s57
    %p59 = scmp.eq.s32.totalorder %s33, 0
    %p60 = por %p58, %p59
    %s62 = sadd.s32 %s61, 1
    %p65 = scmp.eq.s32.totalorder %s27, 1
    %p66 = scmp.ne.s32.totalorder %s61, %s63
    %p67 = scmp.eq.s32.totalorder %s27, 0
    %p68 = por %p66, %p67
    %p69 = scmp.ne.s32.totalorder %s61, %s63
    %p70 = scmp.eq.s32.totalorder %s32, 1
    %p71 = por %p69, %p70
    %p72 = scmp.ne.s32.totalorder %s63, %s64
    %p73 = scmp.eq.s32.totalorder %s32, 0
    %p74 = por %p72, %p73
    %p75 = scmp.ne.s32.totalorder %s63, %s64
    %p76 = scmp.eq.s32.totalorder %s33, 1
    %p77 = por %p75, %p76
    %p79 = scmp.ne.s32.totalorder %s64, %s78
    %p80 = scmp.eq.s32.totalorder %s33, 0
    %p81 = por %p79, %p80
    %s83 = sadd.s32 %s82, 1
    %p86 = scmp.eq.s32.totalorder %s27, 1
    %p87 = scmp.ne.s32.totalorder %s82, %s84
    %p88 = scmp.eq.s32.totalorder %s27, 0
    %p89 = por %p87, %p88
    %p90 = scmp.ne.s32.totalorder %s82, %s84
    %p91 = scmp.eq.s32.totalorder %s32, 1
    %p92 = por %p90, %p91
    %p93 = scmp.ne.s32.totalorder %s84, %s85
    %p94 = scmp.eq.s32.totalorder %s32, 0
    %p95 = por %p93, %p94
    %p96 = scmp.ne.s32.totalorder %s84, %s85
    %p97 = scmp.eq.s32.totalorder %s33, 1
    %p98 = por %p96, %p97
    %p100 = scmp.ne.s32.totalorder %s85, %s99
    %p101 = scmp.eq.s32.totalorder %s33, 0
    %p102 = por %p100, %p101
    %s104 = sadd.s32 %s103, 1
    %p107 = scmp.eq.s32.totalorder %s27, 1
    %p108 = scmp.ne.s32.totalorder %s103, %s105
    %p109 = scmp.eq.s32.totalorder %s27, 0
    %p110 = por %p108, %p109
    %p111 = scmp.ne.s32.totalorder %s103, %s105
    %p112 = scmp.eq.s32.totalorder %s32, 1
    %p113 = por %p111, %p112
    %p114 = scmp.ne.s32.totalorder %s105, %s106
    %p115 = scmp.eq.s32.totalorder %s32, 0
    %p116 = por %p114, %p115
    %p117 = scmp.ne.s32.totalorder %s105, %s106
    %p118 = scmp.eq.s32.totalorder %s33, 1
    %p119 = por %p117, %p118
    %p121 = scmp.ne.s32.totalorder %s106, %s120
    %p122 = scmp.eq.s32.totalorder %s33, 0
    %p123 = por %p121, %p122
    %s125 = sadd.s32 %s124, 1
    %p128 = scmp.eq.s32.totalorder %s27, 1
    %p129 = scmp.ne.s32.totalorder %s124, %s126
    %p130 = scmp.eq.s32.totalorder %s27, 0
    %p131 = por %p129, %p130
    %p132 = scmp.ne.s32.totalorder %s124, %s126
    %p133 = scmp.eq.s32.totalorder %s32, 1
    %p134 = por %p132, %p133
    %p135 = scmp.ne.s32.totalorder %s126, %s127
    %p136 = scmp.eq.s32.totalorder %s32, 0
    %p137 = por %p135, %p136
    %p138 = scmp.ne.s32.totalorder %s126, %s127
    %p139 = scmp.eq.s32.totalorder %s33, 1
    %p140 = por %p138, %p139
    %p142 = scmp.ne.s32.totalorder %s127, %s141
    %p143 = scmp.eq.s32.totalorder %s33, 0
    %p144 = por %p142, %p143
    %s146 = sadd.s32 %s145, 1
    %p149 = scmp.eq.s32.totalorder %s27, 1
    %p150 = scmp.ne.s32.totalorder %s145, %s147
    %p151 = scmp.eq.s32.totalorder %s27, 0
    %p152 = por %p150, %p151
    %p153 = scmp.ne.s32.totalorder %s145, %s147
    %p154 = scmp.eq.s32.totalorder %s32, 1
    %p155 = por %p153, %p154
    %p156 = scmp.ne.s32.totalorder %s147, %s148
    %p157 = scmp.eq.s32.totalorder %s32, 0
    %p158 = por %p156, %p157
    %p159 = scmp.ne.s32.totalorder %s147, %s148
    %p160 = scmp.eq.s32.totalorder %s33, 1
    %p161 = por %p159, %p160
    %p163 = scmp.ne.s32.totalorder %s148, %s162
    %p164 = scmp.eq.s32.totalorder %s33, 0
    %p165 = por %p163, %p164
    %s167 = sadd.s32 %s166, 1
    %p170 = scmp.eq.s32.totalorder %s27, 1
    %p171 = scmp.ne.s32.totalorder %s166, %s168
    %p172 = scmp.eq.s32.totalorder %s27, 0
    %p173 = por %p171, %p172
    %p174 = scmp.ne.s32.totalorder %s166, %s168
    %p175 = scmp.eq.s32.totalorder %s32, 1
    %p176 = por %p174, %p175
    %p177 = scmp.ne.s32.totalorder %s168, %s169
    %p178 = scmp.eq.s32.totalorder %s32, 0
    %p179 = por %p177, %p178
    %p180 = scmp.ne.s32.totalorder %s168, %s169
    %p181 = scmp.eq.s32.totalorder %s33, 1
    %p182 = por %p180, %p181
    %p184 = scmp.ne.s32.totalorder %s169, %s183
    %p185 = scmp.eq.s32.totalorder %s33, 0
    %p186 = por %p184, %p185
    %s188 = sadd.s32 %s187, 1
    %p191 = scmp.eq.s32.totalorder %s27, 1
    %p192 = scmp.ne.s32.totalorder %s187, %s189
    %p193 = scmp.eq.s32.totalorder %s27, 0
    %p194 = por %p192, %p193
    %p195 = scmp.ne.s32.totalorder %s187, %s189
    %p196 = scmp.eq.s32.totalorder %s32, 1
    %p197 = por %p195, %p196
    %p198 = scmp.ne.s32.totalorder %s189, %s190
    %p199 = scmp.eq.s32.totalorder %s32, 0
    %p200 = por %p198, %p199
    %p201 = scmp.ne.s32.totalorder %s189, %s190
    %p202 = scmp.eq.s32.totalorder %s33, 1
    %p203 = por %p201, %p202
    %p205 = scmp.ne.s32.totalorder %s190, %s204
    %p206 = scmp.eq.s32.totalorder %s33, 0
    %p207 = por %p205, %p206
    %s209 = sadd.s32 %s208, 1
    %p212 = scmp.eq.s32.totalorder %s27, 1
    %p213 = scmp.ne.s32.totalorder %s208, %s210
    %p214 = scmp.eq.s32.totalorder %s27, 0
    %p215 = por %p213, %p214
    %p216 = scmp.ne.s32.totalorder %s208, %s210
    %p217 = scmp.eq.s32.totalorder %s32, 1
    %p218 = por %p216, %p217
    %p219 = scmp.ne.s32.totalorder %s210, %s211
    %p220 = scmp.eq.s32.totalorder %s32, 0
    %p221 = por %p219, %p220
    %p222 = scmp.ne.s32.totalorder %s210, %s211
    %p223 = scmp.eq.s32.totalorder %s33, 1
    %p224 = por %p222, %p223
    %p226 = scmp.ne.s32.totalorder %s211, %s225
    %p227 = scmp.eq.s32.totalorder %s33, 0
    %p228 = por %p226, %p227
    %s230 = sadd.s32 %s229, 1
    %p233 = scmp.eq.s32.totalorder %s27, 1
    %p234 = scmp.ne.s32.totalorder %s229, %s231
    %p235 = scmp.eq.s32.totalorder %s27, 0
    %p236 = por %p234, %p235
    %p237 = scmp.ne.s32.totalorder %s229, %s231
    %p238 = scmp.eq.s32.totalorder %s32, 1
    %p239 = por %p237, %p238
    %p240 = scmp.ne.s32.totalorder %s231, %s232
    %p241 = scmp.eq.s32.totalorder %s32, 0
    %p242 = por %p240, %p241
    %p243 = scmp.ne.s32.totalorder %s231, %s232
    %p244 = scmp.eq.s32.totalorder %s33, 1
    %p245 = por %p243, %p244
    %p247 = scmp.ne.s32.totalorder %s232, %s246
    %p248 = scmp.eq.s32.totalorder %s33, 0
    %p249 = por %p247, %p248
    %s251 = sadd.s32 %s250, 1
    %p254 = scmp.eq.s32.totalorder %s27, 1
    %p255 = scmp.ne.s32.totalorder %s250, %s252
    %p256 = scmp.eq.s32.totalorder %s27, 0
    %p257 = por %p255, %p256
    %p258 = scmp.ne.s32.totalorder %s250, %s252
    %p259 = scmp.eq.s32.totalorder %s32, 1
    %p260 = por %p258, %p259
    %p261 = scmp.ne.s32.totalorder %s252, %s253
    %p262 = scmp.eq.s32.totalorder %s32, 0
    %p263 = por %p261, %p262
    %p264 = scmp.ne.s32.totalorder %s252, %s253
    %p265 = scmp.eq.s32.totalorder %s33, 1
    %p266 = por %p264, %p265
    %p268 = scmp.ne.s32.totalorder %s253, %s267
    %p269 = scmp.eq.s32.totalorder %s33, 0
    %p270 = por %p268, %p269
    %s272 = sadd.s32 %s271, 1
    %p275 = scmp.eq.s32.totalorder %s27, 1
    %p276 = scmp.ne.s32.totalorder %s271, %s273
    %p277 = scmp.eq.s32.totalorder %s27, 0
    %p278 = por %p276, %p277
    %p279 = scmp.ne.s32.totalorder %s271, %s273
    %p280 = scmp.eq.s32.totalorder %s32, 1
    %p281 = por %p279, %p280
    %p282 = scmp.ne.s32.totalorder %s273, %s274
    %p283 = scmp.eq.s32.totalorder %s32, 0
    %p284 = por %p282, %p283
    %p285 = scmp.ne.s32.totalorder %s273, %s274
    %p286 = scmp.eq.s32.totalorder %s33, 1
    %p287 = por %p285, %p286
    %p289 = scmp.ne.s32.totalorder %s274, %s288
    %p290 = scmp.eq.s32.totalorder %s33, 0
    %p291 = por %p289, %p290
    %s293 = sadd.s32 %s292, 1
    %p296 = scmp.eq.s32.totalorder %s27, 1
    %p297 = scmp.ne.s32.totalorder %s292, %s294
    %p298 = scmp.eq.s32.totalorder %s27, 0
    %p299 = por %p297, %p298
    %p300 = scmp.ne.s32.totalorder %s292, %s294
    %p301 = scmp.eq.s32.totalorder %s32, 1
    %p302 = por %p300, %p301
    %p303 = scmp.ne.s32.totalorder %s294, %s295
    %p304 = scmp.eq.s32.totalorder %s32, 0
    %p305 = por %p303, %p304
    %p306 = scmp.ne.s32.totalorder %s294, %s295
    %p307 = scmp.eq.s32.totalorder %s33, 1
    %p308 = por %p306, %p307
    %p310 = scmp.ne.s32.totalorder %s295, %s309
    %p311 = scmp.eq.s32.totalorder %s33, 0
    %p312 = por %p310, %p311
    %s314 = sadd.s32 %s313, 1
    %p317 = scmp.eq.s32.totalorder %s27, 1
    %p318 = scmp.ne.s32.totalorder %s313, %s315
    %p319 = scmp.eq.s32.totalorder %s27, 0
    %p320 = por %p318, %p319
    %p321 = scmp.ne.s32.totalorder %s313, %s315
    %p322 = scmp.eq.s32.totalorder %s32, 1
    %p323 = por %p321, %p322
    %p324 = scmp.ne.s32.totalorder %s315, %s316
    %p325 = scmp.eq.s32.totalorder %s32, 0
    %p326 = por %p324, %p325
    %p327 = scmp.ne.s32.totalorder %s315, %s316
    %p328 = scmp.eq.s32.totalorder %s33, 1
    %p329 = por %p327, %p328
    %p331 = scmp.ne.s32.totalorder %s316, %s330
    %p332 = scmp.eq.s32.totalorder %s33, 0
    %p333 = por %p331, %p332
    %s335 = sadd.s32 %s334, 1
    %p338 = scmp.eq.s32.totalorder %s27, 1
    %p339 = scmp.ne.s32.totalorder %s334, %s336
    %p340 = scmp.eq.s32.totalorder %s27, 0
    %p341 = por %p339, %p340
    %p342 = scmp.ne.s32.totalorder %s334, %s336
    %p343 = scmp.eq.s32.totalorder %s32, 1
    %p344 = por %p342, %p343
    %p345 = scmp.ne.s32.totalorder %s336, %s337
    %p346 = scmp.eq.s32.totalorder %s32, 0
    %p347 = por %p345, %p346
    %p348 = scmp.ne.s32.totalorder %s336, %s337
    %p349 = scmp.eq.s32.totalorder %s33, 1
    %p350 = por %p348, %p349
    %p352 = scmp.ne.s32.totalorder %s337, %s351
    %p353 = scmp.eq.s32.totalorder %s33, 0
    %p354 = por %p352, %p353
    %s356 = sadd.s32 %s355, 1
    %p359 = scmp.eq.s32.totalorder %s27, 1
    %p360 = scmp.ne.s32.totalorder %s355, %s357
    %p361 = scmp.eq.s32.totalorder %s27, 0
    %p362 = por %p360, %p361
    %p363 = scmp.ne.s32.totalorder %s355, %s357
    %p364 = scmp.eq.s32.totalorder %s32, 1
    %p365 = por %p363, %p364
    %p366 = scmp.ne.s32.totalorder %s357, %s358
    %p367 = scmp.eq.s32.totalorder %s32, 0
    %p368 = por %p366, %p367
    %p369 = scmp.ne.s32.totalorder %s357, %s358
    %p370 = scmp.eq.s32.totalorder %s33, 1
    %p371 = por %p369, %p370
    %p373 = scmp.ne.s32.totalorder %s358, %s372
    %p374 = scmp.eq.s32.totalorder %s33, 0
    %p375 = por %p373, %p374
    %s377 = sadd.s32 %s376, 1
    %p380 = scmp.eq.s32.totalorder %s27, 1
    %p381 = scmp.ne.s32.totalorder %s376, %s378
    %p382 = scmp.eq.s32.totalorder %s27, 0
    %p383 = por %p381, %p382
    %p384 = scmp.ne.s32.totalorder %s376, %s378
    %p385 = scmp.eq.s32.totalorder %s32, 1
    %p386 = por %p384, %p385
    %p387 = scmp.ne.s32.totalorder %s378, %s379
    %p388 = scmp.eq.s32.totalorder %s32, 0
    %p389 = por %p387, %p388
    %p390 = scmp.ne.s32.totalorder %s378, %s379
    %p391 = scmp.eq.s32.totalorder %s33, 1
    %p392 = por %p390, %p391
    %p394 = scmp.ne.s32.totalorder %s379, %s393
    %p395 = scmp.eq.s32.totalorder %s33, 0
    %p396 = por %p394, %p395
    %s398 = sadd.s32 %s397, 1
    %p401 = scmp.eq.s32.totalorder %s27, 1
    %p402 = scmp.ne.s32.totalorder %s397, %s399
    %p403 = scmp.eq.s32.totalorder %s27, 0
    %p404 = por %p402, %p403
    %p405 = scmp.ne.s32.totalorder %s397, %s399
    %p406 = scmp.eq.s32.totalorder %s32, 1
    %p407 = por %p405, %p406
    %p408 = scmp.ne.s32.totalorder %s399, %s400
    %p409 = scmp.eq.s32.totalorder %s32, 0
    %p410 = por %p408, %p409
    %p411 = scmp.ne.s32.totalorder %s399, %s400
    %p412 = scmp.eq.s32.totalorder %s33, 1
    %p413 = por %p411, %p412
    %p415 = scmp.ne.s32.totalorder %s400, %s414
    %p416 = scmp.eq.s32.totalorder %s33, 0
    %p417 = por %p415, %p416
    %s419 = sadd.s32 %s418, 1
    %p422 = scmp.eq.s32.totalorder %s27, 1
    %p423 = scmp.ne.s32.totalorder %s418, %s420
    %p424 = scmp.eq.s32.totalorder %s27, 0
    %p425 = por %p423, %p424
    %p426 = scmp.ne.s32.totalorder %s418, %s420
    %p427 = scmp.eq.s32.totalorder %s32, 1
    %p428 = por %p426, %p427
    %p429 = scmp.ne.s32.totalorder %s420, %s421
    %p430 = scmp.eq.s32.totalorder %s32, 0
    %p431 = por %p429, %p430
    %p432 = scmp.ne.s32.totalorder %s420, %s421
    %p433 = scmp.eq.s32.totalorder %s33, 1
    %p434 = por %p432, %p433
    %p436 = scmp.ne.s32.totalorder %s421, %s435
    %p437 = scmp.eq.s32.totalorder %s33, 0
    %p438 = por %p436, %p437
    %s439 = ssub.s32 %s27, %s34
    %p440 = scmp.eq.s32.totalorder %s439, 0
    %s442 = sadd.s32 %s441, 1
    %s443 = scalar_select %p440, %s441, %s442
    %p446 = pneg %p440
    %p447 = scmp.eq.s32.totalorder %s27, 1
    %p448 = por %p446, %p447
    %p449 = scmp.ne.s32.totalorder %s441, %s444
    %p450 = scmp.eq.s32.totalorder %s27, 0
    %p451 = por %p449, %p450
    %p452 = scmp.ne.s32.totalorder %s441, %s444
    %p453 = scmp.eq.s32.totalorder %s32, 1
    %p454 = por %p452, %p453
    %p455 = scmp.ne.s32.totalorder %s444, %s445
    %p456 = scmp.eq.s32.totalorder %s32, 0
    %p457 = por %p455, %p456
    %p458 = scmp.ne.s32.totalorder %s444, %s445
    %p459 = scmp.eq.s32.totalorder %s33, 1
    %p460 = por %p458, %p459
    %p462 = scmp.ne.s32.totalorder %s445, %s461
    %p463 = scmp.eq.s32.totalorder %s33, 0
    %p464 = por %p462, %p463
    %s465 = ssub.s32 %s27, %s34
    %p466 = scmp.eq.s32.totalorder %s465, 0
    %s468 = sadd.s32 %s467, 1
    %s469 = scalar_select %p466, %s467, %s468
    %p472 = pneg %p466
    %p473 = scmp.eq.s32.totalorder %s27, 1
    %p474 = por %p472, %p473
    %p475 = scmp.ne.s32.totalorder %s467, %s470
    %p476 = scmp.eq.s32.totalorder %s27, 0
    %p477 = por %p475, %p476
    %p478 = scmp.ne.s32.totalorder %s467, %s470
    %p479 = scmp.eq.s32.totalorder %s32, 1
    %p480 = por %p478, %p479
    %p481 = scmp.ne.s32.totalorder %s470, %s471
    %p482 = scmp.eq.s32.totalorder %s32, 0
    %p483 = por %p481, %p482
    %p484 = scmp.ne.s32.totalorder %s470, %s471
    %p485 = scmp.eq.s32.totalorder %s33, 1
    %p486 = por %p484, %p485
    %p488 = scmp.ne.s32.totalorder %s471, %s487
    %p489 = scmp.eq.s32.totalorder %s33, 0
    %p490 = por %p488, %p489
    %p491 = scmp.le.s32.totalorder 1, %s27
    %p492 = scmp.lt.s32.totalorder %s27, 3
    %p493 = pnand %p491, %p492
    %p494 = pneg %p493
    // Predicated region
    $region9: #{build_transformer_forward.2} parent=5 // pred_check
      _
    $region10: #{build_transformer_forward.2} parent=5 // pred_check_branch
      %496 = sbr.rel (%p493) target = $region12
    $region11: #{build_transformer_forward.2} parent=5 // pred_region
      %s497 = ssub.s32 %s27, 1
      // Predicated region
      $region13: #{build_transformer_forward.2} parent=11 // pred_check
        %p498 = pneg %p74
      $region14: #{build_transformer_forward.2} parent=11 // pred_check_branch
        %500 = sbr.rel (%p498) target = $region16
      $region15: #{build_transformer_forward.2} parent=11 // pred_region
        _
      $region16: #{build_transformer_forward.2} parent=11 // pred_fallthru
        _
      // Predicated region
      $region17: #{build_transformer_forward.2} parent=11 // pred_check
        %p501 = pneg %p95
      $region18: #{build_transformer_forward.2} parent=11 // pred_check_branch
        %503 = sbr.rel (%p501) target = $region20
      $region19: #{build_transformer_forward.2} parent=11 // pred_region
        _
      $region20: #{build_transformer_forward.2} parent=11 // pred_fallthru
        _
      // Predicated region
      $region21: #{build_transformer_forward.2} parent=11 // pred_check
        %p504 = pneg %p116
      $region22: #{build_transformer_forward.2} parent=11 // pred_check_branch
        %506 = sbr.rel (%p504) target = $region24
      $region23: #{build_transformer_forward.2} parent=11 // pred_region
        _
      $region24: #{build_transformer_forward.2} parent=11 // pred_fallthru
        _
      // Predicated region
      $region25: #{build_transformer_forward.2} parent=11 // pred_check
        %p507 = pneg %p137
      $region26: #{build_transformer_forward.2} parent=11 // pred_check_branch
        %509 = sbr.rel (%p507) target = $region28
      $region27: #{build_transformer_forward.2} parent=11 // pred_region
        _
      $region28: #{build_transformer_forward.2} parent=11 // pred_fallthru
        _
      // Predicated region
      $region29: #{build_transformer_forward.2} parent=11 // pred_check
        %p510 = pneg %p158
      $region30: #{build_transformer_forward.2} parent=11 // pred_check_branch
        %512 = sbr.rel (%p510) target = $region32
      $region31: #{build_transformer_forward.2} parent=11 // pred_region
        _
      $region32: #{build_transformer_forward.2} parent=11 // pred_fallthru
        _
      // Predicated region
      $region33: #{build_transformer_forward.2} parent=11 // pred_check
        %p513 = pneg %p179
      $region34: #{build_transformer_forward.2} parent=11 // pred_check_branch
        %515 = sbr.rel (%p513) target = $region36
      $region35: #{build_transformer_forward.2} parent=11 // pred_region
        _
      $region36: #{build_transformer_forward.2} parent=11 // pred_fallthru
        _
      // Predicated region
      $region37: #{build_transformer_forward.2} parent=11 // pred_check
        %p516 = pneg %p200
      $region38: #{build_transformer_forward.2} parent=11 // pred_check_branch
        %518 = sbr.rel (%p516) target = $region40
      $region39: #{build_transformer_forward.2} parent=11 // pred_region
        _
      $region40: #{build_transformer_forward.2} parent=11 // pred_fallthru
        _
      // Predicated region
      $region41: #{build_transformer_forward.2} parent=11 // pred_check
        %p519 = pneg %p221
      $region42: #{build_transformer_forward.2} parent=11 // pred_check_branch
        %521 = sbr.rel (%p519) target = $region44
      $region43: #{build_transformer_forward.2} parent=11 // pred_region
        _
      $region44: #{build_transformer_forward.2} parent=11 // pred_fallthru
        _
      // Predicated region
      $region45: #{build_transformer_forward.2} parent=11 // pred_check
        %p522 = pneg %p242
      $region46: #{build_transformer_forward.2} parent=11 // pred_check_branch
        %524 = sbr.rel (%p522) target = $region48
      $region47: #{build_transformer_forward.2} parent=11 // pred_region
        _
      $region48: #{build_transformer_forward.2} parent=11 // pred_fallthru
        _
      // Predicated region
      $region49: #{build_transformer_forward.2} parent=11 // pred_check
        %p525 = pneg %p263
      $region50: #{build_transformer_forward.2} parent=11 // pred_check_branch
        %527 = sbr.rel (%p525) target = $region52
      $region51: #{build_transformer_forward.2} parent=11 // pred_region
        _
      $region52: #{build_transformer_forward.2} parent=11 // pred_fallthru
        _
      // Predicated region
      $region53: #{build_transformer_forward.2} parent=11 // pred_check
        %p528 = pneg %p284
      $region54: #{build_transformer_forward.2} parent=11 // pred_check_branch
        %530 = sbr.rel (%p528) target = $region56
      $region55: #{build_transformer_forward.2} parent=11 // pred_region
        _
      $region56: #{build_transformer_forward.2} parent=11 // pred_fallthru
        _
      // Predicated region
      $region57: #{build_transformer_forward.2} parent=11 // pred_check
        %p531 = pneg %p305
      $region58: #{build_transformer_forward.2} parent=11 // pred_check_branch
        %533 = sbr.rel (%p531) target = $region60
      $region59: #{build_transformer_forward.2} parent=11 // pred_region
        _
      $region60: #{build_transformer_forward.2} parent=11 // pred_fallthru
        _
      // Predicated region
      $region61: #{build_transformer_forward.2} parent=11 // pred_check
        %p534 = pneg %p326
      $region62: #{build_transformer_forward.2} parent=11 // pred_check_branch
        %536 = sbr.rel (%p534) target = $region64
      $region63: #{build_transformer_forward.2} parent=11 // pred_region
        _
      $region64: #{build_transformer_forward.2} parent=11 // pred_fallthru
        _
      // Predicated region
      $region65: #{build_transformer_forward.2} parent=11 // pred_check
        %p537 = pneg %p347
      $region66: #{build_transformer_forward.2} parent=11 // pred_check_branch
        %539 = sbr.rel (%p537) target = $region68
      $region67: #{build_transformer_forward.2} parent=11 // pred_region
        _
      $region68: #{build_transformer_forward.2} parent=11 // pred_fallthru
        _
      // Predicated region
      $region69: #{build_transformer_forward.2} parent=11 // pred_check
        %p540 = pneg %p368
      $region70: #{build_transformer_forward.2} parent=11 // pred_check_branch
        %542 = sbr.rel (%p540) target = $region72
      $region71: #{build_transformer_forward.2} parent=11 // pred_region
        _
      $region72: #{build_transformer_forward.2} parent=11 // pred_fallthru
        _
      // Predicated region
      $region73: #{build_transformer_forward.2} parent=11 // pred_check
        %p543 = pneg %p389
      $region74: #{build_transformer_forward.2} parent=11 // pred_check_branch
        %545 = sbr.rel (%p543) target = $region76
      $region75: #{build_transformer_forward.2} parent=11 // pred_region
        _
      $region76: #{build_transformer_forward.2} parent=11 // pred_fallthru
        _
      // Predicated region
      $region77: #{build_transformer_forward.2} parent=11 // pred_check
        %p546 = pneg %p410
      $region78: #{build_transformer_forward.2} parent=11 // pred_check_branch
        %548 = sbr.rel (%p546) target = $region80
      $region79: #{build_transformer_forward.2} parent=11 // pred_region
        _
      $region80: #{build_transformer_forward.2} parent=11 // pred_fallthru
        _
      // Predicated region
      $region81: #{build_transformer_forward.2} parent=11 // pred_check
        %p549 = pneg %p431
      $region82: #{build_transformer_forward.2} parent=11 // pred_check_branch
        %551 = sbr.rel (%p549) target = $region84
      $region83: #{build_transformer_forward.2} parent=11 // pred_region
        _
      $region84: #{build_transformer_forward.2} parent=11 // pred_fallthru
        _
    $region12: #{build_transformer_forward.2} parent=5 // pred_fallthru
      _
    %p552 = scmp.lt.s32.totalorder %s27, 2
    // Predicated region
    $region85: #{build_transformer_forward.2} parent=5 // pred_check
      %p553 = pneg %p552
    $region86: #{build_transformer_forward.2} parent=5 // pred_check_branch
      %555 = sbr.rel (%p553) target = $region88
    $region87: #{build_transformer_forward.2} parent=5 // pred_region
      // Predicated region
      $region89: #{build_transformer_forward.2} parent=87 // pred_check
        %p556 = pneg %p47
      $region90: #{build_transformer_forward.2} parent=87 // pred_check_branch
        %558 = sbr.rel (%p556) target = $region92
      $region91: #{build_transformer_forward.2} parent=87 // pred_region
        %p559 = scmp.lt.s32.totalorder %s27, 1
        %s560 = scalar_select %p559, %s27, 1
        %s561 = smul.addr %s560, 12
        %s562 = smul.addr %s561, 8
        %s563 = scalar_lea.vmem %s0, %s562
      $region92: #{build_transformer_forward.2} parent=87 // pred_fallthru
        _
    $region88: #{build_transformer_forward.2} parent=5 // pred_fallthru
      _
    %p564 = scmp.le.s32.totalorder 1, %s27
    %p565 = scmp.lt.s32.totalorder %s27, 3
    %p566 = pnand %p564, %p565
    %p567 = pneg %p566
    // Predicated region
    $region93: #{build_transformer_forward.2} parent=5 // pred_check
      _
    $region94: #{build_transformer_forward.2} parent=5 // pred_check_branch
      %569 = sbr.rel (%p566) target = $region96
    $region95: #{build_transformer_forward.2} parent=5 // pred_region
      %s570 = ssub.s32 %s27, 1
      %p571 = scmp.lt.s32.totalorder %s32, 1
      %s572 = scalar_select %p571, %s32, 1
      %s573 = smul.addr %s572, 12
      %s574 = smul.addr %s573, 8
      %s575 = scalar_lea.vmem %s0, %s574
      %p576 = pneg %p53
      %p577 = pneg %p50
      %p578 = pneg %p74
      %p579 = pneg %p71
      %p580 = pneg %p95
      %p581 = pneg %p92
      %p582 = pneg %p116
      %p583 = pneg %p113
      %p584 = pneg %p137
      %p585 = pneg %p134
      %p586 = pneg %p158
      %p587 = pneg %p155
      %p588 = pneg %p179
      %p589 = pneg %p176
      %p590 = pneg %p200
      %p591 = pneg %p197
      %p592 = pneg %p221
      %p593 = pneg %p218
      %p594 = pneg %p242
      %p595 = pneg %p239
      %p596 = pneg %p263
      %p597 = pneg %p260
      %p598 = pneg %p284
      %p599 = pneg %p281
      %p600 = pneg %p305
      %p601 = pneg %p302
      %p602 = pneg %p326
      %p603 = pneg %p323
      %p604 = pneg %p347
      %p605 = pneg %p344
      %p606 = pneg %p368
      %p607 = pneg %p365
      %p608 = pneg %p389
      %p609 = pneg %p386
      %p610 = pneg %p410
      %p611 = pneg %p407
      %p612 = pneg %p431
      %p613 = pneg %p428
      %p614 = pneg %p457
      %p615 = pneg %p454
      %p616 = scmp.lt.s32.totalorder %s32, 1
      %s617 = scalar_select %p616, %s32, 1
      %s618 = smul.addr %s617, 2
      %s619 = smul.addr %s618, 8
      %s620 = scalar_lea.vmem %s19, %s619
      %p621 = pneg %p483
      %p622 = pneg %p480
      %p623 = scmp.lt.s32.totalorder %s32, 1
      %s624 = scalar_select %p623, %s32, 1
      %s625 = smul.addr %s624, 2
      %s626 = smul.addr %s625, 8
      %s627 = scalar_lea.vmem %s20, %s626
      %p628 = scmp.lt.s32.totalorder %s32, 1
      %s629 = scalar_select %p628, %s32, 1
      %s630 = smul.addr %s629, 12
      %s631 = smul.addr %s630, 8
      %s632 = scalar_lea.vmem %s0, %s631
      %p633 = scmp.lt.s32.totalorder %s32, 1
      %s634 = scalar_select %p633, %s32, 1
      %s635 = smul.addr %s634, 2
      %s636 = smul.addr %s635, 8
      %s637 = scalar_lea.vmem %s19, %s636
      %p638 = scmp.lt.s32.totalorder %s32, 1
      %s639 = scalar_select %p638, %s32, 1
      %s640 = smul.addr %s639, 2
      %s641 = smul.addr %s640, 8
      %s642 = scalar_lea.vmem %s20, %s641
      %v644 = vld [vmem:[%s632] sm:$0xff]
      %v645 = vld [vmem:[%s632 + $0x8] sm:$0xff]
      %v646 = vld [vmem:[%s632 + $0x10] sm:$0xff]
      %v647 = vld [vmem:[%s632 + $0x18] sm:$0xff]
      %v648 = vld [vmem:[%s632 + $0x20] sm:$0xff]
      %v649 = vld [vmem:[%s632 + $0x28] sm:$0xff]
      %v650 = vld [vmem:[%s632 + $0x30] sm:$0xff]
      %v651 = vld [vmem:[%s632 + $0x38] sm:$0xff]
      %v652 = vld [vmem:[%s632 + $0x40] sm:$0xff]
      %v653 = vld [vmem:[%s632 + $0x48] sm:$0xff]
      %v654 = vld [vmem:[%s632 + $0x50] sm:$0xff]
      %v655 = vld [vmem:[%s632 + $0x58] sm:$0xff]
      %v656 = vld [vmem:[%s1] sm:$0xff]
      %v657 = vld [vmem:[%s1 + $0x8] sm:$0xff]
      %v658 = vld [vmem:[%s1 + $0x10] sm:$0xff]
      %v659 = vld [vmem:[%s1 + $0x18] sm:$0xff]
      %v660 = vld [vmem:[%s1 + $0x20] sm:$0xff]
      %v661 = vld [vmem:[%s1 + $0x28] sm:$0xff]
      %v662 = vld [vmem:[%s1 + $0x30] sm:$0xff]
      %v663 = vld [vmem:[%s1 + $0x38] sm:$0xff]
      %v664 = vld [vmem:[%s1 + $0x40] sm:$0xff]
      %v665 = vld [vmem:[%s1 + $0x48] sm:$0xff]
      %v666 = vld [vmem:[%s1 + $0x50] sm:$0xff]
      %v667 = vld [vmem:[%s1 + $0x58] sm:$0xff]
      %v668 = vld [vmem:[%s1 + $0x60] sm:$0xff]
      %v669 = vld [vmem:[%s1 + $0x68] sm:$0xff]
      %v670 = vld [vmem:[%s1 + $0x70] sm:$0xff]
      %v671 = vld [vmem:[%s1 + $0x78] sm:$0xff]
      %v672 = vld [vmem:[%s1 + $0x80] sm:$0xff]
      %v673 = vld [vmem:[%s1 + $0x88] sm:$0xff]
      %v674 = vld [vmem:[%s1 + $0x90] sm:$0xff]
      %v675 = vld [vmem:[%s1 + $0x98] sm:$0xff]
      %v676 = vld [vmem:[%s1 + $0xa0] sm:$0xff]
      %v677 = vld [vmem:[%s1 + $0xa8] sm:$0xff]
      %v678 = vld [vmem:[%s1 + $0xb0] sm:$0xff]
      %v679 = vld [vmem:[%s1 + $0xb8] sm:$0xff]
      %v680 = vld [vmem:[%s1 + $0xc0] sm:$0xff]
      %v681 = vld [vmem:[%s1 + $0xc8] sm:$0xff]
      %v682 = vld [vmem:[%s1 + $0xd0] sm:$0xff]
      %v683 = vld [vmem:[%s1 + $0xd8] sm:$0xff]
      %v684 = vld [vmem:[%s1 + $0xe0] sm:$0xff]
      %v685 = vld [vmem:[%s1 + $0xe8] sm:$0xff]
      %v686 = vld [vmem:[%s1 + $0xf0] sm:$0xff]
      %v687 = vld [vmem:[%s1 + $0xf8] sm:$0xff]
      %v688 = vld [vmem:[%s1 + $0x100] sm:$0xff]
      %v689 = vld [vmem:[%s1 + $0x108] sm:$0xff]
      %v690 = vld [vmem:[%s1 + $0x110] sm:$0xff]
      %v691 = vld [vmem:[%s1 + $0x118] sm:$0xff]
      %v692 = vld [vmem:[%s1 + $0x120] sm:$0xff]
      %v693 = vld [vmem:[%s1 + $0x128] sm:$0xff]
      %v694 = vld [vmem:[%s1 + $0x130] sm:$0xff]
      %v695 = vld [vmem:[%s1 + $0x138] sm:$0xff]
      %v696 = vld [vmem:[%s1 + $0x140] sm:$0xff]
      %v697 = vld [vmem:[%s1 + $0x148] sm:$0xff]
      %v698 = vld [vmem:[%s1 + $0x150] sm:$0xff]
      %v699 = vld [vmem:[%s1 + $0x158] sm:$0xff]
      %v700 = vld [vmem:[%s1 + $0x160] sm:$0xff]
      %v701 = vld [vmem:[%s1 + $0x168] sm:$0xff]
      %v702 = vld [vmem:[%s1 + $0x170] sm:$0xff]
      %v703 = vld [vmem:[%s1 + $0x178] sm:$0xff]
      %v704 = vld [vmem:[%s1 + $0x180] sm:$0xff]
      %v705 = vld [vmem:[%s1 + $0x188] sm:$0xff]
      %v706 = vld [vmem:[%s1 + $0x190] sm:$0xff]
      %v707 = vld [vmem:[%s1 + $0x198] sm:$0xff]
      %v708 = vld [vmem:[%s1 + $0x1a0] sm:$0xff]
      %v709 = vld [vmem:[%s1 + $0x1a8] sm:$0xff]
      %v710 = vld [vmem:[%s1 + $0x1b0] sm:$0xff]
      %v711 = vld [vmem:[%s1 + $0x1b8] sm:$0xff]
      %v712 = vld [vmem:[%s1 + $0x1c0] sm:$0xff]
      %v713 = vld [vmem:[%s1 + $0x1c8] sm:$0xff]
      %v714 = vld [vmem:[%s1 + $0x1d0] sm:$0xff]
      %v715 = vld [vmem:[%s1 + $0x1d8] sm:$0xff]
      %v716 = vld [vmem:[%s1 + $0x1e0] sm:$0xff]
      %v717 = vld [vmem:[%s1 + $0x1e8] sm:$0xff]
      %v718 = vld [vmem:[%s1 + $0x1f0] sm:$0xff]
      %v719 = vld [vmem:[%s1 + $0x1f8] sm:$0xff]
      %v720 = vld [vmem:[%s1 + $0x200] sm:$0xff]
      %v721 = vld [vmem:[%s1 + $0x208] sm:$0xff]
      %v722 = vld [vmem:[%s1 + $0x210] sm:$0xff]
      %v723 = vld [vmem:[%s1 + $0x218] sm:$0xff]
      %v724 = vld [vmem:[%s1 + $0x220] sm:$0xff]
      %v725 = vld [vmem:[%s1 + $0x228] sm:$0xff]
      %v726 = vld [vmem:[%s1 + $0x230] sm:$0xff]
      %v727 = vld [vmem:[%s1 + $0x238] sm:$0xff]
      %v728 = vld [vmem:[%s1 + $0x240] sm:$0xff]
      %v729 = vld [vmem:[%s1 + $0x248] sm:$0xff]
      %v730 = vld [vmem:[%s1 + $0x250] sm:$0xff]
      %v731 = vld [vmem:[%s1 + $0x258] sm:$0xff]
      %v732 = vld [vmem:[%s1 + $0x260] sm:$0xff]
      %v733 = vld [vmem:[%s1 + $0x268] sm:$0xff]
      %v734 = vld [vmem:[%s1 + $0x270] sm:$0xff]
      %v735 = vld [vmem:[%s1 + $0x278] sm:$0xff]
      %v736 = vld [vmem:[%s1 + $0x280] sm:$0xff]
      %v737 = vld [vmem:[%s1 + $0x288] sm:$0xff]
      %v738 = vld [vmem:[%s1 + $0x290] sm:$0xff]
      %v739 = vld [vmem:[%s1 + $0x298] sm:$0xff]
      %v740 = vld [vmem:[%s1 + $0x2a0] sm:$0xff]
      %v741 = vld [vmem:[%s1 + $0x2a8] sm:$0xff]
      %v742 = vld [vmem:[%s1 + $0x2b0] sm:$0xff]
      %v743 = vld [vmem:[%s1 + $0x2b8] sm:$0xff]
      %v744 = vld [vmem:[%s1 + $0x2c0] sm:$0xff]
      %v745 = vld [vmem:[%s1 + $0x2c8] sm:$0xff]
      %v746 = vld [vmem:[%s1 + $0x2d0] sm:$0xff]
      %v747 = vld [vmem:[%s1 + $0x2d8] sm:$0xff]
      %v748 = vld [vmem:[%s1 + $0x2e0] sm:$0xff]
      %v749 = vld [vmem:[%s1 + $0x2e8] sm:$0xff]
      %v750 = vld [vmem:[%s1 + $0x2f0] sm:$0xff]
      %v751 = vld [vmem:[%s1 + $0x2f8] sm:$0xff]
      %v752 = vpack.c.bf16 %v650, %v644
      %v753 = vpack.c.bf16 %v651, %v645
      %v754 = vpack.c.bf16 %v652, %v646
      %v755 = vpack.c.bf16 %v653, %v647
      %v756 = vpack.c.bf16 %v654, %v648
      %v757 = vpack.c.bf16 %v655, %v649
      %v758 = vpack.c.bf16 %v657, %v656
      %v759 = vpack.c.bf16 %v659, %v658
      %v760 = vpack.c.bf16 %v661, %v660
      %v761 = vpack.c.bf16 %v663, %v662
      %v762 = vpack.c.bf16 %v665, %v664
      %v763 = vpack.c.bf16 %v667, %v666
      %v764 = vpack.c.bf16 %v669, %v668
      %v765 = vpack.c.bf16 %v671, %v670
      %v766 = vpack.c.bf16 %v673, %v672
      %v767 = vpack.c.bf16 %v675, %v674
      %v768 = vpack.c.bf16 %v677, %v676
      %v769 = vpack.c.bf16 %v679, %v678
      %v770 = vpack.c.bf16 %v681, %v680
      %v771 = vpack.c.bf16 %v683, %v682
      %v772 = vpack.c.bf16 %v685, %v684
      %v773 = vpack.c.bf16 %v687, %v686
      %v774 = vpack.c.bf16 %v689, %v688
      %v775 = vpack.c.bf16 %v691, %v690
      %v776 = vpack.c.bf16 %v693, %v692
      %v777 = vpack.c.bf16 %v695, %v694
      %v778 = vpack.c.bf16 %v697, %v696
      %v779 = vpack.c.bf16 %v699, %v698
      %v780 = vpack.c.bf16 %v701, %v700
      %v781 = vpack.c.bf16 %v703, %v702
      %v782 = vpack.c.bf16 %v705, %v704
      %v783 = vpack.c.bf16 %v707, %v706
      %v784 = vpack.c.bf16 %v709, %v708
      %v785 = vpack.c.bf16 %v711, %v710
      %v786 = vpack.c.bf16 %v713, %v712
      %v787 = vpack.c.bf16 %v715, %v714
      %v788 = vpack.c.bf16 %v717, %v716
      %v789 = vpack.c.bf16 %v719, %v718
      %v790 = vpack.c.bf16 %v721, %v720
      %v791 = vpack.c.bf16 %v723, %v722
      %v792 = vpack.c.bf16 %v725, %v724
      %v793 = vpack.c.bf16 %v727, %v726
      %v794 = vpack.c.bf16 %v729, %v728
      %v795 = vpack.c.bf16 %v731, %v730
      %v796 = vpack.c.bf16 %v733, %v732
      %v797 = vpack.c.bf16 %v735, %v734
      %v798 = vpack.c.bf16 %v737, %v736
      %v799 = vpack.c.bf16 %v739, %v738
      %v800 = vpack.c.bf16 %v741, %v740
      %v801 = vpack.c.bf16 %v743, %v742
      %v802 = vpack.c.bf16 %v745, %v744
      %v803 = vpack.c.bf16 %v747, %v746
      %v804 = vpack.c.bf16 %v749, %v748
      %v805 = vpack.c.bf16 %v751, %v750
      %v806 = vld [vmem:[%s2] sm:$0x1]
      %v808 = vlaneseq
      %v809 = vshrl.u32 %v808, 7
      %v810 = vsub.s32 0, %v809
      %v811 = vrot.slane %v806, %v810
      %813 = vmatprep.subr.bf16.mxu0 0
      %814 = vmatpush1.bf16.msra.mxu0 %v758
      %815 = vmatprep.subr.bf16.mxu0 0
      %816 = vmatpush1.bf16.msra.mxu0 %v759
      %817 = vmatprep.subr.bf16.mxu0 0
      %818 = vmatpush1.bf16.msra.mxu0 %v760
      %819 = vmatprep.subr.bf16.mxu0 0
      %820 = vmatpush1.bf16.msra.mxu0 %v761
      %821 = vmatprep.subr.bf16.mxu0 0
      %822 = vmatpush1.bf16.msra.mxu0 %v762
      %823 = vmatprep.subr.bf16.mxu0 0
      %824 = vmatpush1.bf16.msra.mxu0 %v763
      %825 = vmatprep.subr.bf16.mxu0 0
      %826 = vmatpush1.bf16.msra.mxu0 %v764
      %827 = vmatprep.subr.bf16.mxu0 0
      %828 = vmatpush1.bf16.msra.mxu0 %v765
      %829 = vmatprep.subr.bf16.mxu0 0
      %830 = vmatpush1.bf16.msra.mxu0 %v766
      %831 = vmatprep.subr.bf16.mxu0 0
      %832 = vmatpush1.bf16.msra.mxu0 %v767
      %833 = vmatprep.subr.bf16.mxu0 0
      %834 = vmatpush1.bf16.msra.mxu0 %v768
      %835 = vmatprep.subr.bf16.mxu0 0
      %836 = vmatpush1.bf16.msra.mxu0 %v769
      %837 = vmatprep.subr.bf16.mxu0 0
      %838 = vmatpush1.bf16.msra.mxu0 %v770
      %839 = vmatprep.subr.bf16.mxu0 0
      %840 = vmatpush1.bf16.msra.mxu0 %v771
      %841 = vmatprep.subr.bf16.mxu0 0
      %842 = vmatpush1.bf16.msra.mxu0 %v772
      %843 = vmatprep.subr.bf16.mxu0 0
      %844 = vmatpush1.bf16.msra.mxu0 %v773
      %845 = vmatprep.mubr.bf16.mxu0 %v753
      %846 = vmatmul.mubr.bf16.gmra.mrb[0].mxu0 %v752
      %v847 = vpop.f32.mrb[0].mxu0
      %v848 = vadd.f32 %v811, %v847
      %v849 = vpop.f32.mrb[0].mxu0
      %v850 = vpop.f32.mrb[0].mxu0
      %v851 = vadd.f32 %v811, %v850
      %v852 = vpop.f32.mrb[0].mxu0
      %853 = vdwg.mxu0
      %854 = vmatprep.subr.bf16.mxu0 0
      %855 = vmatpush1.bf16.msra.mxu0 %v774
      %856 = vmatprep.subr.bf16.mxu0 0
      %857 = vmatpush1.bf16.msra.mxu0 %v775
      %858 = vmatprep.subr.bf16.mxu0 0
      %859 = vmatpush1.bf16.msra.mxu0 %v776
      %860 = vmatprep.subr.bf16.mxu0 0
      %861 = vmatpush1.bf16.msra.mxu0 %v777
      %862 = vmatprep.subr.bf16.mxu0 0
      %863 = vmatpush1.bf16.msra.mxu0 %v778
      %864 = vmatprep.subr.bf16.mxu0 0
      %865 = vmatpush1.bf16.msra.mxu0 %v779
      %866 = vmatprep.subr.bf16.mxu0 0
      %867 = vmatpush1.bf16.msra.mxu0 %v780
      %868 = vmatprep.subr.bf16.mxu0 0
      %869 = vmatpush1.bf16.msra.mxu0 %v781
      %870 = vmatprep.subr.bf16.mxu0 0
      %871 = vmatpush1.bf16.msra.mxu0 %v782
      %872 = vmatprep.subr.bf16.mxu0 0
      %873 = vmatpush1.bf16.msra.mxu0 %v783
      %874 = vmatprep.subr.bf16.mxu0 0
      %875 = vmatpush1.bf16.msra.mxu0 %v784
      %876 = vmatprep.subr.bf16.mxu0 0
      %877 = vmatpush1.bf16.msra.mxu0 %v785
      %878 = vmatprep.subr.bf16.mxu0 0
      %879 = vmatpush1.bf16.msra.mxu0 %v786
      %880 = vmatprep.subr.bf16.mxu0 0
      %881 = vmatpush1.bf16.msra.mxu0 %v787
      %882 = vmatprep.subr.bf16.mxu0 0
      %883 = vmatpush1.bf16.msra.mxu0 %v788
      %884 = vmatprep.subr.bf16.mxu0 0
      %885 = vmatpush1.bf16.msra.mxu0 %v789
      %886 = vmatprep.mubr.bf16.mxu0 %v755
      %887 = vmatmul.mubr.bf16.gmra.mrb[0].mxu0 %v754
      %v888 = vpop.f32.mrb[0].mxu0
      %v889 = vadd.f32 %v848, %v888
      %v890 = vpop.f32.mrb[0].mxu0
      %v891 = vpop.f32.mrb[0].mxu0
      %v892 = vadd.f32 %v851, %v891
      %v893 = vpop.f32.mrb[0].mxu0
      %894 = vdwg.mxu0
      %895 = vmatprep.subr.bf16.mxu0 0
      %896 = vmatpush1.bf16.msra.mxu0 %v790
      %897 = vmatprep.subr.bf16.mxu0 0
      %898 = vmatpush1.bf16.msra.mxu0 %v791
      %899 = vmatprep.subr.bf16.mxu0 0
      %900 = vmatpush1.bf16.msra.mxu0 %v792
      %901 = vmatprep.subr.bf16.mxu0 0
      %902 = vmatpush1.bf16.msra.mxu0 %v793
      %903 = vmatprep.subr.bf16.mxu0 0
      %904 = vmatpush1.bf16.msra.mxu0 %v794
      %905 = vmatprep.subr.bf16.mxu0 0
      %906 = vmatpush1.bf16.msra.mxu0 %v795
      %907 = vmatprep.subr.bf16.mxu0 0
      %908 = vmatpush1.bf16.msra.mxu0 %v796
      %909 = vmatprep.subr.bf16.mxu0 0
      %910 = vmatpush1.bf16.msra.mxu0 %v797
      %911 = vmatprep.subr.bf16.mxu0 0
      %912 = vmatpush1.bf16.msra.mxu0 %v798
      %913 = vmatprep.subr.bf16.mxu0 0
      %914 = vmatpush1.bf16.msra.mxu0 %v799
      %915 = vmatprep.subr.bf16.mxu0 0
      %916 = vmatpush1.bf16.msra.mxu0 %v800
      %917 = vmatprep.subr.bf16.mxu0 0
      %918 = vmatpush1.bf16.msra.mxu0 %v801
      %919 = vmatprep.subr.bf16.mxu0 0
      %920 = vmatpush1.bf16.msra.mxu0 %v802
      %921 = vmatprep.subr.bf16.mxu0 0
      %922 = vmatpush1.bf16.msra.mxu0 %v803
      %923 = vmatprep.subr.bf16.mxu0 0
      %924 = vmatpush1.bf16.msra.mxu0 %v804
      %925 = vmatprep.subr.bf16.mxu0 0
      %926 = vmatpush1.bf16.msra.mxu0 %v805
      %927 = vmatprep.mubr.bf16.mxu0 %v757
      %928 = vmatmul.mubr.bf16.gmra.mrb[0].mxu0 %v756
      %v929 = vpop.f32.mrb[0].mxu0
      %v930 = vadd.f32 %v889, %v929
      %v931 = vpop.f32.mrb[0].mxu0
      %v932 = vpop.f32.mrb[0].mxu0
      %v933 = vadd.f32 %v892, %v932
      %v934 = vpop.f32.mrb[0].mxu0
      %935 = vdwg.mxu0
      %v936 = vld [vmem:[%s3] sm:$0x1]
      %vm939 = vcmask 1040384
      %v940 = vrot.slane %v930, 7
      %v941 = vrot.slane %v933, 7
      %v942 = vsel %vm939, %v940, %v941
      %v946 = vsel %vm939, %v936, %v940
      %v947 = vld [vmem:[%s4] sm:$0xff]
      %v948 = vld [vmem:[%s4 + $0x8] sm:$0xff]
      %v949 = vld [vmem:[%s4 + $0x10] sm:$0x1]
      %v950 = vadd.f32 %v946, %v947
      %v951 = vadd.f32 %v942, %v948
      %v952 = vadd.f32 %v941, %v949
      %v953 = vld [vmem:[%s5] sm:$0x1]
      %v954 = vld [vmem:[%s6] sm:$0x1]
      %955 = vadd.xlane.f32.xlu0 %v950
      %v956 = vpop.xlane.xlu0 %955
      %957 = vadd.xlane.f32.xlu0 %v951
      %v958 = vpop.xlane.xlu0 %957
      %v959 = vsel %vm939, %v952, 0.0
      %960 = vadd.xlane.f32.xlu0 %v959
      %v961 = vpop.xlane.xlu0 %960
      %v962 = vrcp.pop 128.0
      %v963 = vmul.f32 %v956, %v962
      %v964 = vmul.f32 %v958, %v962
      %v965 = vmul.f32 %v961, %v962
      %v966 = vsub.f32 %v950, %v963
      %v967 = vsub.f32 %v951, %v964
      %v968 = vsub.f32 %v952, %v965
      %v969 = vmul.f32 %v966, %v966
      %v970 = vmul.f32 %v967, %v967
      %v971 = vmul.f32 %v968, %v968
      %972 = vadd.xlane.f32.xlu0 %v969
      %v973 = vpop.xlane.xlu0 %972
      %974 = vadd.xlane.f32.xlu0 %v970
      %v975 = vpop.xlane.xlu0 %974
      %v976 = vsel %vm939, %v971, 0.0
      %977 = vadd.xlane.f32.xlu0 %v976
      %v978 = vpop.xlane.xlu0 %977
      %v979 = vmul.f32 %v973, %v962
      %v980 = vmul.f32 %v975, %v962
      %v981 = vmul.f32 %v978, %v962
      %v982 = vadd.f32 %v979, 1e-06
      %v983 = vadd.f32 %v980, 1e-06
      %v984 = vadd.f32 %v981, 1e-06
      %v985 = vrsqrt.pop %v982
      %v986 = vrsqrt.pop %v983
      %v987 = vrsqrt.pop %v984
      %v988 = vmul.f32 %v966, %v985
      %v989 = vmul.f32 %v967, %v986
      %v990 = vmul.f32 %v968, %v987
      %v992 = vlaneseq
      %v993 = vshrl.u32 %v992, 7
      %v994 = vsub.s32 0, %v993
      %v995 = vrot.slane %v953, %v994
      %v997 = vmul.f32 %v988, %v995
      %v998 = vmul.f32 %v989, %v995
      %v999 = vmul.f32 %v990, %v995
      %v1001 = vlaneseq
      %v1002 = vshrl.u32 %v1001, 7
      %v1003 = vsub.s32 0, %v1002
      %v1004 = vrot.slane %v954, %v1003
      %v1006 = vadd.f32 %v997, %v1004
      %v1007 = vadd.f32 %v998, %v1004
      %v1008 = vadd.f32 %v999, %v1004
      %v1009 = vld [vmem:[%s7] sm:$0xff]
      %v1010 = vld [vmem:[%s7 + $0x8] sm:$0xff]
      %v1011 = vld [vmem:[%s7 + $0x10] sm:$0xff]
      %v1012 = vld [vmem:[%s7 + $0x18] sm:$0xff]
      %v1013 = vld [vmem:[%s7 + $0x20] sm:$0xff]
      %v1014 = vld [vmem:[%s7 + $0x28] sm:$0xff]
      %v1015 = vld [vmem:[%s7 + $0x30] sm:$0xff]
      %v1016 = vld [vmem:[%s7 + $0x38] sm:$0xff]
      %v1017 = vld [vmem:[%s7 + $0x40] sm:$0xff]
      %v1018 = vld [vmem:[%s7 + $0x48] sm:$0xff]
      %v1019 = vld [vmem:[%s7 + $0x50] sm:$0xff]
      %v1020 = vld [vmem:[%s7 + $0x58] sm:$0xff]
      %v1021 = vld [vmem:[%s7 + $0x60] sm:$0xff]
      %v1022 = vld [vmem:[%s7 + $0x68] sm:$0xff]
      %v1023 = vld [vmem:[%s7 + $0x70] sm:$0xff]
      %v1024 = vld [vmem:[%s7 + $0x78] sm:$0xff]
      %v1025 = vld [vmem:[%s7 + $0x80] sm:$0xff]
      %v1026 = vld [vmem:[%s7 + $0x88] sm:$0xff]
      %v1027 = vld [vmem:[%s7 + $0x90] sm:$0xff]
      %v1028 = vld [vmem:[%s7 + $0x98] sm:$0xff]
      %v1029 = vld [vmem:[%s7 + $0xa0] sm:$0xff]
      %v1030 = vld [vmem:[%s7 + $0xa8] sm:$0xff]
      %v1031 = vld [vmem:[%s7 + $0xb0] sm:$0xff]
      %v1032 = vld [vmem:[%s7 + $0xb8] sm:$0xff]
      %v1033 = vld [vmem:[%s7 + $0xc0] sm:$0xff]
      %v1034 = vld [vmem:[%s7 + $0xc8] sm:$0xff]
      %v1035 = vld [vmem:[%s7 + $0xd0] sm:$0xff]
      %v1036 = vld [vmem:[%s7 + $0xd8] sm:$0xff]
      %v1037 = vld [vmem:[%s7 + $0xe0] sm:$0xff]
      %v1038 = vld [vmem:[%s7 + $0xe8] sm:$0xff]
      %v1039 = vld [vmem:[%s7 + $0xf0] sm:$0xff]
      %v1040 = vld [vmem:[%s7 + $0xf8] sm:$0xff]
      %v1041 = vld [vmem:[%s7 + $0x100] sm:$0xff]
      %v1042 = vld [vmem:[%s7 + $0x108] sm:$0xff]
      %v1043 = vld [vmem:[%s7 + $0x110] sm:$0xff]
      %v1044 = vld [vmem:[%s7 + $0x118] sm:$0xff]
      %v1045 = vld [vmem:[%s7 + $0x120] sm:$0xff]
      %v1046 = vld [vmem:[%s7 + $0x128] sm:$0xff]
      %v1047 = vld [vmem:[%s7 + $0x130] sm:$0xff]
      %v1048 = vld [vmem:[%s7 + $0x138] sm:$0xff]
      %v1049 = vld [vmem:[%s7 + $0x140] sm:$0xff]
      %v1050 = vld [vmem:[%s7 + $0x148] sm:$0xff]
      %v1051 = vld [vmem:[%s7 + $0x150] sm:$0xff]
      %v1052 = vld [vmem:[%s7 + $0x158] sm:$0xff]
      %v1053 = vld [vmem:[%s7 + $0x160] sm:$0xff]
      %v1054 = vld [vmem:[%s7 + $0x168] sm:$0xff]
      %v1055 = vld [vmem:[%s7 + $0x170] sm:$0xff]
      %v1056 = vld [vmem:[%s7 + $0x178] sm:$0xff]
      %v1057 = vpack.c.bf16 %v1007, %v1006
      %v1058 = vpack.c.bf16 %v1008, %v1008
      %v1059 = vpack.c.bf16 %v1012, %v1009
      %v1060 = vpack.c.bf16 %v1013, %v1010
      %v1061 = vpack.c.bf16 %v1014, %v1011
      %v1062 = vpack.c.bf16 %v1018, %v1015
      %v1063 = vpack.c.bf16 %v1019, %v1016
      %v1064 = vpack.c.bf16 %v1020, %v1017
      %v1065 = vpack.c.bf16 %v1024, %v1021
      %v1066 = vpack.c.bf16 %v1025, %v1022
      %v1067 = vpack.c.bf16 %v1026, %v1023
      %v1068 = vpack.c.bf16 %v1030, %v1027
      %v1069 = vpack.c.bf16 %v1031, %v1028
      %v1070 = vpack.c.bf16 %v1032, %v1029
      %v1071 = vpack.c.bf16 %v1036, %v1033
      %v1072 = vpack.c.bf16 %v1037, %v1034
      %v1073 = vpack.c.bf16 %v1038, %v1035
      %v1074 = vpack.c.bf16 %v1042, %v1039
      %v1075 = vpack.c.bf16 %v1043, %v1040
      %v1076 = vpack.c.bf16 %v1044, %v1041
      %v1077 = vpack.c.bf16 %v1048, %v1045
      %v1078 = vpack.c.bf16 %v1049, %v1046
      %v1079 = vpack.c.bf16 %v1050, %v1047
      %v1080 = vpack.c.bf16 %v1054, %v1051
      %v1081 = vpack.c.bf16 %v1055, %v1052
      %v1082 = vpack.c.bf16 %v1056, %v1053
      %v1083 = vld [vmem:[%s8] sm:$0x7]
      %v1085 = vlaneseq
      %v1086 = vshrl.u32 %v1085, 7
      %v1087 = vsub.s32 0, %v1086
      %v1088 = vrot.slane %v1083, %v1087
      %v1089 = vlaneseq
      %v1090 = vshrl.u32 %v1089, 7
      %v1091 = vsub.s32 1, %v1090
      %v1092 = vrot.slane %v1083, %v1091
      %v1093 = vlaneseq
      %v1094 = vshrl.u32 %v1093, 7
      %v1095 = vsub.s32 2, %v1094
      %v1096 = vrot.slane %v1083, %v1095
      %1100 = vmatprep.subr.bf16.mxu0 %v1060
      %1101 = vmatpush1.bf16.msra.mxu0 %v1059
      %1102 = vmatprep.subr.bf16.mxu0 %v1063
      %1103 = vmatpush1.bf16.msra.mxu0 %v1062
      %1104 = vmatprep.subr.bf16.mxu0 %v1066
      %1105 = vmatpush1.bf16.msra.mxu0 %v1065
      %1106 = vmatprep.subr.bf16.mxu0 %v1069
      %1107 = vmatpush1.bf16.msra.mxu0 %v1068
      %1108 = vmatprep.subr.bf16.mxu0 %v1072
      %1109 = vmatpush1.bf16.msra.mxu0 %v1071
      %1110 = vmatprep.subr.bf16.mxu0 %v1075
      %1111 = vmatpush1.bf16.msra.mxu0 %v1074
      %1112 = vmatprep.subr.bf16.mxu0 %v1078
      %1113 = vmatpush1.bf16.msra.mxu0 %v1077
      %1114 = vmatprep.subr.bf16.mxu0 %v1081
      %1115 = vmatpush1.bf16.msra.mxu0 %v1080
      %1116 = vmatprep.subr.bf16.mxu0 0
      %1117 = vmatpush1.bf16.msra.mxu0 0
      %1118 = vmatprep.subr.bf16.mxu0 0
      %1119 = vmatpush1.bf16.msra.mxu0 0
      %1120 = vmatprep.subr.bf16.mxu0 0
      %1121 = vmatpush1.bf16.msra.mxu0 0
      %1122 = vmatprep.subr.bf16.mxu0 0
      %1123 = vmatpush1.bf16.msra.mxu0 0
      %1124 = vmatprep.subr.bf16.mxu0 0
      %1125 = vmatpush1.bf16.msra.mxu0 0
      %1126 = vmatprep.subr.bf16.mxu0 0
      %1127 = vmatpush1.bf16.msra.mxu0 0
      %1128 = vmatprep.subr.bf16.mxu0 0
      %1129 = vmatpush1.bf16.msra.mxu0 0
      %1130 = vmatprep.subr.bf16.mxu0 0
      %1131 = vmatpush1.bf16.msra.mxu0 0
      %1132 = vmatprep.mubr.bf16.mxu0 0
      %1133 = vmatmul.mubr.bf16.gmra.mrb[0].mxu0 %v1057
      %v1134 = vpop.f32.mrb[0].mxu0
      %v1135 = vadd.f32 %v1088, %v1134
      %v1136 = vpop.f32.mrb[0].mxu0
      %v1137 = vadd.f32 %v1092, %v1136
      %v1138 = vpop.f32.mrb[0].mxu0
      %v1139 = vadd.f32 %v1088, %v1138
      %v1140 = vpop.f32.mrb[0].mxu0
      %v1141 = vadd.f32 %v1092, %v1140
      %1142 = vmatprep.mubr.bf16.mxu0 0
      %1143 = vmatmul.mubr.bf16.gmra.mrb[0].mxu0 %v1058
      %v1144 = vpop.f32.mrb[0].mxu0
      %v1145 = vadd.f32 %v1088, %v1144
      %v1146 = vpop.f32.mrb[0].mxu0
      %v1147 = vadd.f32 %v1092, %v1146
      %v1148 = vpop.f32.mrb[0].mxu0
      %v1149 = vpop.f32.mrb[0].mxu0
      %1150 = vdwg.mxu0
      %1151 = vmatprep.subr.bf16.mxu0 0
      %1152 = vmatpush1.bf16.msra.mxu0 %v1061
      %1153 = vmatprep.subr.bf16.mxu0 0
      %1154 = vmatpush1.bf16.msra.mxu0 %v1064
      %1155 = vmatprep.subr.bf16.mxu0 0
      %1156 = vmatpush1.bf16.msra.mxu0 %v1067
      %1157 = vmatprep.subr.bf16.mxu0 0
      %1158 = vmatpush1.bf16.msra.mxu0 %v1070
      %1159 = vmatprep.subr.bf16.mxu0 0
      %1160 = vmatpush1.bf16.msra.mxu0 %v1073
      %1161 = vmatprep.subr.bf16.mxu0 0
      %1162 = vmatpush1.bf16.msra.mxu0 %v1076
      %1163 = vmatprep.subr.bf16.mxu0 0
      %1164 = vmatpush1.bf16.msra.mxu0 %v1079
      %1165 = vmatprep.subr.bf16.mxu0 0
      %1166 = vmatpush1.bf16.msra.mxu0 %v1082
      %1167 = vmatprep.subr.bf16.mxu0 0
      %1168 = vmatpush1.bf16.msra.mxu0 0
      %1169 = vmatprep.subr.bf16.mxu0 0
      %1170 = vmatpush1.bf16.msra.mxu0 0
      %1171 = vmatprep.subr.bf16.mxu0 0
      %1172 = vmatpush1.bf16.msra.mxu0 0
      %1173 = vmatprep.subr.bf16.mxu0 0
      %1174 = vmatpush1.bf16.msra.mxu0 0
      %1175 = vmatprep.subr.bf16.mxu0 0
      %1176 = vmatpush1.bf16.msra.mxu0 0
      %1177 = vmatprep.subr.bf16.mxu0 0
      %1178 = vmatpush1.bf16.msra.mxu0 0
      %1179 = vmatprep.subr.bf16.mxu0 0
      %1180 = vmatpush1.bf16.msra.mxu0 0
      %1181 = vmatprep.subr.bf16.mxu0 0
      %1182 = vmatpush1.bf16.msra.mxu0 0
      %1183 = vmatprep.mubr.bf16.mxu0 0
      %1184 = vmatmul.mubr.bf16.gmra.mrb[0].mxu0 %v1057
      %v1185 = vpop.f32.mrb[0].mxu0
      %v1186 = vadd.f32 %v1096, %v1185
      %v1187 = vpop.f32.mrb[0].mxu0
      %v1188 = vpop.f32.mrb[0].mxu0
      %v1189 = vadd.f32 %v1096, %v1188
      %v1190 = vpop.f32.mrb[0].mxu0
      %1191 = vmatprep.mubr.bf16.mxu0 0
      %1192 = vmatmul.mubr.bf16.gmra.mrb[0].mxu0 %v1058
      %v1193 = vpop.f32.mrb[0].mxu0
      %v1194 = vadd.f32 %v1096, %v1193
      %v1195 = vpop.f32.mrb[0].mxu0
      %v1196 = vpop.f32.mrb[0].mxu0
      %v1197 = vpop.f32.mrb[0].mxu0
      %1198 = vdwg.mxu0
      %v1199 = vpack.c.bf16 %v1139, %v1135
      %v1200 = vpack.c.bf16 %v1145, %v1145
      %v1201 = vpack.c.bf16 %v1141, %v1137
      %v1202 = vpack.c.bf16 %v1147, %v1147
      %vm1203 = vcmask 261120
      %v1205 = vsel %vm1203, %v1199, 0
      %v1208 = vsel %vm1203, %v1200, 0
      %v1211 = vsel %vm1203, %v1201, 0
      %v1214 = vsel %vm1203, %v1202, 0
      %1216 = vmatprep.subr.bf16.mxu0 0
      %1217 = vmatpush1.bf16.xpose.msra.mxu0 %v1211
      %1218 = vmatprep.subr.bf16.mxu0 0
      %1219 = vmatpush1.bf16.xpose.msra.mxu0 %v1214
      %1220 = vmatprep.subr.bf16.mxu0 0
      %1221 = vmatpush1.bf16.xpose.msra.mxu0 0
      %1222 = vmatprep.subr.bf16.mxu0 0
      %1223 = vmatpush1.bf16.xpose.msra.mxu0 0
      %1224 = vmatprep.subr.bf16.mxu0 0
      %1225 = vmatpush1.bf16.xpose.msra.mxu0 0
      %1226 = vmatprep.subr.bf16.mxu0 0
      %1227 = vmatpush1.bf16.xpose.msra.mxu0 0
      %1228 = vmatprep.subr.bf16.mxu0 0
      %1229 = vmatpush1.bf16.xpose.msra.mxu0 0
      %1230 = vmatprep.subr.bf16.mxu0 0
      %1231 = vmatpush1.bf16.xpose.msra.mxu0 0
      %1232 = vmatprep.subr.bf16.mxu0 0
      %1233 = vmatpush1.bf16.xpose.msra.mxu0 0
      %1234 = vmatprep.subr.bf16.mxu0 0
      %1235 = vmatpush1.bf16.xpose.msra.mxu0 0
      %1236 = vmatprep.subr.bf16.mxu0 0
      %1237 = vmatpush1.bf16.xpose.msra.mxu0 0
      %1238 = vmatprep.subr.bf16.mxu0 0
      %1239 = vmatpush1.bf16.xpose.msra.mxu0 0
      %1240 = vmatprep.subr.bf16.mxu0 0
      %1241 = vmatpush1.bf16.xpose.msra.mxu0 0
      %1242 = vmatprep.subr.bf16.mxu0 0
      %1243 = vmatpush1.bf16.xpose.msra.mxu0 0
      %1244 = vmatprep.subr.bf16.mxu0 0
      %1245 = vmatpush1.bf16.xpose.msra.mxu0 0
      %1246 = vmatprep.subr.bf16.mxu0 0
      %1247 = vmatpush1.bf16.xpose.msra.mxu0 0
      %1248 = vmatprep.mubr.bf16.mxu0 0
      %1249 = vmatmul.mubr.bf16.gmra.mrb[0].mxu0 %v1205
      %v1250 = vpop.f32.mrb[0].mxu0
      %v1251 = vadd.f32 0.0, %v1250
      %v1252 = vpop.f32.mrb[0].mxu0
      %v1253 = vpop.f32.mrb[0].mxu0
      %v1254 = vadd.f32 0.0, %v1253
      %v1255 = vpop.f32.mrb[0].mxu0
      %1256 = vmatprep.mubr.bf16.mxu0 0
      %1257 = vmatmul.mubr.bf16.gmra.mrb[0].mxu0 %v1208
      %v1258 = vpop.f32.mrb[0].mxu0
      %v1259 = vadd.f32 0.0, %v1258
      %v1260 = vpop.f32.mrb[0].mxu0
      %v1261 = vpop.f32.mrb[0].mxu0
      %v1262 = vpop.f32.mrb[0].mxu0
      %1263 = vdwg.mxu0
      %v1264 = vmul.f32 %v1251, 0.17677669
      %v1265 = vmul.f32 %v1254, 0.17677669
      %v1266 = vmul.f32 %v1259, 0.17677669
      %vm1267 = vcmask 138240
      %v1268 = vsel %vm1267, %v1264, -inf
      %1269 = vmax.xlane.f32.xlu0 %v1268
      %v1270 = vpop.xlane.xlu0 %1269
      %v1271 = vsel %vm1267, %v1265, -inf
      %1272 = vmax.xlane.f32.xlu0 %v1271
      %v1273 = vpop.xlane.xlu0 %1272
      %vm1274 = vcmask 131072
      %v1275 = vsel %vm1274, %v1266, -inf
      %1276 = vmax.xlane.f32.xlu0 %v1275
      %v1277 = vpop.xlane.xlu0 %1276
      %v1278 = vsub.f32 %v1264, %v1270
      %v1279 = vsub.f32 %v1265, %v1273
      %v1280 = vsub.f32 %v1266, %v1277
      %v1281 = vmul.f32 %v1278, 1.442695
      %v1282 = vpow.pop %v1281
      %v1283 = vmul.f32 %v1279, 1.442695
      %v1284 = vpow.pop %v1283
      %v1285 = vmul.f32 %v1280, 1.442695
      %v1286 = vpow.pop %v1285
      %v1287 = vsel %vm1267, %v1282, 0.0
      %1288 = vadd.xlane.f32.xlu0 %v1287
      %v1289 = vpop.xlane.xlu0 %1288
      %v1290 = vsel %vm1267, %v1284, 0.0
      %1291 = vadd.xlane.f32.xlu0 %v1290
      %v1292 = vpop.xlane.xlu0 %1291
      %v1293 = vsel %vm1274, %v1286, 0.0
      %1294 = vadd.xlane.f32.xlu0 %v1293
      %v1295 = vpop.xlane.xlu0 %1294
      %v1296 = vrcp.pop %v1289
      %v1297 = vrcp.pop %v1292
      %v1298 = vrcp.pop %v1295
      %v1299 = vmul.f32 %v1282, %v1296
      %v1300 = vmul.f32 %v1284, %v1297
      %v1301 = vmul.f32 %v1286, %v1298
      %v1302 = vpack.c.bf16 %v1300, %v1299
      %v1303 = vpack.c.bf16 %v1301, %v1301
      %v1304 = vpack.c.bf16 %v1189, %v1186
      %v1305 = vpack.c.bf16 %v1194, %v1194
      %v1307 = vsel %vm1267, %v1302, 0
      %v1310 = vsel %vm1267, %v1303, 0
      %v1312 = vsel 0, 4294967295, 65535
      %v1313 = vsel %vm939, %v1312, 0
      %v1315 = vand.u32 %v1305, %v1313
      %1317 = vmatprep.subr.bf16.mxu0 0
      %1318 = vmatpush1.bf16.msra.mxu0 %v1304
      %1319 = vmatprep.subr.bf16.mxu0 0
      %1320 = vmatpush1.bf16.msra.mxu0 %v1315
      %1321 = vmatprep.subr.bf16.mxu0 0
      %1322 = vmatpush1.bf16.msra.mxu0 0
      %1323 = vmatprep.subr.bf16.mxu0 0
      %1324 = vmatpush1.bf16.msra.mxu0 0
      %1325 = vmatprep.subr.bf16.mxu0 0
      %1326 = vmatpush1.bf16.msra.mxu0 0
      %1327 = vmatprep.subr.bf16.mxu0 0
      %1328 = vmatpush1.bf16.msra.mxu0 0
      %1329 = vmatprep.subr.bf16.mxu0 0
      %1330 = vmatpush1.bf16.msra.mxu0 0
      %1331 = vmatprep.subr.bf16.mxu0 0
      %1332 = vmatpush1.bf16.msra.mxu0 0
      %1333 = vmatprep.subr.bf16.mxu0 0
      %1334 = vmatpush1.bf16.msra.mxu0 0
      %1335 = vmatprep.subr.bf16.mxu0 0
      %1336 = vmatpush1.bf16.msra.mxu0 0
      %1337 = vmatprep.subr.bf16.mxu0 0
      %1338 = vmatpush1.bf16.msra.mxu0 0
      %1339 = vmatprep.subr.bf16.mxu0 0
      %1340 = vmatpush1.bf16.msra.mxu0 0
      %1341 = vmatprep.subr.bf16.mxu0 0
      %1342 = vmatpush1.bf16.msra.mxu0 0
      %1343 = vmatprep.subr.bf16.mxu0 0
      %1344 = vmatpush1.bf16.msra.mxu0 0
      %1345 = vmatprep.subr.bf16.mxu0 0
      %1346 = vmatpush1.bf16.msra.mxu0 0
      %1347 = vmatprep.subr.bf16.mxu0 0
      %1348 = vmatpush1.bf16.msra.mxu0 0
      %1349 = vmatprep.mubr.bf16.mxu0 0
      %1350 = vmatmul.mubr.bf16.gmra.mrb[0].mxu0 %v1307
      %v1351 = vpop.f32.mrb[0].mxu0
      %v1352 = vadd.f32 0.0, %v1351
      %v1353 = vpop.f32.mrb[0].mxu0
      %v1354 = vpop.f32.mrb[0].mxu0
      %v1355 = vadd.f32 0.0, %v1354
      %v1356 = vpop.f32.mrb[0].mxu0
      %1357 = vmatprep.mubr.bf16.mxu0 0
      %1358 = vmatmul.mubr.bf16.gmra.mrb[0].mxu0 %v1310
      %v1359 = vpop.f32.mrb[0].mxu0
      %v1360 = vadd.f32 0.0, %v1359
      %v1361 = vpop.f32.mrb[0].mxu0
      %v1362 = vpop.f32.mrb[0].mxu0
      %v1363 = vpop.f32.mrb[0].mxu0
      %1364 = vdwg.mxu0
      %1367 = vrot.lane.b32.xlu0 %v1199, 96
      %v1368 = vpop.permute.xlu0 %1367
      %1369 = vrot.lane.b32.xlu0 %v1200, 96
      %v1370 = vpop.permute.xlu0 %1369
      %1373 = vrot.lane.b32.xlu0 %v1201, 96
      %v1374 = vpop.permute.xlu0 %1373
      %1375 = vrot.lane.b32.xlu0 %v1202, 96
      %v1376 = vpop.permute.xlu0 %1375
      %v1378 = vsel %vm1203, %v1368, 0
      %v1381 = vsel %vm1203, %v1370, 0
      %v1384 = vsel %vm1203, %v1374, 0
      %v1387 = vsel %vm1203, %v1376, 0
      %1389 = vmatprep.subr.bf16.mxu0 0
      %1390 = vmatpush1.bf16.xpose.msra.mxu0 %v1384
      %1391 = vmatprep.subr.bf16.mxu0 0
      %1392 = vmatpush1.bf16.xpose.msra.mxu0 %v1387
      %1393 = vmatprep.subr.bf16.mxu0 0
      %1394 = vmatpush1.bf16.xpose.msra.mxu0 0
      %1395 = vmatprep.subr.bf16.mxu0 0
      %1396 = vmatpush1.bf16.xpose.msra.mxu0 0
      %1397 = vmatprep.subr.bf16.mxu0 0
      %1398 = vmatpush1.bf16.xpose.msra.mxu0 0
      %1399 = vmatprep.subr.bf16.mxu0 0
      %1400 = vmatpush1.bf16.xpose.msra.mxu0 0
      %1401 = vmatprep.subr.bf16.mxu0 0
      %1402 = vmatpush1.bf16.xpose.msra.mxu0 0
      %1403 = vmatprep.subr.bf16.mxu0 0
      %1404 = vmatpush1.bf16.xpose.msra.mxu0 0
      %1405 = vmatprep.subr.bf16.mxu0 0
      %1406 = vmatpush1.bf16.xpose.msra.mxu0 0
      %1407 = vmatprep.subr.bf16.mxu0 0
      %1408 = vmatpush1.bf16.xpose.msra.mxu0 0
      %1409 = vmatprep.subr.bf16.mxu0 0
      %1410 = vmatpush1.bf16.xpose.msra.mxu0 0
      %1411 = vmatprep.subr.bf16.mxu0 0
      %1412 = vmatpush1.bf16.xpose.msra.mxu0 0
      %1413 = vmatprep.subr.bf16.mxu0 0
      %1414 = vmatpush1.bf16.xpose.msra.mxu0 0
      %1415 = vmatprep.subr.bf16.mxu0 0
      %1416 = vmatpush1.bf16.xpose.msra.mxu0 0
      %1417 = vmatprep.subr.bf16.mxu0 0
      %1418 = vmatpush1.bf16.xpose.msra.mxu0 0
      %1419 = vmatprep.subr.bf16.mxu0 0
      %1420 = vmatpush1.bf16.xpose.msra.mxu0 0
      %1421 = vmatprep.mubr.bf16.mxu0 0
      %1422 = vmatmul.mubr.bf16.gmra.mrb[0].mxu0 %v1378
      %v1423 = vpop.f32.mrb[0].mxu0
      %v1424 = vadd.f32 0.0, %v1423
      %v1425 = vpop.f32.mrb[0].mxu0
      %v1426 = vpop.f32.mrb[0].mxu0
      %v1427 = vadd.f32 0.0, %v1426
      %v1428 = vpop.f32.mrb[0].mxu0
      %1429 = vmatprep.mubr.bf16.mxu0 0
      %1430 = vmatmul.mubr.bf16.gmra.mrb[0].mxu0 %v1381
      %v1431 = vpop.f32.mrb[0].mxu0
      %v1432 = vadd.f32 0.0, %v1431
      %v1433 = vpop.f32.mrb[0].mxu0
      %v1434 = vpop.f32.mrb[0].mxu0
      %v1435 = vpop.f32.mrb[0].mxu0
      %1436 = vdwg.mxu0
      %v1437 = vmul.f32 %v1424, 0.17677669
      %v1438 = vmul.f32 %v1427, 0.17677669
      %v1439 = vmul.f32 %v1432, 0.17677669
      %v1440 = vsel %vm1267, %v1437, -inf
      %1441 = vmax.xlane.f32.xlu0 %v1440
      %v1442 = vpop.xlane.xlu0 %1441
      %v1443 = vsel %vm1267, %v1438, -inf
      %1444 = vmax.xlane.f32.xlu0 %v1443
      %v1445 = vpop.xlane.xlu0 %1444
      %v1446 = vsel %vm1274, %v1439, -inf
      %1447 = vmax.xlane.f32.xlu0 %v1446
      %v1448 = vpop.xlane.xlu0 %1447
      %v1449 = vsub.f32 %v1437, %v1442
      %v1450 = vsub.f32 %v1438, %v1445
      %v1451 = vsub.f32 %v1439, %v1448
      %v1452 = vmul.f32 %v1449, 1.442695
      %v1453 = vpow.pop %v1452
      %v1454 = vmul.f32 %v1450, 1.442695
      %v1455 = vpow.pop %v1454
      %v1456 = vmul.f32 %v1451, 1.442695
      %v1457 = vpow.pop %v1456
      %v1458 = vsel %vm1267, %v1453, 0.0
      %1459 = vadd.xlane.f32.xlu0 %v1458
      %v1460 = vpop.xlane.xlu0 %1459
      %v1461 = vsel %vm1267, %v1455, 0.0
      %1462 = vadd.xlane.f32.xlu0 %v1461
      %v1463 = vpop.xlane.xlu0 %1462
      %v1464 = vsel %vm1274, %v1457, 0.0
      %1465 = vadd.xlane.f32.xlu0 %v1464
      %v1466 = vpop.xlane.xlu0 %1465
      %v1467 = vrcp.pop %v1460
      %v1468 = vrcp.pop %v1463
      %v1469 = vrcp.pop %v1466
      %v1470 = vmul.f32 %v1453, %v1467
      %v1471 = vmul.f32 %v1455, %v1468
      %v1472 = vmul.f32 %v1457, %v1469
      %v1473 = vpack.c.bf16 %v1471, %v1470
      %v1474 = vpack.c.bf16 %v1472, %v1472
      %1477 = vrot.lane.b32.xlu0 %v1304, 96
      %v1478 = vpop.permute.xlu0 %1477
      %1479 = vrot.lane.b32.xlu0 %v1305, 96
      %v1480 = vpop.permute.xlu0 %1479
      %v1483 = vsel %vm1267, %v1473, 0
      %v1486 = vsel %vm1267, %v1474, 0
      %v1489 = vand.u32 %v1480, %v1313
      %1491 = vmatprep.subr.bf16.mxu0 0
      %1492 = vmatpush1.bf16.msra.mxu0 %v1478
      %1493 = vmatprep.subr.bf16.mxu0 0
      %1494 = vmatpush1.bf16.msra.mxu0 %v1489
      %1495 = vmatprep.subr.bf16.mxu0 0
      %1496 = vmatpush1.bf16.msra.mxu0 0
      %1497 = vmatprep.subr.bf16.mxu0 0
      %1498 = vmatpush1.bf16.msra.mxu0 0
      %1499 = vmatprep.subr.bf16.mxu0 0
      %1500 = vmatpush1.bf16.msra.mxu0 0
      %1501 = vmatprep.subr.bf16.mxu0 0
      %1502 = vmatpush1.bf16.msra.mxu0 0
      %1503 = vmatprep.subr.bf16.mxu0 0
      %1504 = vmatpush1.bf16.msra.mxu0 0
      %1505 = vmatprep.subr.bf16.mxu0 0
      %1506 = vmatpush1.bf16.msra.mxu0 0
      %1507 = vmatprep.subr.bf16.mxu0 0
      %1508 = vmatpush1.bf16.msra.mxu0 0
      %1509 = vmatprep.subr.bf16.mxu0 0
      %1510 = vmatpush1.bf16.msra.mxu0 0
      %1511 = vmatprep.subr.bf16.mxu0 0
      %1512 = vmatpush1.bf16.msra.mxu0 0
      %1513 = vmatprep.subr.bf16.mxu0 0
      %1514 = vmatpush1.bf16.msra.mxu0 0
      %1515 = vmatprep.subr.bf16.mxu0 0
      %1516 = vmatpush1.bf16.msra.mxu0 0
      %1517 = vmatprep.subr.bf16.mxu0 0
      %1518 = vmatpush1.bf16.msra.mxu0 0
      %1519 = vmatprep.subr.bf16.mxu0 0
      %1520 = vmatpush1.bf16.msra.mxu0 0
      %1521 = vmatprep.subr.bf16.mxu0 0
      %1522 = vmatpush1.bf16.msra.mxu0 0
      %1523 = vmatprep.mubr.bf16.mxu0 0
      %1524 = vmatmul.mubr.bf16.gmra.mrb[0].mxu0 %v1483
      %v1525 = vpop.f32.mrb[0].mxu0
      %v1526 = vadd.f32 0.0, %v1525
      %v1527 = vpop.f32.mrb[0].mxu0
      %v1528 = vpop.f32.mrb[0].mxu0
      %v1529 = vadd.f32 0.0, %v1528
      %v1530 = vpop.f32.mrb[0].mxu0
      %1531 = vmatprep.mubr.bf16.mxu0 0
      %1532 = vmatmul.mubr.bf16.gmra.mrb[0].mxu0 %v1486
      %v1533 = vpop.f32.mrb[0].mxu0
      %v1534 = vadd.f32 0.0, %v1533
      %v1535 = vpop.f32.mrb[0].mxu0
      %v1536 = vpop.f32.mrb[0].mxu0
      %v1537 = vpop.f32.mrb[0].mxu0
      %1538 = vdwg.mxu0
      %1539 = vrot.lane.b32.xlu0 %v1199, 64
      %v1540 = vpop.permute.xlu0 %1539
      %1541 = vrot.lane.b32.xlu0 %v1200, 64
      %v1542 = vpop.permute.xlu0 %1541
      %1543 = vrot.lane.b32.xlu0 %v1201, 64
      %v1544 = vpop.permute.xlu0 %1543
      %1545 = vrot.lane.b32.xlu0 %v1202, 64
      %v1546 = vpop.permute.xlu0 %1545
      %v1548 = vsel %vm1203, %v1540, 0
      %v1551 = vsel %vm1203, %v1542, 0
      %v1554 = vsel %vm1203, %v1544, 0
      %v1557 = vsel %vm1203, %v1546, 0
      %1559 = vmatprep.subr.bf16.mxu0 0
      %1560 = vmatpush1.bf16.xpose.msra.mxu0 %v1554
      %1561 = vmatprep.subr.bf16.mxu0 0
      %1562 = vmatpush1.bf16.xpose.msra.mxu0 %v1557
      %1563 = vmatprep.subr.bf16.mxu0 0
      %1564 = vmatpush1.bf16.xpose.msra.mxu0 0
      %1565 = vmatprep.subr.bf16.mxu0 0
      %1566 = vmatpush1.bf16.xpose.msra.mxu0 0
      %1567 = vmatprep.subr.bf16.mxu0 0
      %1568 = vmatpush1.bf16.xpose.msra.mxu0 0
      %1569 = vmatprep.subr.bf16.mxu0 0
      %1570 = vmatpush1.bf16.xpose.msra.mxu0 0
      %1571 = vmatprep.subr.bf16.mxu0 0
      %1572 = vmatpush1.bf16.xpose.msra.mxu0 0
      %1573 = vmatprep.subr.bf16.mxu0 0
      %1574 = vmatpush1.bf16.xpose.msra.mxu0 0
      %1575 = vmatprep.subr.bf16.mxu0 0
      %1576 = vmatpush1.bf16.xpose.msra.mxu0 0
      %1577 = vmatprep.subr.bf16.mxu0 0
      %1578 = vmatpush1.bf16.xpose.msra.mxu0 0
      %1579 = vmatprep.subr.bf16.mxu0 0
      %1580 = vmatpush1.bf16.xpose.msra.mxu0 0
      %1581 = vmatprep.subr.bf16.mxu0 0
      %1582 = vmatpush1.bf16.xpose.msra.mxu0 0
      %1583 = vmatprep.subr.bf16.mxu0 0
      %1584 = vmatpush1.bf16.xpose.msra.mxu0 0
      %1585 = vmatprep.subr.bf16.mxu0 0
      %1586 = vmatpush1.bf16.xpose.msra.mxu0 0
      %1587 = vmatprep.subr.bf16.mxu0 0
      %1588 = vmatpush1.bf16.xpose.msra.mxu0 0
      %1589 = vmatprep.subr.bf16.mxu0 0
      %1590 = vmatpush1.bf16.xpose.msra.mxu0 0
      %1591 = vmatprep.mubr.bf16.mxu0 0
      %1592 = vmatmul.mubr.bf16.gmra.mrb[0].mxu0 %v1548
      %v1593 = vpop.f32.mrb[0].mxu0
      %v1594 = vadd.f32 0.0, %v1593
      %v1595 = vpop.f32.mrb[0].mxu0
      %v1596 = vpop.f32.mrb[0].mxu0
      %v1597 = vadd.f32 0.0, %v1596
      %v1598 = vpop.f32.mrb[0].mxu0
      %1599 = vmatprep.mubr.bf16.mxu0 0
      %1600 = vmatmul.mubr.bf16.gmra.mrb[0].mxu0 %v1551
      %v1601 = vpop.f32.mrb[0].mxu0
      %v1602 = vadd.f32 0.0, %v1601
      %v1603 = vpop.f32.mrb[0].mxu0
      %v1604 = vpop.f32.mrb[0].mxu0
      %v1605 = vpop.f32.mrb[0].mxu0
      %1606 = vdwg.mxu0
      %v1607 = vmul.f32 %v1594, 0.17677669
      %v1608 = vmul.f32 %v1597, 0.17677669
      %v1609 = vmul.f32 %v1602, 0.17677669
      %v1610 = vsel %vm1267, %v1607, -inf
      %1611 = vmax.xlane.f32.xlu0 %v1610
      %v1612 = vpop.xlane.xlu0 %1611
      %v1613 = vsel %vm1267, %v1608, -inf
      %1614 = vmax.xlane.f32.xlu0 %v1613
      %v1615 = vpop.xlane.xlu0 %1614
      %v1616 = vsel %vm1274, %v1609, -inf
      %1617 = vmax.xlane.f32.xlu0 %v1616
      %v1618 = vpop.xlane.xlu0 %1617
      %v1619 = vsub.f32 %v1607, %v1612
      %v1620 = vsub.f32 %v1608, %v1615
      %v1621 = vsub.f32 %v1609, %v1618
      %v1622 = vmul.f32 %v1619, 1.442695
      %v1623 = vpow.pop %v1622
      %v1624 = vmul.f32 %v1620, 1.442695
      %v1625 = vpow.pop %v1624
      %v1626 = vmul.f32 %v1621, 1.442695
      %v1627 = vpow.pop %v1626
      %v1628 = vsel %vm1267, %v1623, 0.0
      %1629 = vadd.xlane.f32.xlu0 %v1628
      %v1630 = vpop.xlane.xlu0 %1629
      %v1631 = vsel %vm1267, %v1625, 0.0
      %1632 = vadd.xlane.f32.xlu0 %v1631
      %v1633 = vpop.xlane.xlu0 %1632
      %v1634 = vsel %vm1274, %v1627, 0.0
      %1635 = vadd.xlane.f32.xlu0 %v1634
      %v1636 = vpop.xlane.xlu0 %1635
      %v1637 = vrcp.pop %v1630
      %v1638 = vrcp.pop %v1633
      %v1639 = vrcp.pop %v1636
      %v1640 = vmul.f32 %v1623, %v1637
      %v1641 = vmul.f32 %v1625, %v1638
      %v1642 = vmul.f32 %v1627, %v1639
      %v1643 = vpack.c.bf16 %v1641, %v1640
      %v1644 = vpack.c.bf16 %v1642, %v1642
      %1645 = vrot.lane.b32.xlu0 %v1304, 64
      %v1646 = vpop.permute.xlu0 %1645
      %1647 = vrot.lane.b32.xlu0 %v1305, 64
      %v1648 = vpop.permute.xlu0 %1647
      %v1651 = vsel %vm1267, %v1643, 0
      %v1654 = vsel %vm1267, %v1644, 0
      %v1657 = vand.u32 %v1648, %v1313
      %1659 = vmatprep.subr.bf16.mxu0 0
      %1660 = vmatpush1.bf16.msra.mxu0 %v1646
      %1661 = vmatprep.subr.bf16.mxu0 0
      %1662 = vmatpush1.bf16.msra.mxu0 %v1657
      %1663 = vmatprep.subr.bf16.mxu0 0
      %1664 = vmatpush1.bf16.msra.mxu0 0
      %1665 = vmatprep.subr.bf16.mxu0 0
      %1666 = vmatpush1.bf16.msra.mxu0 0
      %1667 = vmatprep.subr.bf16.mxu0 0
      %1668 = vmatpush1.bf16.msra.mxu0 0
      %1669 = vmatprep.subr.bf16.mxu0 0
      %1670 = vmatpush1.bf16.msra.mxu0 0
      %1671 = vmatprep.subr.bf16.mxu0 0
      %1672 = vmatpush1.bf16.msra.mxu0 0
      %1673 = vmatprep.subr.bf16.mxu0 0
      %1674 = vmatpush1.bf16.msra.mxu0 0
      %1675 = vmatprep.subr.bf16.mxu0 0
      %1676 = vmatpush1.bf16.msra.mxu0 0
      %1677 = vmatprep.subr.bf16.mxu0 0
      %1678 = vmatpush1.bf16.msra.mxu0 0
      %1679 = vmatprep.subr.bf16.mxu0 0
      %1680 = vmatpush1.bf16.msra.mxu0 0
      %1681 = vmatprep.subr.bf16.mxu0 0
      %1682 = vmatpush1.bf16.msra.mxu0 0
      %1683 = vmatprep.subr.bf16.mxu0 0
      %1684 = vmatpush1.bf16.msra.mxu0 0
      %1685 = vmatprep.subr.bf16.mxu0 0
      %1686 = vmatpush1.bf16.msra.mxu0 0
      %1687 = vmatprep.subr.bf16.mxu0 0
      %1688 = vmatpush1.bf16.msra.mxu0 0
      %1689 = vmatprep.subr.bf16.mxu0 0
      %1690 = vmatpush1.bf16.msra.mxu0 0
      %1691 = vmatprep.mubr.bf16.mxu0 0
      %1692 = vmatmul.mubr.bf16.gmra.mrb[0].mxu0 %v1651
      %v1693 = vpop.f32.mrb[0].mxu0
      %v1694 = vadd.f32 0.0, %v1693
      %v1695 = vpop.f32.mrb[0].mxu0
      %v1696 = vpop.f32.mrb[0].mxu0
      %v1697 = vadd.f32 0.0, %v1696
      %v1698 = vpop.f32.mrb[0].mxu0
      %1699 = vmatprep.mubr.bf16.mxu0 0
      %1700 = vmatmul.mubr.bf16.gmra.mrb[0].mxu0 %v1654
      %v1701 = vpop.f32.mrb[0].mxu0
      %v1702 = vadd.f32 0.0, %v1701
      %v1703 = vpop.f32.mrb[0].mxu0
      %v1704 = vpop.f32.mrb[0].mxu0
      %v1705 = vpop.f32.mrb[0].mxu0
      %1706 = vdwg.mxu0
      %1707 = vrot.lane.b32.xlu0 %v1199, 32
      %v1708 = vpop.permute.xlu0 %1707
      %1709 = vrot.lane.b32.xlu0 %v1200, 32
      %v1710 = vpop.permute.xlu0 %1709
      %1711 = vrot.lane.b32.xlu0 %v1201, 32
      %v1712 = vpop.permute.xlu0 %1711
      %1713 = vrot.lane.b32.xlu0 %v1202, 32
      %v1714 = vpop.permute.xlu0 %1713
      %v1716 = vsel %vm1203, %v1708, 0
      %v1719 = vsel %vm1203, %v1710, 0
      %v1722 = vsel %vm1203, %v1712, 0
      %v1725 = vsel %vm1203, %v1714, 0
      %1727 = vmatprep.subr.bf16.mxu0 0
      %1728 = vmatpush1.bf16.xpose.msra.mxu0 %v1722
      %1729 = vmatprep.subr.bf16.mxu0 0
      %1730 = vmatpush1.bf16.xpose.msra.mxu0 %v1725
      %1731 = vmatprep.subr.bf16.mxu0 0
      %1732 = vmatpush1.bf16.xpose.msra.mxu0 0
      %1733 = vmatprep.subr.bf16.mxu0 0
      %1734 = vmatpush1.bf16.xpose.msra.mxu0 0
      %1735 = vmatprep.subr.bf16.mxu0 0
      %1736 = vmatpush1.bf16.xpose.msra.mxu0 0
      %1737 = vmatprep.subr.bf16.mxu0 0
      %1738 = vmatpush1.bf16.xpose.msra.mxu0 0
      %1739 = vmatprep.subr.bf16.mxu0 0
      %1740 = vmatpush1.bf16.xpose.msra.mxu0 0
      %1741 = vmatprep.subr.bf16.mxu0 0
      %1742 = vmatpush1.bf16.xpose.msra.mxu0 0
      %1743 = vmatprep.subr.bf16.mxu0 0
      %1744 = vmatpush1.bf16.xpose.msra.mxu0 0
      %1745 = vmatprep.subr.bf16.mxu0 0
      %1746 = vmatpush1.bf16.xpose.msra.mxu0 0
      %1747 = vmatprep.subr.bf16.mxu0 0
      %1748 = vmatpush1.bf16.xpose.msra.mxu0 0
      %1749 = vmatprep.subr.bf16.mxu0 0
      %1750 = vmatpush1.bf16.xpose.msra.mxu0 0
      %1751 = vmatprep.subr.bf16.mxu0 0
      %1752 = vmatpush1.bf16.xpose.msra.mxu0 0
      %1753 = vmatprep.subr.bf16.mxu0 0
      %1754 = vmatpush1.bf16.xpose.msra.mxu0 0
      %1755 = vmatprep.subr.bf16.mxu0 0
      %1756 = vmatpush1.bf16.xpose.msra.mxu0 0
      %1757 = vmatprep.subr.bf16.mxu0 0
      %1758 = vmatpush1.bf16.xpose.msra.mxu0 0
      %1759 = vmatprep.mubr.bf16.mxu0 0
      %1760 = vmatmul.mubr.bf16.gmra.mrb[0].mxu0 %v1716
      %v1761 = vpop.f32.mrb[0].mxu0
      %v1762 = vadd.f32 0.0, %v1761
      %v1763 = vpop.f32.mrb[0].mxu0
      %v1764 = vpop.f32.mrb[0].mxu0
      %v1765 = vadd.f32 0.0, %v1764
      %v1766 = vpop.f32.mrb[0].mxu0
      %1767 = vmatprep.mubr.bf16.mxu0 0
      %1768 = vmatmul.mubr.bf16.gmra.mrb[0].mxu0 %v1719
      %v1769 = vpop.f32.mrb[0].mxu0
      %v1770 = vadd.f32 0.0, %v1769
      %v1771 = vpop.f32.mrb[0].mxu0
      %v1772 = vpop.f32.mrb[0].mxu0
      %v1773 = vpop.f32.mrb[0].mxu0
      %1774 = vdwg.mxu0
      %v1775 = vmul.f32 %v1762, 0.17677669
      %v1776 = vmul.f32 %v1765, 0.17677669
      %v1777 = vmul.f32 %v1770, 0.17677669
      %v1778 = vsel %vm1267, %v1775, -inf
      %1779 = vmax.xlane.f32.xlu0 %v1778
      %v1780 = vpop.xlane.xlu0 %1779
      %v1781 = vsel %vm1267, %v1776, -inf
      %1782 = vmax.xlane.f32.xlu0 %v1781
      %v1783 = vpop.xlane.xlu0 %1782
      %v1784 = vsel %vm1274, %v1777, -inf
      %1785 = vmax.xlane.f32.xlu0 %v1784
      %v1786 = vpop.xlane.xlu0 %1785
      %v1787 = vsub.f32 %v1775, %v1780
      %v1788 = vsub.f32 %v1776, %v1783
      %v1789 = vsub.f32 %v1777, %v1786
      %v1790 = vmul.f32 %v1787, 1.442695
      %v1791 = vpow.pop %v1790
      %v1792 = vmul.f32 %v1788, 1.442695
      %v1793 = vpow.pop %v1792
      %v1794 = vmul.f32 %v1789, 1.442695
      %v1795 = vpow.pop %v1794
      %v1796 = vsel %vm1267, %v1791, 0.0
      %1797 = vadd.xlane.f32.xlu0 %v1796
      %v1798 = vpop.xlane.xlu0 %1797
      %v1799 = vsel %vm1267, %v1793, 0.0
      %1800 = vadd.xlane.f32.xlu0 %v1799
      %v1801 = vpop.xlane.xlu0 %1800
      %v1802 = vsel %vm1274, %v1795, 0.0
      %1803 = vadd.xlane.f32.xlu0 %v1802
      %v1804 = vpop.xlane.xlu0 %1803
      %v1805 = vrcp.pop %v1798
      %v1806 = vrcp.pop %v1801
      %v1807 = vrcp.pop %v1804
      %v1808 = vmul.f32 %v1791, %v1805
      %v1809 = vmul.f32 %v1793, %v1806
      %v1810 = vmul.f32 %v1795, %v1807
      %v1811 = vpack.c.bf16 %v1809, %v1808
      %v1812 = vpack.c.bf16 %v1810, %v1810
      %1813 = vrot.lane.b32.xlu0 %v1304, 32
      %v1814 = vpop.permute.xlu0 %1813
      %1815 = vrot.lane.b32.xlu0 %v1305, 32
      %v1816 = vpop.permute.xlu0 %1815
      %v1819 = vsel %vm1267, %v1811, 0
      %v1822 = vsel %vm1267, %v1812, 0
      %v1825 = vand.u32 %v1816, %v1313
      %1827 = vmatprep.subr.bf16.mxu0 0
      %1828 = vmatpush1.bf16.msra.mxu0 %v1814
      %1829 = vmatprep.subr.bf16.mxu0 0
      %1830 = vmatpush1.bf16.msra.mxu0 %v1825
      %1831 = vmatprep.subr.bf16.mxu0 0
      %1832 = vmatpush1.bf16.msra.mxu0 0
      %1833 = vmatprep.subr.bf16.mxu0 0
      %1834 = vmatpush1.bf16.msra.mxu0 0
      %1835 = vmatprep.subr.bf16.mxu0 0
      %1836 = vmatpush1.bf16.msra.mxu0 0
      %1837 = vmatprep.subr.bf16.mxu0 0
      %1838 = vmatpush1.bf16.msra.mxu0 0
      %1839 = vmatprep.subr.bf16.mxu0 0
      %1840 = vmatpush1.bf16.msra.mxu0 0
      %1841 = vmatprep.subr.bf16.mxu0 0
      %1842 = vmatpush1.bf16.msra.mxu0 0
      %1843 = vmatprep.subr.bf16.mxu0 0
      %1844 = vmatpush1.bf16.msra.mxu0 0
      %1845 = vmatprep.subr.bf16.mxu0 0
      %1846 = vmatpush1.bf16.msra.mxu0 0
      %1847 = vmatprep.subr.bf16.mxu0 0
      %1848 = vmatpush1.bf16.msra.mxu0 0
      %1849 = vmatprep.subr.bf16.mxu0 0
      %1850 = vmatpush1.bf16.msra.mxu0 0
      %1851 = vmatprep.subr.bf16.mxu0 0
      %1852 = vmatpush1.bf16.msra.mxu0 0
      %1853 = vmatprep.subr.bf16.mxu0 0
      %1854 = vmatpush1.bf16.msra.mxu0 0
      %1855 = vmatprep.subr.bf16.mxu0 0
      %1856 = vmatpush1.bf16.msra.mxu0 0
      %1857 = vmatprep.subr.bf16.mxu0 0
      %1858 = vmatpush1.bf16.msra.mxu0 0
      %1859 = vmatprep.mubr.bf16.mxu0 0
      %1860 = vmatmul.mubr.bf16.gmra.mrb[0].mxu0 %v1819
      %v1861 = vpop.f32.mrb[0].mxu0
      %v1862 = vadd.f32 0.0, %v1861
      %v1863 = vpop.f32.mrb[0].mxu0
      %v1864 = vpop.f32.mrb[0].mxu0
      %v1865 = vadd.f32 0.0, %v1864
      %v1866 = vpop.f32.mrb[0].mxu0
      %1867 = vmatprep.mubr.bf16.mxu0 0
      %1868 = vmatmul.mubr.bf16.gmra.mrb[0].mxu0 %v1822
      %v1869 = vpop.f32.mrb[0].mxu0
      %v1870 = vadd.f32 0.0, %v1869
      %v1871 = vpop.f32.mrb[0].mxu0
      %v1872 = vpop.f32.mrb[0].mxu0
      %v1873 = vpop.f32.mrb[0].mxu0
      %1874 = vdwg.mxu0
      %1878 = vrot.lane.b32.xlu0 %v1526, 32
      %v1879 = vpop.permute.xlu0 %1878
      %1880 = vrot.lane.b32.xlu0 %v1529, 32
      %v1881 = vpop.permute.xlu0 %1880
      %1882 = vrot.lane.b32.xlu0 %v1534, 32
      %v1883 = vpop.permute.xlu0 %1882
      %1890 = vrot.lane.b32.xlu0 %v1694, 64
      %v1891 = vpop.permute.xlu0 %1890
      %1892 = vrot.lane.b32.xlu0 %v1697, 64
      %v1893 = vpop.permute.xlu0 %1892
      %1894 = vrot.lane.b32.xlu0 %v1702, 64
      %v1895 = vpop.permute.xlu0 %1894
      %1902 = vrot.lane.b32.xlu0 %v1862, 96
      %v1903 = vpop.permute.xlu0 %1902
      %1904 = vrot.lane.b32.xlu0 %v1865, 96
      %v1905 = vpop.permute.xlu0 %1904
      %1906 = vrot.lane.b32.xlu0 %v1870, 96
      %v1907 = vpop.permute.xlu0 %1906
      %v1911 = vsel %vm1203, %v1352, %v1879
      %v1912 = vsel %vm1203, %v1355, %v1881
      %v1913 = vsel %vm1203, %v1360, %v1883
      %vm1914 = vcmask 523264
      %v1915 = vsel %vm1914, %v1911, %v1891
      %v1916 = vsel %vm1914, %v1912, %v1893
      %v1917 = vsel %vm1914, %v1913, %v1895
      %vm1918 = vcmask 785408
      %v1919 = vsel %vm1918, %v1915, %v1903
      %v1920 = vsel %vm1918, %v1916, %v1905
      %v1921 = vsel %vm1918, %v1917, %v1907
      %v1922 = vld [vmem:[%s9] sm:$0xff]
      %v1923 = vld [vmem:[%s9 + $0x8] sm:$0xff]
      %v1924 = vld [vmem:[%s9 + $0x10] sm:$0xff]
      %v1925 = vld [vmem:[%s9 + $0x18] sm:$0xff]
      %v1926 = vld [vmem:[%s9 + $0x20] sm:$0xff]
      %v1927 = vld [vmem:[%s9 + $0x28] sm:$0xff]
      %v1928 = vld [vmem:[%s9 + $0x30] sm:$0xff]
      %v1929 = vld [vmem:[%s9 + $0x38] sm:$0xff]
      %v1930 = vld [vmem:[%s9 + $0x40] sm:$0xff]
      %v1931 = vld [vmem:[%s9 + $0x48] sm:$0xff]
      %v1932 = vld [vmem:[%s9 + $0x50] sm:$0xff]
      %v1933 = vld [vmem:[%s9 + $0x58] sm:$0xff]
      %v1934 = vld [vmem:[%s9 + $0x60] sm:$0xff]
      %v1935 = vld [vmem:[%s9 + $0x68] sm:$0xff]
      %v1936 = vld [vmem:[%s9 + $0x70] sm:$0xff]
      %v1937 = vld [vmem:[%s9 + $0x78] sm:$0xff]
      %v1938 = vpack.c.bf16 %v1920, %v1919
      %v1939 = vpack.c.bf16 %v1921, %v1921
      %v1940 = vpack.c.bf16 %v1923, %v1922
      %v1941 = vpack.c.bf16 %v1925, %v1924
      %v1942 = vpack.c.bf16 %v1927, %v1926
      %v1943 = vpack.c.bf16 %v1929, %v1928
      %v1944 = vpack.c.bf16 %v1931, %v1930
      %v1945 = vpack.c.bf16 %v1933, %v1932
      %v1946 = vpack.c.bf16 %v1935, %v1934
      %v1947 = vpack.c.bf16 %v1937, %v1936
      %1948 = vmatprep.subr.bf16.mxu0 0
      %1949 = vmatpush1.bf16.msra.mxu0 %v1940
      %1950 = vmatprep.subr.bf16.mxu0 0
      %1951 = vmatpush1.bf16.msra.mxu0 %v1941
      %1952 = vmatprep.subr.bf16.mxu0 0
      %1953 = vmatpush1.bf16.msra.mxu0 %v1942
      %1954 = vmatprep.subr.bf16.mxu0 0
      %1955 = vmatpush1.bf16.msra.mxu0 %v1943
      %1956 = vmatprep.subr.bf16.mxu0 0
      %1957 = vmatpush1.bf16.msra.mxu0 %v1944
      %1958 = vmatprep.subr.bf16.mxu0 0
      %1959 = vmatpush1.bf16.msra.mxu0 %v1945
      %1960 = vmatprep.subr.bf16.mxu0 0
      %1961 = vmatpush1.bf16.msra.mxu0 %v1946
      %1962 = vmatprep.subr.bf16.mxu0 0
      %1963 = vmatpush1.bf16.msra.mxu0 %v1947
      %1964 = vmatprep.subr.bf16.mxu0 0
      %1965 = vmatpush1.bf16.msra.mxu0 0
      %1966 = vmatprep.subr.bf16.mxu0 0
      %1967 = vmatpush1.bf16.msra.mxu0 0
      %1968 = vmatprep.subr.bf16.mxu0 0
      %1969 = vmatpush1.bf16.msra.mxu0 0
      %1970 = vmatprep.subr.bf16.mxu0 0
      %1971 = vmatpush1.bf16.msra.mxu0 0
      %1972 = vmatprep.subr.bf16.mxu0 0
      %1973 = vmatpush1.bf16.msra.mxu0 0
      %1974 = vmatprep.subr.bf16.mxu0 0
      %1975 = vmatpush1.bf16.msra.mxu0 0
      %1976 = vmatprep.subr.bf16.mxu0 0
      %1977 = vmatpush1.bf16.msra.mxu0 0
      %1978 = vmatprep.subr.bf16.mxu0 0
      %1979 = vmatpush1.bf16.msra.mxu0 0
      %1980 = vmatprep.mubr.bf16.mxu0 0
      %1981 = vmatmul.mubr.bf16.gmra.mrb[0].mxu0 %v1938
      %v1982 = vpop.f32.mrb[0].mxu0
      %v1983 = vadd.f32 0.0, %v1982
      %v1984 = vpop.f32.mrb[0].mxu0
      %v1985 = vpop.f32.mrb[0].mxu0
      %v1986 = vadd.f32 0.0, %v1985
      %v1987 = vpop.f32.mrb[0].mxu0
      %1988 = vmatprep.mubr.bf16.mxu0 0
      %1989 = vmatmul.mubr.bf16.gmra.mrb[0].mxu0 %v1939
      %v1990 = vpop.f32.mrb[0].mxu0
      %v1991 = vadd.f32 0.0, %v1990
      %v1992 = vpop.f32.mrb[0].mxu0
      %v1993 = vpop.f32.mrb[0].mxu0
      %v1994 = vpop.f32.mrb[0].mxu0
      %1995 = vdwg.mxu0
      %v1996 = vadd.f32 %v950, %v1983
      %v1997 = vadd.f32 %v951, %v1986
      %v1998 = vadd.f32 %v952, %v1991
      %v1999 = vld [vmem:[%s10] sm:$0x1]
      %v2001 = vlaneseq
      %v2002 = vshrl.u32 %v2001, 7
      %v2003 = vsub.s32 0, %v2002
      %v2004 = vrot.slane %v1999, %v2003
      %v2006 = vadd.f32 %v1996, %v2004
      %v2007 = vadd.f32 %v1997, %v2004
      %v2008 = vadd.f32 %v1998, %v2004
      %v2009 = vld [vmem:[%s11] sm:$0x1]
      %v2010 = vld [vmem:[%s12] sm:$0x1]
      %2011 = vadd.xlane.f32.xlu0 %v2006
      %v2012 = vpop.xlane.xlu0 %2011
      %2013 = vadd.xlane.f32.xlu0 %v2007
      %v2014 = vpop.xlane.xlu0 %2013
      %v2015 = vsel %vm939, %v2008, 0.0
      %2016 = vadd.xlane.f32.xlu0 %v2015
      %v2017 = vpop.xlane.xlu0 %2016
      %v2018 = vmul.f32 %v2012, %v962
      %v2019 = vmul.f32 %v2014, %v962
      %v2020 = vmul.f32 %v2017, %v962
      %v2021 = vsub.f32 %v2006, %v2018
      %v2022 = vsub.f32 %v2007, %v2019
      %v2023 = vsub.f32 %v2008, %v2020
      %v2024 = vmul.f32 %v2021, %v2021
      %v2025 = vmul.f32 %v2022, %v2022
      %v2026 = vmul.f32 %v2023, %v2023
      %2027 = vadd.xlane.f32.xlu0 %v2024
      %v2028 = vpop.xlane.xlu0 %2027
      %2029 = vadd.xlane.f32.xlu0 %v2025
      %v2030 = vpop.xlane.xlu0 %2029
      %v2031 = vsel %vm939, %v2026, 0.0
      %2032 = vadd.xlane.f32.xlu0 %v2031
      %v2033 = vpop.xlane.xlu0 %2032
      %v2034 = vmul.f32 %v2028, %v962
      %v2035 = vmul.f32 %v2030, %v962
      %v2036 = vmul.f32 %v2033, %v962
      %v2037 = vadd.f32 %v2034, 1e-06
      %v2038 = vadd.f32 %v2035, 1e-06
      %v2039 = vadd.f32 %v2036, 1e-06
      %v2040 = vrsqrt.pop %v2037
      %v2041 = vrsqrt.pop %v2038
      %v2042 = vrsqrt.pop %v2039
      %v2043 = vmul.f32 %v2021, %v2040
      %v2044 = vmul.f32 %v2022, %v2041
      %v2045 = vmul.f32 %v2023, %v2042
      %v2047 = vlaneseq
      %v2048 = vshrl.u32 %v2047, 7
      %v2049 = vsub.s32 0, %v2048
      %v2050 = vrot.slane %v2009, %v2049
      %v2052 = vmul.f32 %v2043, %v2050
      %v2053 = vmul.f32 %v2044, %v2050
      %v2054 = vmul.f32 %v2045, %v2050
      %v2056 = vlaneseq
      %v2057 = vshrl.u32 %v2056, 7
      %v2058 = vsub.s32 0, %v2057
      %v2059 = vrot.slane %v2010, %v2058
      %v2061 = vadd.f32 %v2052, %v2059
      %v2062 = vadd.f32 %v2053, %v2059
      %v2063 = vadd.f32 %v2054, %v2059
      %v2064 = vld [vmem:[%s13] sm:$0xff]
      %v2065 = vld [vmem:[%s13 + $0x8] sm:$0xff]
      %v2066 = vld [vmem:[%s13 + $0x10] sm:$0xff]
      %v2067 = vld [vmem:[%s13 + $0x18] sm:$0xff]
      %v2068 = vld [vmem:[%s13 + $0x20] sm:$0xff]
      %v2069 = vld [vmem:[%s13 + $0x28] sm:$0xff]
      %v2070 = vld [vmem:[%s13 + $0x30] sm:$0xff]
      %v2071 = vld [vmem:[%s13 + $0x38] sm:$0xff]
      %v2072 = vld [vmem:[%s13 + $0x40] sm:$0xff]
      %v2073 = vld [vmem:[%s13 + $0x48] sm:$0xff]
      %v2074 = vld [vmem:[%s13 + $0x50] sm:$0xff]
      %v2075 = vld [vmem:[%s13 + $0x58] sm:$0xff]
      %v2076 = vld [vmem:[%s13 + $0x60] sm:$0xff]
      %v2077 = vld [vmem:[%s13 + $0x68] sm:$0xff]
      %v2078 = vld [vmem:[%s13 + $0x70] sm:$0xff]
      %v2079 = vld [vmem:[%s13 + $0x78] sm:$0xff]
      %v2080 = vld [vmem:[%s13 + $0x80] sm:$0xff]
      %v2081 = vld [vmem:[%s13 + $0x88] sm:$0xff]
      %v2082 = vld [vmem:[%s13 + $0x90] sm:$0xff]
      %v2083 = vld [vmem:[%s13 + $0x98] sm:$0xff]
      %v2084 = vld [vmem:[%s13 + $0xa0] sm:$0xff]
      %v2085 = vld [vmem:[%s13 + $0xa8] sm:$0xff]
      %v2086 = vld [vmem:[%s13 + $0xb0] sm:$0xff]
      %v2087 = vld [vmem:[%s13 + $0xb8] sm:$0xff]
      %v2088 = vld [vmem:[%s13 + $0xc0] sm:$0xff]
      %v2089 = vld [vmem:[%s13 + $0xc8] sm:$0xff]
      %v2090 = vld [vmem:[%s13 + $0xd0] sm:$0xff]
      %v2091 = vld [vmem:[%s13 + $0xd8] sm:$0xff]
      %v2092 = vld [vmem:[%s13 + $0xe0] sm:$0xff]
      %v2093 = vld [vmem:[%s13 + $0xe8] sm:$0xff]
      %v2094 = vld [vmem:[%s13 + $0xf0] sm:$0xff]
      %v2095 = vld [vmem:[%s13 + $0xf8] sm:$0xff]
      %v2096 = vpack.c.bf16 %v2062, %v2061
      %v2097 = vpack.c.bf16 %v2063, %v2063
      %v2098 = vpack.c.bf16 %v2066, %v2064
      %v2099 = vpack.c.bf16 %v2067, %v2065
      %v2100 = vpack.c.bf16 %v2070, %v2068
      %v2101 = vpack.c.bf16 %v2071, %v2069
      %v2102 = vpack.c.bf16 %v2074, %v2072
      %v2103 = vpack.c.bf16 %v2075, %v2073
      %v2104 = vpack.c.bf16 %v2078, %v2076
      %v2105 = vpack.c.bf16 %v2079, %v2077
      %v2106 = vpack.c.bf16 %v2082, %v2080
      %v2107 = vpack.c.bf16 %v2083, %v2081
      %v2108 = vpack.c.bf16 %v2086, %v2084
      %v2109 = vpack.c.bf16 %v2087, %v2085
      %v2110 = vpack.c.bf16 %v2090, %v2088
      %v2111 = vpack.c.bf16 %v2091, %v2089
      %v2112 = vpack.c.bf16 %v2094, %v2092
      %v2113 = vpack.c.bf16 %v2095, %v2093
      %v2114 = vld [vmem:[%s14] sm:$0x3]
      %v2116 = vlaneseq
      %v2117 = vshrl.u32 %v2116, 7
      %v2118 = vsub.s32 0, %v2117
      %v2119 = vrot.slane %v2114, %v2118
      %v2120 = vlaneseq
      %v2121 = vshrl.u32 %v2120, 7
      %v2122 = vsub.s32 1, %v2121
      %v2123 = vrot.slane %v2114, %v2122
      %2126 = vmatprep.subr.bf16.mxu0 %v2099
      %2127 = vmatpush1.bf16.msra.mxu0 %v2098
      %2128 = vmatprep.subr.bf16.mxu0 %v2101
      %2129 = vmatpush1.bf16.msra.mxu0 %v2100
      %2130 = vmatprep.subr.bf16.mxu0 %v2103
      %2131 = vmatpush1.bf16.msra.mxu0 %v2102
      %2132 = vmatprep.subr.bf16.mxu0 %v2105
      %2133 = vmatpush1.bf16.msra.mxu0 %v2104
      %2134 = vmatprep.subr.bf16.mxu0 %v2107
      %2135 = vmatpush1.bf16.msra.mxu0 %v2106
      %2136 = vmatprep.subr.bf16.mxu0 %v2109
      %2137 = vmatpush1.bf16.msra.mxu0 %v2108
      %2138 = vmatprep.subr.bf16.mxu0 %v2111
      %2139 = vmatpush1.bf16.msra.mxu0 %v2110
      %2140 = vmatprep.subr.bf16.mxu0 %v2113
      %2141 = vmatpush1.bf16.msra.mxu0 %v2112
      %2142 = vmatprep.subr.bf16.mxu0 0
      %2143 = vmatpush1.bf16.msra.mxu0 0
      %2144 = vmatprep.subr.bf16.mxu0 0
      %2145 = vmatpush1.bf16.msra.mxu0 0
      %2146 = vmatprep.subr.bf16.mxu0 0
      %2147 = vmatpush1.bf16.msra.mxu0 0
      %2148 = vmatprep.subr.bf16.mxu0 0
      %2149 = vmatpush1.bf16.msra.mxu0 0
      %2150 = vmatprep.subr.bf16.mxu0 0
      %2151 = vmatpush1.bf16.msra.mxu0 0
      %2152 = vmatprep.subr.bf16.mxu0 0
      %2153 = vmatpush1.bf16.msra.mxu0 0
      %2154 = vmatprep.subr.bf16.mxu0 0
      %2155 = vmatpush1.bf16.msra.mxu0 0
      %2156 = vmatprep.subr.bf16.mxu0 0
      %2157 = vmatpush1.bf16.msra.mxu0 0
      %2158 = vmatprep.mubr.bf16.mxu0 0
      %2159 = vmatmul.mubr.bf16.gmra.mrb[0].mxu0 %v2096
      %v2160 = vpop.f32.mrb[0].mxu0
      %v2161 = vadd.f32 %v2119, %v2160
      %v2162 = vpop.f32.mrb[0].mxu0
      %v2163 = vadd.f32 %v2123, %v2162
      %v2164 = vpop.f32.mrb[0].mxu0
      %v2165 = vadd.f32 %v2119, %v2164
      %v2166 = vpop.f32.mrb[0].mxu0
      %v2167 = vadd.f32 %v2123, %v2166
      %2168 = vmatprep.mubr.bf16.mxu0 0
      %2169 = vmatmul.mubr.bf16.gmra.mrb[0].mxu0 %v2097
      %v2170 = vpop.f32.mrb[0].mxu0
      %v2171 = vadd.f32 %v2119, %v2170
      %v2172 = vpop.f32.mrb[0].mxu0
      %v2173 = vadd.f32 %v2123, %v2172
      %v2174 = vpop.f32.mrb[0].mxu0
      %v2175 = vpop.f32.mrb[0].mxu0
      %2176 = vdwg.mxu0
      %v2177 = vmul.f32 %v2161, %v2161
      %v2178 = vmul.f32 %v2163, %v2163
      %v2179 = vmul.f32 %v2165, %v2165
      %v2180 = vmul.f32 %v2167, %v2167
      %v2181 = vmul.f32 %v2171, %v2171
      %v2182 = vmul.f32 %v2173, %v2173
      %v2183 = vmul.f32 %v2161, %v2177
      %v2184 = vmul.f32 %v2163, %v2178
      %v2185 = vmul.f32 %v2165, %v2179
      %v2186 = vmul.f32 %v2167, %v2180
      %v2187 = vmul.f32 %v2171, %v2181
      %v2188 = vmul.f32 %v2173, %v2182
      %v2189 = vmul.f32 %v2183, 0.044715
      %v2190 = vmul.f32 %v2184, 0.044715
      %v2191 = vmul.f32 %v2185, 0.044715
      %v2192 = vmul.f32 %v2186, 0.044715
      %v2193 = vmul.f32 %v2187, 0.044715
      %v2194 = vmul.f32 %v2188, 0.044715
      %v2195 = vadd.f32 %v2161, %v2189
      %v2196 = vadd.f32 %v2163, %v2190
      %v2197 = vadd.f32 %v2165, %v2191
      %v2198 = vadd.f32 %v2167, %v2192
      %v2199 = vadd.f32 %v2171, %v2193
      %v2200 = vadd.f32 %v2173, %v2194
      %v2201 = vmul.f32 %v2195, 0.7978846
      %v2202 = vmul.f32 %v2196, 0.7978846
      %v2203 = vmul.f32 %v2197, 0.7978846
      %v2204 = vmul.f32 %v2198, 0.7978846
      %v2205 = vmul.f32 %v2199, 0.7978846
      %v2206 = vmul.f32 %v2200, 0.7978846
      %v2207 = vtanh.pop %v2201
      %v2208 = vtanh.pop %v2202
      %v2209 = vtanh.pop %v2203
      %v2210 = vtanh.pop %v2204
      %v2211 = vtanh.pop %v2205
      %v2212 = vtanh.pop %v2206
      %v2213 = vadd.f32 %v2207, 1.0
      %v2214 = vadd.f32 %v2208, 1.0
      %v2215 = vadd.f32 %v2209, 1.0
      %v2216 = vadd.f32 %v2210, 1.0
      %v2217 = vadd.f32 %v2211, 1.0
      %v2218 = vadd.f32 %v2212, 1.0
      %v2219 = vmul.f32 %v2213, 0.5
      %v2220 = vmul.f32 %v2214, 0.5
      %v2221 = vmul.f32 %v2215, 0.5
      %v2222 = vmul.f32 %v2216, 0.5
      %v2223 = vmul.f32 %v2217, 0.5
      %v2224 = vmul.f32 %v2218, 0.5
      %v2225 = vmul.f32 %v2161, %v2219
      %v2226 = vmul.f32 %v2163, %v2220
      %v2227 = vmul.f32 %v2165, %v2221
      %v2228 = vmul.f32 %v2167, %v2222
      %v2229 = vmul.f32 %v2171, %v2223
      %v2230 = vmul.f32 %v2173, %v2224
      %v2231 = vld [vmem:[%s15] sm:$0xff]
      %v2232 = vld [vmem:[%s15 + $0x8] sm:$0xff]
      %v2233 = vld [vmem:[%s15 + $0x10] sm:$0xff]
      %v2234 = vld [vmem:[%s15 + $0x18] sm:$0xff]
      %v2235 = vld [vmem:[%s15 + $0x20] sm:$0xff]
      %v2236 = vld [vmem:[%s15 + $0x28] sm:$0xff]
      %v2237 = vld [vmem:[%s15 + $0x30] sm:$0xff]
      %v2238 = vld [vmem:[%s15 + $0x38] sm:$0xff]
      %v2239 = vld [vmem:[%s15 + $0x40] sm:$0xff]
      %v2240 = vld [vmem:[%s15 + $0x48] sm:$0xff]
      %v2241 = vld [vmem:[%s15 + $0x50] sm:$0xff]
      %v2242 = vld [vmem:[%s15 + $0x58] sm:$0xff]
      %v2243 = vld [vmem:[%s15 + $0x60] sm:$0xff]
      %v2244 = vld [vmem:[%s15 + $0x68] sm:$0xff]
      %v2245 = vld [vmem:[%s15 + $0x70] sm:$0xff]
      %v2246 = vld [vmem:[%s15 + $0x78] sm:$0xff]
      %v2247 = vld [vmem:[%s15 + $0x80] sm:$0xff]
      %v2248 = vld [vmem:[%s15 + $0x88] sm:$0xff]
      %v2249 = vld [vmem:[%s15 + $0x90] sm:$0xff]
      %v2250 = vld [vmem:[%s15 + $0x98] sm:$0xff]
      %v2251 = vld [vmem:[%s15 + $0xa0] sm:$0xff]
      %v2252 = vld [vmem:[%s15 + $0xa8] sm:$0xff]
      %v2253 = vld [vmem:[%s15 + $0xb0] sm:$0xff]
      %v2254 = vld [vmem:[%s15 + $0xb8] sm:$0xff]
      %v2255 = vld [vmem:[%s15 + $0xc0] sm:$0xff]
      %v2256 = vld [vmem:[%s15 + $0xc8] sm:$0xff]
      %v2257 = vld [vmem:[%s15 + $0xd0] sm:$0xff]
      %v2258 = vld [vmem:[%s15 + $0xd8] sm:$0xff]
      %v2259 = vld [vmem:[%s15 + $0xe0] sm:$0xff]
      %v2260 = vld [vmem:[%s15 + $0xe8] sm:$0xff]
      %v2261 = vld [vmem:[%s15 + $0xf0] sm:$0xff]
      %v2262 = vld [vmem:[%s15 + $0xf8] sm:$0xff]
      %v2263 = vpack.c.bf16 %v2227, %v2225
      %v2264 = vpack.c.bf16 %v2228, %v2226
      %v2265 = vpack.c.bf16 %v2229, %v2229
      %v2266 = vpack.c.bf16 %v2230, %v2230
      %v2267 = vpack.c.bf16 %v2232, %v2231
      %v2268 = vpack.c.bf16 %v2234, %v2233
      %v2269 = vpack.c.bf16 %v2236, %v2235
      %v2270 = vpack.c.bf16 %v2238, %v2237
      %v2271 = vpack.c.bf16 %v2240, %v2239
      %v2272 = vpack.c.bf16 %v2242, %v2241
      %v2273 = vpack.c.bf16 %v2244, %v2243
      %v2274 = vpack.c.bf16 %v2246, %v2245
      %v2275 = vpack.c.bf16 %v2248, %v2247
      %v2276 = vpack.c.bf16 %v2250, %v2249
      %v2277 = vpack.c.bf16 %v2252, %v2251
      %v2278 = vpack.c.bf16 %v2254, %v2253
      %v2279 = vpack.c.bf16 %v2256, %v2255
      %v2280 = vpack.c.bf16 %v2258, %v2257
      %v2281 = vpack.c.bf16 %v2260, %v2259
      %v2282 = vpack.c.bf16 %v2262, %v2261
      %2283 = vmatprep.subr.bf16.mxu0 0
      %2284 = vmatpush1.bf16.msra.mxu0 %v2267
      %2285 = vmatprep.subr.bf16.mxu0 0
      %2286 = vmatpush1.bf16.msra.mxu0 %v2268
      %2287 = vmatprep.subr.bf16.mxu0 0
      %2288 = vmatpush1.bf16.msra.mxu0 %v2269
      %2289 = vmatprep.subr.bf16.mxu0 0
      %2290 = vmatpush1.bf16.msra.mxu0 %v2270
      %2291 = vmatprep.subr.bf16.mxu0 0
      %2292 = vmatpush1.bf16.msra.mxu0 %v2271
      %2293 = vmatprep.subr.bf16.mxu0 0
      %2294 = vmatpush1.bf16.msra.mxu0 %v2272
      %2295 = vmatprep.subr.bf16.mxu0 0
      %2296 = vmatpush1.bf16.msra.mxu0 %v2273
      %2297 = vmatprep.subr.bf16.mxu0 0
      %2298 = vmatpush1.bf16.msra.mxu0 %v2274
      %2299 = vmatprep.subr.bf16.mxu0 0
      %2300 = vmatpush1.bf16.msra.mxu0 %v2275
      %2301 = vmatprep.subr.bf16.mxu0 0
      %2302 = vmatpush1.bf16.msra.mxu0 %v2276
      %2303 = vmatprep.subr.bf16.mxu0 0
      %2304 = vmatpush1.bf16.msra.mxu0 %v2277
      %2305 = vmatprep.subr.bf16.mxu0 0
      %2306 = vmatpush1.bf16.msra.mxu0 %v2278
      %2307 = vmatprep.subr.bf16.mxu0 0
      %2308 = vmatpush1.bf16.msra.mxu0 %v2279
      %2309 = vmatprep.subr.bf16.mxu0 0
      %2310 = vmatpush1.bf16.msra.mxu0 %v2280
      %2311 = vmatprep.subr.bf16.mxu0 0
      %2312 = vmatpush1.bf16.msra.mxu0 %v2281
      %2313 = vmatprep.subr.bf16.mxu0 0
      %2314 = vmatpush1.bf16.msra.mxu0 %v2282
      %2315 = vmatprep.mubr.bf16.mxu0 %v2264
      %2316 = vmatmul.mubr.bf16.gmra.mrb[0].mxu0 %v2263
      %v2317 = vpop.f32.mrb[0].mxu0
      %v2318 = vadd.f32 0.0, %v2317
      %v2319 = vpop.f32.mrb[0].mxu0
      %v2320 = vpop.f32.mrb[0].mxu0
      %v2321 = vadd.f32 0.0, %v2320
      %v2322 = vpop.f32.mrb[0].mxu0
      %2323 = vmatprep.mubr.bf16.mxu0 %v2266
      %2324 = vmatmul.mubr.bf16.gmra.mrb[0].mxu0 %v2265
      %v2325 = vpop.f32.mrb[0].mxu0
      %v2326 = vadd.f32 0.0, %v2325
      %v2327 = vpop.f32.mrb[0].mxu0
      %v2328 = vpop.f32.mrb[0].mxu0
      %v2329 = vpop.f32.mrb[0].mxu0
      %2330 = vdwg.mxu0
      %v2331 = vadd.f32 %v2006, %v2318
      %v2332 = vadd.f32 %v2007, %v2321
      %v2333 = vadd.f32 %v2008, %v2326
      %v2334 = vld [vmem:[%s16] sm:$0x1]
      %v2336 = vlaneseq
      %v2337 = vshrl.u32 %v2336, 7
      %v2338 = vsub.s32 0, %v2337
      %v2339 = vrot.slane %v2334, %v2338
      %v2341 = vadd.f32 %v2331, %v2339
      %v2342 = vadd.f32 %v2332, %v2339
      %v2343 = vadd.f32 %v2333, %v2339
      %s2344 = scalar_lea.vmem %s5, 1
      %v2345 = vld [vmem:[%s2344] sm:$0x1]
      %s2346 = scalar_lea.vmem %s6, 1
      %v2347 = vld [vmem:[%s2346] sm:$0x1]
      %2348 = vadd.xlane.f32.xlu0 %v2341
      %v2349 = vpop.xlane.xlu0 %2348
      %2350 = vadd.xlane.f32.xlu0 %v2342
      %v2351 = vpop.xlane.xlu0 %2350
      %v2352 = vsel %vm939, %v2343, 0.0
      %2353 = vadd.xlane.f32.xlu0 %v2352
      %v2354 = vpop.xlane.xlu0 %2353
      %v2355 = vmul.f32 %v2349, %v962
      %v2356 = vmul.f32 %v2351, %v962
      %v2357 = vmul.f32 %v2354, %v962
      %v2358 = vsub.f32 %v2341, %v2355
      %v2359 = vsub.f32 %v2342, %v2356
      %v2360 = vsub.f32 %v2343, %v2357
      %v2361 = vmul.f32 %v2358, %v2358
      %v2362 = vmul.f32 %v2359, %v2359
      %v2363 = vmul.f32 %v2360, %v2360
      %2364 = vadd.xlane.f32.xlu0 %v2361
      %v2365 = vpop.xlane.xlu0 %2364
      %2366 = vadd.xlane.f32.xlu0 %v2362
      %v2367 = vpop.xlane.xlu0 %2366
      %v2368 = vsel %vm939, %v2363, 0.0
      %2369 = vadd.xlane.f32.xlu0 %v2368
      %v2370 = vpop.xlane.xlu0 %2369
      %v2371 = vmul.f32 %v2365, %v962
      %v2372 = vmul.f32 %v2367, %v962
      %v2373 = vmul.f32 %v2370, %v962
      %v2374 = vadd.f32 %v2371, 1e-06
      %v2375 = vadd.f32 %v2372, 1e-06
      %v2376 = vadd.f32 %v2373, 1e-06
      %v2377 = vrsqrt.pop %v2374
      %v2378 = vrsqrt.pop %v2375
      %v2379 = vrsqrt.pop %v2376
      %v2380 = vmul.f32 %v2358, %v2377
      %v2381 = vmul.f32 %v2359, %v2378
      %v2382 = vmul.f32 %v2360, %v2379
      %v2384 = vlaneseq
      %v2385 = vshrl.u32 %v2384, 7
      %v2386 = vsub.s32 0, %v2385
      %v2387 = vrot.slane %v2345, %v2386
      %v2389 = vmul.f32 %v2380, %v2387
      %v2390 = vmul.f32 %v2381, %v2387
      %v2391 = vmul.f32 %v2382, %v2387
      %v2393 = vlaneseq
      %v2394 = vshrl.u32 %v2393, 7
      %v2395 = vsub.s32 0, %v2394
      %v2396 = vrot.slane %v2347, %v2395
      %v2398 = vadd.f32 %v2389, %v2396
      %v2399 = vadd.f32 %v2390, %v2396
      %v2400 = vadd.f32 %v2391, %v2396
      %s2401 = scalar_lea.vmem %s7, 384
      %v2402 = vld [vmem:[%s2401] sm:$0xff]
      %v2403 = vld [vmem:[%s2401 + $0x8] sm:$0xff]
      %v2404 = vld [vmem:[%s2401 + $0x10] sm:$0xff]
      %v2405 = vld [vmem:[%s2401 + $0x18] sm:$0xff]
      %v2406 = vld [vmem:[%s2401 + $0x20] sm:$0xff]
      %v2407 = vld [vmem:[%s2401 + $0x28] sm:$0xff]
      %v2408 = vld [vmem:[%s2401 + $0x30] sm:$0xff]
      %v2409 = vld [vmem:[%s2401 + $0x38] sm:$0xff]
      %v2410 = vld [vmem:[%s2401 + $0x40] sm:$0xff]
      %v2411 = vld [vmem:[%s2401 + $0x48] sm:$0xff]
      %v2412 = vld [vmem:[%s2401 + $0x50] sm:$0xff]
      %v2413 = vld [vmem:[%s2401 + $0x58] sm:$0xff]
      %v2414 = vld [vmem:[%s2401 + $0x60] sm:$0xff]
      %v2415 = vld [vmem:[%s2401 + $0x68] sm:$0xff]
      %v2416 = vld [vmem:[%s2401 + $0x70] sm:$0xff]
      %v2417 = vld [vmem:[%s2401 + $0x78] sm:$0xff]
      %v2418 = vld [vmem:[%s2401 + $0x80] sm:$0xff]
      %v2419 = vld [vmem:[%s2401 + $0x88] sm:$0xff]
      %v2420 = vld [vmem:[%s2401 + $0x90] sm:$0xff]
      %v2421 = vld [vmem:[%s2401 + $0x98] sm:$0xff]
      %v2422 = vld [vmem:[%s2401 + $0xa0] sm:$0xff]
      %v2423 = vld [vmem:[%s2401 + $0xa8] sm:$0xff]
      %v2424 = vld [vmem:[%s2401 + $0xb0] sm:$0xff]
      %v2425 = vld [vmem:[%s2401 + $0xb8] sm:$0xff]
      %v2426 = vld [vmem:[%s2401 + $0xc0] sm:$0xff]
      %v2427 = vld [vmem:[%s2401 + $0xc8] sm:$0xff]
      %v2428 = vld [vmem:[%s2401 + $0xd0] sm:$0xff]
      %v2429 = vld [vmem:[%s2401 + $0xd8] sm:$0xff]
      %v2430 = vld [vmem:[%s2401 + $0xe0] sm:$0xff]
      %v2431 = vld [vmem:[%s2401 + $0xe8] sm:$0xff]
      %v2432 = vld [vmem:[%s2401 + $0xf0] sm:$0xff]
      %v2433 = vld [vmem:[%s2401 + $0xf8] sm:$0xff]
      %v2434 = vld [vmem:[%s2401 + $0x100] sm:$0xff]
      %v2435 = vld [vmem:[%s2401 + $0x108] sm:$0xff]
      %v2436 = vld [vmem:[%s2401 + $0x110] sm:$0xff]
      %v2437 = vld [vmem:[%s2401 + $0x118] sm:$0xff]
      %v2438 = vld [vmem:[%s2401 + $0x120] sm:$0xff]
      %v2439 = vld [vmem:[%s2401 + $0x128] sm:$0xff]
      %v2440 = vld [vmem:[%s2401 + $0x130] sm:$0xff]
      %v2441 = vld [vmem:[%s2401 + $0x138] sm:$0xff]
      %v2442 = vld [vmem:[%s2401 + $0x140] sm:$0xff]
      %v2443 = vld [vmem:[%s2401 + $0x148] sm:$0xff]
      %v2444 = vld [vmem:[%s2401 + $0x150] sm:$0xff]
      %v2445 = vld [vmem:[%s2401 + $0x158] sm:$0xff]
      %v2446 = vld [vmem:[%s2401 + $0x160] sm:$0xff]
      %v2447 = vld [vmem:[%s2401 + $0x168] sm:$0xff]
      %v2448 = vld [vmem:[%s2401 + $0x170] sm:$0xff]
      %v2449 = vld [vmem:[%s2401 + $0x178] sm:$0xff]
      %v2450 = vpack.c.bf16 %v2399, %v2398
      %v2451 = vpack.c.bf16 %v2400, %v2400
      %v2452 = vpack.c.bf16 %v2405, %v2402
      %v2453 = vpack.c.bf16 %v2406, %v2403
      %v2454 = vpack.c.bf16 %v2407, %v2404
      %v2455 = vpack.c.bf16 %v2411, %v2408
      %v2456 = vpack.c.bf16 %v2412, %v2409
      %v2457 = vpack.c.bf16 %v2413, %v2410
      %v2458 = vpack.c.bf16 %v2417, %v2414
      %v2459 = vpack.c.bf16 %v2418, %v2415
      %v2460 = vpack.c.bf16 %v2419, %v2416
      %v2461 = vpack.c.bf16 %v2423, %v2420
      %v2462 = vpack.c.bf16 %v2424, %v2421
      %v2463 = vpack.c.bf16 %v2425, %v2422
      %v2464 = vpack.c.bf16 %v2429, %v2426
      %v2465 = vpack.c.bf16 %v2430, %v2427
      %v2466 = vpack.c.bf16 %v2431, %v2428
      %v2467 = vpack.c.bf16 %v2435, %v2432
      %v2468 = vpack.c.bf16 %v2436, %v2433
      %v2469 = vpack.c.bf16 %v2437, %v2434
      %v2470 = vpack.c.bf16 %v2441, %v2438
      %v2471 = vpack.c.bf16 %v2442, %v2439
      %v2472 = vpack.c.bf16 %v2443, %v2440
      %v2473 = vpack.c.bf16 %v2447, %v2444
      %v2474 = vpack.c.bf16 %v2448, %v2445
      %v2475 = vpack.c.bf16 %v2449, %v2446
      %s2476 = scalar_lea.vmem %s8, 3
      %v2477 = vld [vmem:[%s2476] sm:$0x7]
      %v2479 = vlaneseq
      %v2480 = vshrl.u32 %v2479, 7
      %v2481 = vsub.s32 0, %v2480
      %v2482 = vrot.slane %v2477, %v2481
      %v2483 = vlaneseq
      %v2484 = vshrl.u32 %v2483, 7
      %v2485 = vsub.s32 1, %v2484
      %v2486 = vrot.slane %v2477, %v2485
      %v2487 = vlaneseq
      %v2488 = vshrl.u32 %v2487, 7
      %v2489 = vsub.s32 2, %v2488
      %v2490 = vrot.slane %v2477, %v2489
      %2494 = vmatprep.subr.bf16.mxu0 %v2453
      %2495 = vmatpush1.bf16.msra.mxu0 %v2452
      %2496 = vmatprep.subr.bf16.mxu0 %v2456
      %2497 = vmatpush1.bf16.msra.mxu0 %v2455
      %2498 = vmatprep.subr.bf16.mxu0 %v2459
      %2499 = vmatpush1.bf16.msra.mxu0 %v2458
      %2500 = vmatprep.subr.bf16.mxu0 %v2462
      %2501 = vmatpush1.bf16.msra.mxu0 %v2461
      %2502 = vmatprep.subr.bf16.mxu0 %v2465
      %2503 = vmatpush1.bf16.msra.mxu0 %v2464
      %2504 = vmatprep.subr.bf16.mxu0 %v2468
      %2505 = vmatpush1.bf16.msra.mxu0 %v2467
      %2506 = vmatprep.subr.bf16.mxu0 %v2471
      %2507 = vmatpush1.bf16.msra.mxu0 %v2470
      %2508 = vmatprep.subr.bf16.mxu0 %v2474
      %2509 = vmatpush1.bf16.msra.mxu0 %v2473
      %2510 = vmatprep.subr.bf16.mxu0 0
      %2511 = vmatpush1.bf16.msra.mxu0 0
      %2512 = vmatprep.subr.bf16.mxu0 0
      %2513 = vmatpush1.bf16.msra.mxu0 0
      %2514 = vmatprep.subr.bf16.mxu0 0
      %2515 = vmatpush1.bf16.msra.mxu0 0
      %2516 = vmatprep.subr.bf16.mxu0 0
      %2517 = vmatpush1.bf16.msra.mxu0 0
      %2518 = vmatprep.subr.bf16.mxu0 0
      %2519 = vmatpush1.bf16.msra.mxu0 0
      %2520 = vmatprep.subr.bf16.mxu0 0
      %2521 = vmatpush1.bf16.msra.mxu0 0
      %2522 = vmatprep.subr.bf16.mxu0 0
      %2523 = vmatpush1.bf16.msra.mxu0 0
      %2524 = vmatprep.subr.bf16.mxu0 0
      %2525 = vmatpush1.bf16.msra.mxu0 0
      %2526 = vmatprep.mubr.bf16.mxu0 0
      %2527 = vmatmul.mubr.bf16.gmra.mrb[0].mxu0 %v2450
      %v2528 = vpop.f32.mrb[0].mxu0
      %v2529 = vadd.f32 %v2482, %v2528
      %v2530 = vpop.f32.mrb[0].mxu0
      %v2531 = vadd.f32 %v2486, %v2530
      %v2532 = vpop.f32.mrb[0].mxu0
      %v2533 = vadd.f32 %v2482, %v2532
      %v2534 = vpop.f32.mrb[0].mxu0
      %v2535 = vadd.f32 %v2486, %v2534
      %2536 = vmatprep.mubr.bf16.mxu0 0
      %2537 = vmatmul.mubr.bf16.gmra.mrb[0].mxu0 %v2451
      %v2538 = vpop.f32.mrb[0].mxu0
      %v2539 = vadd.f32 %v2482, %v2538
      %v2540 = vpop.f32.mrb[0].mxu0
      %v2541 = vadd.f32 %v2486, %v2540
      %v2542 = vpop.f32.mrb[0].mxu0
      %v2543 = vpop.f32.mrb[0].mxu0
      %2544 = vdwg.mxu0
      %2545 = vmatprep.subr.bf16.mxu0 0
      %2546 = vmatpush1.bf16.msra.mxu0 %v2454
      %2547 = vmatprep.subr.bf16.mxu0 0
      %2548 = vmatpush1.bf16.msra.mxu0 %v2457
      %2549 = vmatprep.subr.bf16.mxu0 0
      %2550 = vmatpush1.bf16.msra.mxu0 %v2460
      %2551 = vmatprep.subr.bf16.mxu0 0
      %2552 = vmatpush1.bf16.msra.mxu0 %v2463
      %2553 = vmatprep.subr.bf16.mxu0 0
      %2554 = vmatpush1.bf16.msra.mxu0 %v2466
      %2555 = vmatprep.subr.bf16.mxu0 0
      %2556 = vmatpush1.bf16.msra.mxu0 %v2469
      %2557 = vmatprep.subr.bf16.mxu0 0
      %2558 = vmatpush1.bf16.msra.mxu0 %v2472
      %2559 = vmatprep.subr.bf16.mxu0 0
      %2560 = vmatpush1.bf16.msra.mxu0 %v2475
      %2561 = vmatprep.subr.bf16.mxu0 0
      %2562 = vmatpush1.bf16.msra.mxu0 0
      %2563 = vmatprep.subr.bf16.mxu0 0
      %2564 = vmatpush1.bf16.msra.mxu0 0
      %2565 = vmatprep.subr.bf16.mxu0 0
      %2566 = vmatpush1.bf16.msra.mxu0 0
      %2567 = vmatprep.subr.bf16.mxu0 0
      %2568 = vmatpush1.bf16.msra.mxu0 0
      %2569 = vmatprep.subr.bf16.mxu0 0
      %2570 = vmatpush1.bf16.msra.mxu0 0
      %2571 = vmatprep.subr.bf16.mxu0 0
      %2572 = vmatpush1.bf16.msra.mxu0 0
      %2573 = vmatprep.subr.bf16.mxu0 0
      %2574 = vmatpush1.bf16.msra.mxu0 0
      %2575 = vmatprep.subr.bf16.mxu0 0
      %2576 = vmatpush1.bf16.msra.mxu0 0
      %2577 = vmatprep.mubr.bf16.mxu0 0
      %2578 = vmatmul.mubr.bf16.gmra.mrb[0].mxu0 %v2450
      %v2579 = vpop.f32.mrb[0].mxu0
      %v2580 = vadd.f32 %v2490, %v2579
      %v2581 = vpop.f32.mrb[0].mxu0
      %v2582 = vpop.f32.mrb[0].mxu0
      %v2583 = vadd.f32 %v2490, %v2582
      %v2584 = vpop.f32.mrb[0].mxu0
      %2585 = vmatprep.mubr.bf16.mxu0 0
      %2586 = vmatmul.mubr.bf16.gmra.mrb[0].mxu0 %v2451
      %v2587 = vpop.f32.mrb[0].mxu0
      %v2588 = vadd.f32 %v2490, %v2587
      %v2589 = vpop.f32.mrb[0].mxu0
      %v2590 = vpop.f32.mrb[0].mxu0
      %v2591 = vpop.f32.mrb[0].mxu0
      %2592 = vdwg.mxu0
      %v2593 = vpack.c.bf16 %v2533, %v2529
      %v2594 = vpack.c.bf16 %v2539, %v2539
      %v2595 = vpack.c.bf16 %v2535, %v2531
      %v2596 = vpack.c.bf16 %v2541, %v2541
      %v2598 = vsel %vm1203, %v2593, 0
      %v2601 = vsel %vm1203, %v2594, 0
      %v2604 = vsel %vm1203, %v2595, 0
      %v2607 = vsel %vm1203, %v2596, 0
      %2609 = vmatprep.subr.bf16.mxu0 0
      %2610 = vmatpush1.bf16.xpose.msra.mxu0 %v2604
      %2611 = vmatprep.subr.bf16.mxu0 0
      %2612 = vmatpush1.bf16.xpose.msra.mxu0 %v2607
      %2613 = vmatprep.subr.bf16.mxu0 0
      %2614 = vmatpush1.bf16.xpose.msra.mxu0 0
      %2615 = vmatprep.subr.bf16.mxu0 0
      %2616 = vmatpush1.bf16.xpose.msra.mxu0 0
      %2617 = vmatprep.subr.bf16.mxu0 0
      %2618 = vmatpush1.bf16.xpose.msra.mxu0 0
      %2619 = vmatprep.subr.bf16.mxu0 0
      %2620 = vmatpush1.bf16.xpose.msra.mxu0 0
      %2621 = vmatprep.subr.bf16.mxu0 0
      %2622 = vmatpush1.bf16.xpose.msra.mxu0 0
      %2623 = vmatprep.subr.bf16.mxu0 0
      %2624 = vmatpush1.bf16.xpose.msra.mxu0 0
      %2625 = vmatprep.subr.bf16.mxu0 0
      %2626 = vmatpush1.bf16.xpose.msra.mxu0 0
      %2627 = vmatprep.subr.bf16.mxu0 0
      %2628 = vmatpush1.bf16.xpose.msra.mxu0 0
      %2629 = vmatprep.subr.bf16.mxu0 0
      %2630 = vmatpush1.bf16.xpose.msra.mxu0 0
      %2631 = vmatprep.subr.bf16.mxu0 0
      %2632 = vmatpush1.bf16.xpose.msra.mxu0 0
      %2633 = vmatprep.subr.bf16.mxu0 0
      %2634 = vmatpush1.bf16.xpose.msra.mxu0 0
      %2635 = vmatprep.subr.bf16.mxu0 0
      %2636 = vmatpush1.bf16.xpose.msra.mxu0 0
      %2637 = vmatprep.subr.bf16.mxu0 0
      %2638 = vmatpush1.bf16.xpose.msra.mxu0 0
      %2639 = vmatprep.subr.bf16.mxu0 0
      %2640 = vmatpush1.bf16.xpose.msra.mxu0 0
      %2641 = vmatprep.mubr.bf16.mxu0 0
      %2642 = vmatmul.mubr.bf16.gmra.mrb[0].mxu0 %v2598
      %v2643 = vpop.f32.mrb[0].mxu0
      %v2644 = vadd.f32 0.0, %v2643
      %v2645 = vpop.f32.mrb[0].mxu0
      %v2646 = vpop.f32.mrb[0].mxu0
      %v2647 = vadd.f32 0.0, %v2646
      %v2648 = vpop.f32.mrb[0].mxu0
      %2649 = vmatprep.mubr.bf16.mxu0 0
      %2650 = vmatmul.mubr.bf16.gmra.mrb[0].mxu0 %v2601
      %v2651 = vpop.f32.mrb[0].mxu0
      %v2652 = vadd.f32 0.0, %v2651
      %v2653 = vpop.f32.mrb[0].mxu0
      %v2654 = vpop.f32.mrb[0].mxu0
      %v2655 = vpop.f32.mrb[0].mxu0
      %2656 = vdwg.mxu0
      %v2657 = vmul.f32 %v2644, 0.17677669
      %v2658 = vmul.f32 %v2647, 0.17677669
      %v2659 = vmul.f32 %v2652, 0.17677669
      %v2660 = vsel %vm1267, %v2657, -inf
      %2661 = vmax.xlane.f32.xlu0 %v2660
      %v2662 = vpop.xlane.xlu0 %2661
      %v2663 = vsel %vm1267, %v2658, -inf
      %2664 = vmax.xlane.f32.xlu0 %v2663
      %v2665 = vpop.xlane.xlu0 %2664
      %v2666 = vsel %vm1274, %v2659, -inf
      %2667 = vmax.xlane.f32.xlu0 %v2666
      %v2668 = vpop.xlane.xlu0 %2667
      %v2669 = vsub.f32 %v2657, %v2662
      %v2670 = vsub.f32 %v2658, %v2665
      %v2671 = vsub.f32 %v2659, %v2668
      %v2672 = vmul.f32 %v2669, 1.442695
      %v2673 = vpow.pop %v2672
      %v2674 = vmul.f32 %v2670, 1.442695
      %v2675 = vpow.pop %v2674
      %v2676 = vmul.f32 %v2671, 1.442695
      %v2677 = vpow.pop %v2676
      %v2678 = vsel %vm1267, %v2673, 0.0
      %2679 = vadd.xlane.f32.xlu0 %v2678
      %v2680 = vpop.xlane.xlu0 %2679
      %v2681 = vsel %vm1267, %v2675, 0.0
      %2682 = vadd.xlane.f32.xlu0 %v2681
      %v2683 = vpop.xlane.xlu0 %2682
      %v2684 = vsel %vm1274, %v2677, 0.0
      %2685 = vadd.xlane.f32.xlu0 %v2684
      %v2686 = vpop.xlane.xlu0 %2685
      %v2687 = vrcp.pop %v2680
      %v2688 = vrcp.pop %v2683
      %v2689 = vrcp.pop %v2686
      %v2690 = vmul.f32 %v2673, %v2687
      %v2691 = vmul.f32 %v2675, %v2688
      %v2692 = vmul.f32 %v2677, %v2689
      %v2693 = vpack.c.bf16 %v2691, %v2690
      %v2694 = vpack.c.bf16 %v2692, %v2692
      %v2695 = vpack.c.bf16 %v2583, %v2580
      %v2696 = vpack.c.bf16 %v2588, %v2588
      %v2698 = vsel %vm1267, %v2693, 0
      %v2701 = vsel %vm1267, %v2694, 0
      %v2704 = vand.u32 %v2696, %v1313
      %2706 = vmatprep.subr.bf16.mxu0 0
      %2707 = vmatpush1.bf16.msra.mxu0 %v2695
      %2708 = vmatprep.subr.bf16.mxu0 0
      %2709 = vmatpush1.bf16.msra.mxu0 %v2704
      %2710 = vmatprep.subr.bf16.mxu0 0
      %2711 = vmatpush1.bf16.msra.mxu0 0
      %2712 = vmatprep.subr.bf16.mxu0 0
      %2713 = vmatpush1.bf16.msra.mxu0 0
      %2714 = vmatprep.subr.bf16.mxu0 0
      %2715 = vmatpush1.bf16.msra.mxu0 0
      %2716 = vmatprep.subr.bf16.mxu0 0
      %2717 = vmatpush1.bf16.msra.mxu0 0
      %2718 = vmatprep.subr.bf16.mxu0 0
      %2719 = vmatpush1.bf16.msra.mxu0 0
      %2720 = vmatprep.subr.bf16.mxu0 0
      %2721 = vmatpush1.bf16.msra.mxu0 0
      %2722 = vmatprep.subr.bf16.mxu0 0
      %2723 = vmatpush1.bf16.msra.mxu0 0
      %2724 = vmatprep.subr.bf16.mxu0 0
      %2725 = vmatpush1.bf16.msra.mxu0 0
      %2726 = vmatprep.subr.bf16.mxu0 0
      %2727 = vmatpush1.bf16.msra.mxu0 0
      %2728 = vmatprep.subr.bf16.mxu0 0
      %2729 = vmatpush1.bf16.msra.mxu0 0
      %2730 = vmatprep.subr.bf16.mxu0 0
      %2731 = vmatpush1.bf16.msra.mxu0 0
      %2732 = vmatprep.subr.bf16.mxu0 0
      %2733 = vmatpush1.bf16.msra.mxu0 0
      %2734 = vmatprep.subr.bf16.mxu0 0
      %2735 = vmatpush1.bf16.msra.mxu0 0
      %2736 = vmatprep.subr.bf16.mxu0 0
      %2737 = vmatpush1.bf16.msra.mxu0 0
      %2738 = vmatprep.mubr.bf16.mxu0 0
      %2739 = vmatmul.mubr.bf16.gmra.mrb[0].mxu0 %v2698
      %v2740 = vpop.f32.mrb[0].mxu0
      %v2741 = vadd.f32 0.0, %v2740
      %v2742 = vpop.f32.mrb[0].mxu0
      %v2743 = vpop.f32.mrb[0].mxu0
      %v2744 = vadd.f32 0.0, %v2743
      %v2745 = vpop.f32.mrb[0].mxu0
      %2746 = vmatprep.mubr.bf16.mxu0 0
      %2747 = vmatmul.mubr.bf16.gmra.mrb[0].mxu0 %v2701
      %v2748 = vpop.f32.mrb[0].mxu0
      %v2749 = vadd.f32 0.0, %v2748
      %v2750 = vpop.f32.mrb[0].mxu0
      %v2751 = vpop.f32.mrb[0].mxu0
      %v2752 = vpop.f32.mrb[0].mxu0
      %2753 = vdwg.mxu0
      %2756 = vrot.lane.b32.xlu0 %v2593, 96
      %v2757 = vpop.permute.xlu0 %2756
      %2758 = vrot.lane.b32.xlu0 %v2594, 96
      %v2759 = vpop.permute.xlu0 %2758
      %2762 = vrot.lane.b32.xlu0 %v2595, 96
      %v2763 = vpop.permute.xlu0 %2762
      %2764 = vrot.lane.b32.xlu0 %v2596, 96
      %v2765 = vpop.permute.xlu0 %2764
      %v2767 = vsel %vm1203, %v2757, 0
      %v2770 = vsel %vm1203, %v2759, 0
      %v2773 = vsel %vm1203, %v2763, 0
      %v2776 = vsel %vm1203, %v2765, 0
      %2778 = vmatprep.subr.bf16.mxu0 0
      %2779 = vmatpush1.bf16.xpose.msra.mxu0 %v2773
      %2780 = vmatprep.subr.bf16.mxu0 0
      %2781 = vmatpush1.bf16.xpose.msra.mxu0 %v2776
      %2782 = vmatprep.subr.bf16.mxu0 0
      %2783 = vmatpush1.bf16.xpose.msra.mxu0 0
      %2784 = vmatprep.subr.bf16.mxu0 0
      %2785 = vmatpush1.bf16.xpose.msra.mxu0 0
      %2786 = vmatprep.subr.bf16.mxu0 0
      %2787 = vmatpush1.bf16.xpose.msra.mxu0 0
      %2788 = vmatprep.subr.bf16.mxu0 0
      %2789 = vmatpush1.bf16.xpose.msra.mxu0 0
      %2790 = vmatprep.subr.bf16.mxu0 0
      %2791 = vmatpush1.bf16.xpose.msra.mxu0 0
      %2792 = vmatprep.subr.bf16.mxu0 0
      %2793 = vmatpush1.bf16.xpose.msra.mxu0 0
      %2794 = vmatprep.subr.bf16.mxu0 0
      %2795 = vmatpush1.bf16.xpose.msra.mxu0 0
      %2796 = vmatprep.subr.bf16.mxu0 0
      %2797 = vmatpush1.bf16.xpose.msra.mxu0 0
      %2798 = vmatprep.subr.bf16.mxu0 0
      %2799 = vmatpush1.bf16.xpose.msra.mxu0 0
      %2800 = vmatprep.subr.bf16.mxu0 0
      %2801 = vmatpush1.bf16.xpose.msra.mxu0 0
      %2802 = vmatprep.subr.bf16.mxu0 0
      %2803 = vmatpush1.bf16.xpose.msra.mxu0 0
      %2804 = vmatprep.subr.bf16.mxu0 0
      %2805 = vmatpush1.bf16.xpose.msra.mxu0 0
      %2806 = vmatprep.subr.bf16.mxu0 0
      %2807 = vmatpush1.bf16.xpose.msra.mxu0 0
      %2808 = vmatprep.subr.bf16.mxu0 0
      %2809 = vmatpush1.bf16.xpose.msra.mxu0 0
      %2810 = vmatprep.mubr.bf16.mxu0 0
      %2811 = vmatmul.mubr.bf16.gmra.mrb[0].mxu0 %v2767
      %v2812 = vpop.f32.mrb[0].mxu0
      %v2813 = vadd.f32 0.0, %v2812
      %v2814 = vpop.f32.mrb[0].mxu0
      %v2815 = vpop.f32.mrb[0].mxu0
      %v2816 = vadd.f32 0.0, %v2815
      %v2817 = vpop.f32.mrb[0].mxu0
      %2818 = vmatprep.mubr.bf16.mxu0 0
      %2819 = vmatmul.mubr.bf16.gmra.mrb[0].mxu0 %v2770
      %v2820 = vpop.f32.mrb[0].mxu0
      %v2821 = vadd.f32 0.0, %v2820
      %v2822 = vpop.f32.mrb[0].mxu0
      %v2823 = vpop.f32.mrb[0].mxu0
      %v2824 = vpop.f32.mrb[0].mxu0
      %2825 = vdwg.mxu0
      %v2826 = vmul.f32 %v2813, 0.17677669
      %v2827 = vmul.f32 %v2816, 0.17677669
      %v2828 = vmul.f32 %v2821, 0.17677669
      %v2829 = vsel %vm1267, %v2826, -inf
      %2830 = vmax.xlane.f32.xlu0 %v2829
      %v2831 = vpop.xlane.xlu0 %2830
      %v2832 = vsel %vm1267, %v2827, -inf
      %2833 = vmax.xlane.f32.xlu0 %v2832
      %v2834 = vpop.xlane.xlu0 %2833
      %v2835 = vsel %vm1274, %v2828, -inf
      %2836 = vmax.xlane.f32.xlu0 %v2835
      %v2837 = vpop.xlane.xlu0 %2836
      %v2838 = vsub.f32 %v2826, %v2831
      %v2839 = vsub.f32 %v2827, %v2834
      %v2840 = vsub.f32 %v2828, %v2837
      %v2841 = vmul.f32 %v2838, 1.442695
      %v2842 = vpow.pop %v2841
      %v2843 = vmul.f32 %v2839, 1.442695
      %v2844 = vpow.pop %v2843
      %v2845 = vmul.f32 %v2840, 1.442695
      %v2846 = vpow.pop %v2845
      %v2847 = vsel %vm1267, %v2842, 0.0
      %2848 = vadd.xlane.f32.xlu0 %v2847
      %v2849 = vpop.xlane.xlu0 %2848
      %v2850 = vsel %vm1267, %v2844, 0.0
      %2851 = vadd.xlane.f32.xlu0 %v2850
      %v2852 = vpop.xlane.xlu0 %2851
      %v2853 = vsel %vm1274, %v2846, 0.0
      %2854 = vadd.xlane.f32.xlu0 %v2853
      %v2855 = vpop.xlane.xlu0 %2854
      %v2856 = vrcp.pop %v2849
      %v2857 = vrcp.pop %v2852
      %v2858 = vrcp.pop %v2855
      %v2859 = vmul.f32 %v2842, %v2856
      %v2860 = vmul.f32 %v2844, %v2857
      %v2861 = vmul.f32 %v2846, %v2858
      %v2862 = vpack.c.bf16 %v2860, %v2859
      %v2863 = vpack.c.bf16 %v2861, %v2861
      %2866 = vrot.lane.b32.xlu0 %v2695, 96
      %v2867 = vpop.permute.xlu0 %2866
      %2868 = vrot.lane.b32.xlu0 %v2696, 96
      %v2869 = vpop.permute.xlu0 %2868
      %v2872 = vsel %vm1267, %v2862, 0
      %v2875 = vsel %vm1267, %v2863, 0
      %v2878 = vand.u32 %v2869, %v1313
      %2880 = vmatprep.subr.bf16.mxu0 0
      %2881 = vmatpush1.bf16.msra.mxu0 %v2867
      %2882 = vmatprep.subr.bf16.mxu0 0
      %2883 = vmatpush1.bf16.msra.mxu0 %v2878
      %2884 = vmatprep.subr.bf16.mxu0 0
      %2885 = vmatpush1.bf16.msra.mxu0 0
      %2886 = vmatprep.subr.bf16.mxu0 0
      %2887 = vmatpush1.bf16.msra.mxu0 0
      %2888 = vmatprep.subr.bf16.mxu0 0
      %2889 = vmatpush1.bf16.msra.mxu0 0
      %2890 = vmatprep.subr.bf16.mxu0 0
      %2891 = vmatpush1.bf16.msra.mxu0 0
      %2892 = vmatprep.subr.bf16.mxu0 0
      %2893 = vmatpush1.bf16.msra.mxu0 0
      %2894 = vmatprep.subr.bf16.mxu0 0
      %2895 = vmatpush1.bf16.msra.mxu0 0
      %2896 = vmatprep.subr.bf16.mxu0 0
      %2897 = vmatpush1.bf16.msra.mxu0 0
      %2898 = vmatprep.subr.bf16.mxu0 0
      %2899 = vmatpush1.bf16.msra.mxu0 0
      %2900 = vmatprep.subr.bf16.mxu0 0
      %2901 = vmatpush1.bf16.msra.mxu0 0
      %2902 = vmatprep.subr.bf16.mxu0 0
      %2903 = vmatpush1.bf16.msra.mxu0 0
      %2904 = vmatprep.subr.bf16.mxu0 0
      %2905 = vmatpush1.bf16.msra.mxu0 0
      %2906 = vmatprep.subr.bf16.mxu0 0
      %2907 = vmatpush1.bf16.msra.mxu0 0
      %2908 = vmatprep.subr.bf16.mxu0 0
      %2909 = vmatpush1.bf16.msra.mxu0 0
      %2910 = vmatprep.subr.bf16.mxu0 0
      %2911 = vmatpush1.bf16.msra.mxu0 0
      %2912 = vmatprep.mubr.bf16.mxu0 0
      %2913 = vmatmul.mubr.bf16.gmra.mrb[0].mxu0 %v2872
      %v2914 = vpop.f32.mrb[0].mxu0
      %v2915 = vadd.f32 0.0, %v2914
      %v2916 = vpop.f32.mrb[0].mxu0
      %v2917 = vpop.f32.mrb[0].mxu0
      %v2918 = vadd.f32 0.0, %v2917
      %v2919 = vpop.f32.mrb[0].mxu0
      %2920 = vmatprep.mubr.bf16.mxu0 0
      %2921 = vmatmul.mubr.bf16.gmra.mrb[0].mxu0 %v2875
      %v2922 = vpop.f32.mrb[0].mxu0
      %v2923 = vadd.f32 0.0, %v2922
      %v2924 = vpop.f32.mrb[0].mxu0
      %v2925 = vpop.f32.mrb[0].mxu0
      %v2926 = vpop.f32.mrb[0].mxu0
      %2927 = vdwg.mxu0
      %2928 = vrot.lane.b32.xlu0 %v2593, 64
      %v2929 = vpop.permute.xlu0 %2928
      %2930 = vrot.lane.b32.xlu0 %v2594, 64
      %v2931 = vpop.permute.xlu0 %2930
      %2932 = vrot.lane.b32.xlu0 %v2595, 64
      %v2933 = vpop.permute.xlu0 %2932
      %2934 = vrot.lane.b32.xlu0 %v2596, 64
      %v2935 = vpop.permute.xlu0 %2934
      %v2937 = vsel %vm1203, %v2929, 0
      %v2940 = vsel %vm1203, %v2931, 0
      %v2943 = vsel %vm1203, %v2933, 0
      %v2946 = vsel %vm1203, %v2935, 0
      %2948 = vmatprep.subr.bf16.mxu0 0
      %2949 = vmatpush1.bf16.xpose.msra.mxu0 %v2943
      %2950 = vmatprep.subr.bf16.mxu0 0
      %2951 = vmatpush1.bf16.xpose.msra.mxu0 %v2946
      %2952 = vmatprep.subr.bf16.mxu0 0
      %2953 = vmatpush1.bf16.xpose.msra.mxu0 0
      %2954 = vmatprep.subr.bf16.mxu0 0
      %2955 = vmatpush1.bf16.xpose.msra.mxu0 0
      %2956 = vmatprep.subr.bf16.mxu0 0
      %2957 = vmatpush1.bf16.xpose.msra.mxu0 0
      %2958 = vmatprep.subr.bf16.mxu0 0
      %2959 = vmatpush1.bf16.xpose.msra.mxu0 0
      %2960 = vmatprep.subr.bf16.mxu0 0
      %2961 = vmatpush1.bf16.xpose.msra.mxu0 0
      %2962 = vmatprep.subr.bf16.mxu0 0
      %2963 = vmatpush1.bf16.xpose.msra.mxu0 0
      %2964 = vmatprep.subr.bf16.mxu0 0
      %2965 = vmatpush1.bf16.xpose.msra.mxu0 0
      %2966 = vmatprep.subr.bf16.mxu0 0
      %2967 = vmatpush1.bf16.xpose.msra.mxu0 0
      %2968 = vmatprep.subr.bf16.mxu0 0
      %2969 = vmatpush1.bf16.xpose.msra.mxu0 0
      %2970 = vmatprep.subr.bf16.mxu0 0
      %2971 = vmatpush1.bf16.xpose.msra.mxu0 0
      %2972 = vmatprep.subr.bf16.mxu0 0
      %2973 = vmatpush1.bf16.xpose.msra.mxu0 0
      %2974 = vmatprep.subr.bf16.mxu0 0
      %2975 = vmatpush1.bf16.xpose.msra.mxu0 0
      %2976 = vmatprep.subr.bf16.mxu0 0
      %2977 = vmatpush1.bf16.xpose.msra.mxu0 0
      %2978 = vmatprep.subr.bf16.mxu0 0
      %2979 = vmatpush1.bf16.xpose.msra.mxu0 0
      %2980 = vmatprep.mubr.bf16.mxu0 0
      %2981 = vmatmul.mubr.bf16.gmra.mrb[0].mxu0 %v2937
      %v2982 = vpop.f32.mrb[0].mxu0
      %v2983 = vadd.f32 0.0, %v2982
      %v2984 = vpop.f32.mrb[0].mxu0
      %v2985 = vpop.f32.mrb[0].mxu0
      %v2986 = vadd.f32 0.0, %v2985
      %v2987 = vpop.f32.mrb[0].mxu0
      %2988 = vmatprep.mubr.bf16.mxu0 0
      %2989 = vmatmul.mubr.bf16.gmra.mrb[0].mxu0 %v2940
      %v2990 = vpop.f32.mrb[0].mxu0
      %v2991 = vadd.f32 0.0, %v2990
      %v2992 = vpop.f32.mrb[0].mxu0
      %v2993 = vpop.f32.mrb[0].mxu0
      %v2994 = vpop.f32.mrb[0].mxu0
      %2995 = vdwg.mxu0
      %v2996 = vmul.f32 %v2983, 0.17677669
      %v2997 = vmul.f32 %v2986, 0.17677669
      %v2998 = vmul.f32 %v2991, 0.17677669
      %v2999 = vsel %vm1267, %v2996, -inf
      %3000 = vmax.xlane.f32.xlu0 %v2999
      %v3001 = vpop.xlane.xlu0 %3000
      %v3002 = vsel %vm1267, %v2997, -inf
      %3003 = vmax.xlane.f32.xlu0 %v3002
      %v3004 = vpop.xlane.xlu0 %3003
      %v3005 = vsel %vm1274, %v2998, -inf
      %3006 = vmax.xlane.f32.xlu0 %v3005
      %v3007 = vpop.xlane.xlu0 %3006
      %v3008 = vsub.f32 %v2996, %v3001
      %v3009 = vsub.f32 %v2997, %v3004
      %v3010 = vsub.f32 %v2998, %v3007
      %v3011 = vmul.f32 %v3008, 1.442695
      %v3012 = vpow.pop %v3011
      %v3013 = vmul.f32 %v3009, 1.442695
      %v3014 = vpow.pop %v3013
      %v3015 = vmul.f32 %v3010, 1.442695
      %v3016 = vpow.pop %v3015
      %v3017 = vsel %vm1267, %v3012, 0.0
      %3018 = vadd.xlane.f32.xlu0 %v3017
      %v3019 = vpop.xlane.xlu0 %3018
      %v3020 = vsel %vm1267, %v3014, 0.0
      %3021 = vadd.xlane.f32.xlu0 %v3020
      %v3022 = vpop.xlane.xlu0 %3021
      %v3023 = vsel %vm1274, %v3016, 0.0
      %3024 = vadd.xlane.f32.xlu0 %v3023
      %v3025 = vpop.xlane.xlu0 %3024
      %v3026 = vrcp.pop %v3019
      %v3027 = vrcp.pop %v3022
      %v3028 = vrcp.pop %v3025
      %v3029 = vmul.f32 %v3012, %v3026
      %v3030 = vmul.f32 %v3014, %v3027
      %v3031 = vmul.f32 %v3016, %v3028
      %v3032 = vpack.c.bf16 %v3030, %v3029
      %v3033 = vpack.c.bf16 %v3031, %v3031
      %3034 = vrot.lane.b32.xlu0 %v2695, 64
      %v3035 = vpop.permute.xlu0 %3034
      %3036 = vrot.lane.b32.xlu0 %v2696, 64
      %v3037 = vpop.permute.xlu0 %3036
      %v3040 = vsel %vm1267, %v3032, 0
      %v3043 = vsel %vm1267, %v3033, 0
      %v3046 = vand.u32 %v3037, %v1313
      %3048 = vmatprep.subr.bf16.mxu0 0
      %3049 = vmatpush1.bf16.msra.mxu0 %v3035
      %3050 = vmatprep.subr.bf16.mxu0 0
      %3051 = vmatpush1.bf16.msra.mxu0 %v3046
      %3052 = vmatprep.subr.bf16.mxu0 0
      %3053 = vmatpush1.bf16.msra.mxu0 0
      %3054 = vmatprep.subr.bf16.mxu0 0
      %3055 = vmatpush1.bf16.msra.mxu0 0
      %3056 = vmatprep.subr.bf16.mxu0 0
      %3057 = vmatpush1.bf16.msra.mxu0 0
      %3058 = vmatprep.subr.bf16.mxu0 0
      %3059 = vmatpush1.bf16.msra.mxu0 0
      %3060 = vmatprep.subr.bf16.mxu0 0
      %3061 = vmatpush1.bf16.msra.mxu0 0
      %3062 = vmatprep.subr.bf16.mxu0 0
      %3063 = vmatpush1.bf16.msra.mxu0 0
      %3064 = vmatprep.subr.bf16.mxu0 0
      %3065 = vmatpush1.bf16.msra.mxu0 0
      %3066 = vmatprep.subr.bf16.mxu0 0
      %3067 = vmatpush1.bf16.msra.mxu0 0
      %3068 = vmatprep.subr.bf16.mxu0 0
      %3069 = vmatpush1.bf16.msra.mxu0 0
      %3070 = vmatprep.subr.bf16.mxu0 0
      %3071 = vmatpush1.bf16.msra.mxu0 0
      %3072 = vmatprep.subr.bf16.mxu0 0
      %3073 = vmatpush1.bf16.msra.mxu0 0
      %3074 = vmatprep.subr.bf16.mxu0 0
      %3075 = vmatpush1.bf16.msra.mxu0 0
      %3076 = vmatprep.subr.bf16.mxu0 0
      %3077 = vmatpush1.bf16.msra.mxu0 0
      %3078 = vmatprep.subr.bf16.mxu0 0
      %3079 = vmatpush1.bf16.msra.mxu0 0
      %3080 = vmatprep.mubr.bf16.mxu0 0
      %3081 = vmatmul.mubr.bf16.gmra.mrb[0].mxu0 %v3040
      %v3082 = vpop.f32.mrb[0].mxu0
      %v3083 = vadd.f32 0.0, %v3082
      %v3084 = vpop.f32.mrb[0].mxu0
      %v3085 = vpop.f32.mrb[0].mxu0
      %v3086 = vadd.f32 0.0, %v3085
      %v3087 = vpop.f32.mrb[0].mxu0
      %3088 = vmatprep.mubr.bf16.mxu0 0
      %3089 = vmatmul.mubr.bf16.gmra.mrb[0].mxu0 %v3043
      %v3090 = vpop.f32.mrb[0].mxu0
      %v3091 = vadd.f32 0.0, %v3090
      %v3092 = vpop.f32.mrb[0].mxu0
      %v3093 = vpop.f32.mrb[0].mxu0
      %v3094 = vpop.f32.mrb[0].mxu0
      %3095 = vdwg.mxu0
      %3096 = vrot.lane.b32.xlu0 %v2593, 32
      %v3097 = vpop.permute.xlu0 %3096
      %3098 = vrot.lane.b32.xlu0 %v2594, 32
      %v3099 = vpop.permute.xlu0 %3098
      %3100 = vrot.lane.b32.xlu0 %v2595, 32
      %v3101 = vpop.permute.xlu0 %3100
      %3102 = vrot.lane.b32.xlu0 %v2596, 32
      %v3103 = vpop.permute.xlu0 %3102
      %v3105 = vsel %vm1203, %v3097, 0
      %v3108 = vsel %vm1203, %v3099, 0
      %v3111 = vsel %vm1203, %v3101, 0
      %v3114 = vsel %vm1203, %v3103, 0
      %3116 = vmatprep.subr.bf16.mxu0 0
      %3117 = vmatpush1.bf16.xpose.msra.mxu0 %v3111
      %3118 = vmatprep.subr.bf16.mxu0 0
      %3119 = vmatpush1.bf16.xpose.msra.mxu0 %v3114
      %3120 = vmatprep.subr.bf16.mxu0 0
      %3121 = vmatpush1.bf16.xpose.msra.mxu0 0
      %3122 = vmatprep.subr.bf16.mxu0 0
      %3123 = vmatpush1.bf16.xpose.msra.mxu0 0
      %3124 = vmatprep.subr.bf16.mxu0 0
      %3125 = vmatpush1.bf16.xpose.msra.mxu0 0
      %3126 = vmatprep.subr.bf16.mxu0 0
      %3127 = vmatpush1.bf16.xpose.msra.mxu0 0
      %3128 = vmatprep.subr.bf16.mxu0 0
      %3129 = vmatpush1.bf16.xpose.msra.mxu0 0
      %3130 = vmatprep.subr.bf16.mxu0 0
      %3131 = vmatpush1.bf16.xpose.msra.mxu0 0
      %3132 = vmatprep.subr.bf16.mxu0 0
      %3133 = vmatpush1.bf16.xpose.msra.mxu0 0
      %3134 = vmatprep.subr.bf16.mxu0 0
      %3135 = vmatpush1.bf16.xpose.msra.mxu0 0
      %3136 = vmatprep.subr.bf16.mxu0 0
      %3137 = vmatpush1.bf16.xpose.msra.mxu0 0
      %3138 = vmatprep.subr.bf16.mxu0 0
      %3139 = vmatpush1.bf16.xpose.msra.mxu0 0
      %3140 = vmatprep.subr.bf16.mxu0 0
      %3141 = vmatpush1.bf16.xpose.msra.mxu0 0
      %3142 = vmatprep.subr.bf16.mxu0 0
      %3143 = vmatpush1.bf16.xpose.msra.mxu0 0
      %3144 = vmatprep.subr.bf16.mxu0 0
      %3145 = vmatpush1.bf16.xpose.msra.mxu0 0
      %3146 = vmatprep.subr.bf16.mxu0 0
      %3147 = vmatpush1.bf16.xpose.msra.mxu0 0
      %3148 = vmatprep.mubr.bf16.mxu0 0
      %3149 = vmatmul.mubr.bf16.gmra.mrb[0].mxu0 %v3105
      %v3150 = vpop.f32.mrb[0].mxu0
      %v3151 = vadd.f32 0.0, %v3150
      %v3152 = vpop.f32.mrb[0].mxu0
      %v3153 = vpop.f32.mrb[0].mxu0
      %v3154 = vadd.f32 0.0, %v3153
      %v3155 = vpop.f32.mrb[0].mxu0
      %3156 = vmatprep.mubr.bf16.mxu0 0
      %3157 = vmatmul.mubr.bf16.gmra.mrb[0].mxu0 %v3108
      %v3158 = vpop.f32.mrb[0].mxu0
      %v3159 = vadd.f32 0.0, %v3158
      %v3160 = vpop.f32.mrb[0].mxu0
      %v3161 = vpop.f32.mrb[0].mxu0
      %v3162 = vpop.f32.mrb[0].mxu0
      %3163 = vdwg.mxu0
      %v3164 = vmul.f32 %v3151, 0.17677669
      %v3165 = vmul.f32 %v3154, 0.17677669
      %v3166 = vmul.f32 %v3159, 0.17677669
      %v3167 = vsel %vm1267, %v3164, -inf
      %3168 = vmax.xlane.f32.xlu0 %v3167
      %v3169 = vpop.xlane.xlu0 %3168
      %v3170 = vsel %vm1267, %v3165, -inf
      %3171 = vmax.xlane.f32.xlu0 %v3170
      %v3172 = vpop.xlane.xlu0 %3171
      %v3173 = vsel %vm1274, %v3166, -inf
      %3174 = vmax.xlane.f32.xlu0 %v3173
      %v3175 = vpop.xlane.xlu0 %3174
      %v3176 = vsub.f32 %v3164, %v3169
      %v3177 = vsub.f32 %v3165, %v3172
      %v3178 = vsub.f32 %v3166, %v3175
      %v3179 = vmul.f32 %v3176, 1.442695
      %v3180 = vpow.pop %v3179
      %v3181 = vmul.f32 %v3177, 1.442695
      %v3182 = vpow.pop %v3181
      %v3183 = vmul.f32 %v3178, 1.442695
      %v3184 = vpow.pop %v3183
      %v3185 = vsel %vm1267, %v3180, 0.0
      %3186 = vadd.xlane.f32.xlu0 %v3185
      %v3187 = vpop.xlane.xlu0 %3186
      %v3188 = vsel %vm1267, %v3182, 0.0
      %3189 = vadd.xlane.f32.xlu0 %v3188
      %v3190 = vpop.xlane.xlu0 %3189
      %v3191 = vsel %vm1274, %v3184, 0.0
      %3192 = vadd.xlane.f32.xlu0 %v3191
      %v3193 = vpop.xlane.xlu0 %3192
      %v3194 = vrcp.pop %v3187
      %v3195 = vrcp.pop %v3190
      %v3196 = vrcp.pop %v3193
      %v3197 = vmul.f32 %v3180, %v3194
      %v3198 = vmul.f32 %v3182, %v3195
      %v3199 = vmul.f32 %v3184, %v3196
      %v3200 = vpack.c.bf16 %v3198, %v3197
      %v3201 = vpack.c.bf16 %v3199, %v3199
      %3202 = vrot.lane.b32.xlu0 %v2695, 32
      %v3203 = vpop.permute.xlu0 %3202
      %3204 = vrot.lane.b32.xlu0 %v2696, 32
      %v3205 = vpop.permute.xlu0 %3204
      %v3208 = vsel %vm1267, %v3200, 0
      %v3211 = vsel %vm1267, %v3201, 0
      %v3214 = vand.u32 %v3205, %v1313
      %3216 = vmatprep.subr.bf16.mxu0 0
      %3217 = vmatpush1.bf16.msra.mxu0 %v3203
      %3218 = vmatprep.subr.bf16.mxu0 0
      %3219 = vmatpush1.bf16.msra.mxu0 %v3214
      %3220 = vmatprep.subr.bf16.mxu0 0
      %3221 = vmatpush1.bf16.msra.mxu0 0
      %3222 = vmatprep.subr.bf16.mxu0 0
      %3223 = vmatpush1.bf16.msra.mxu0 0
      %3224 = vmatprep.subr.bf16.mxu0 0
      %3225 = vmatpush1.bf16.msra.mxu0 0
      %3226 = vmatprep.subr.bf16.mxu0 0
      %3227 = vmatpush1.bf16.msra.mxu0 0
      %3228 = vmatprep.subr.bf16.mxu0 0
      %3229 = vmatpush1.bf16.msra.mxu0 0
      %3230 = vmatprep.subr.bf16.mxu0 0
      %3231 = vmatpush1.bf16.msra.mxu0 0
      %3232 = vmatprep.subr.bf16.mxu0 0
      %3233 = vmatpush1.bf16.msra.mxu0 0
      %3234 = vmatprep.subr.bf16.mxu0 0
      %3235 = vmatpush1.bf16.msra.mxu0 0
      %3236 = vmatprep.subr.bf16.mxu0 0
      %3237 = vmatpush1.bf16.msra.mxu0 0
      %3238 = vmatprep.subr.bf16.mxu0 0
      %3239 = vmatpush1.bf16.msra.mxu0 0
      %3240 = vmatprep.subr.bf16.mxu0 0
      %3241 = vmatpush1.bf16.msra.mxu0 0
      %3242 = vmatprep.subr.bf16.mxu0 0
      %3243 = vmatpush1.bf16.msra.mxu0 0
      %3244 = vmatprep.subr.bf16.mxu0 0
      %3245 = vmatpush1.bf16.msra.mxu0 0
      %3246 = vmatprep.subr.bf16.mxu0 0
      %3247 = vmatpush1.bf16.msra.mxu0 0
      %3248 = vmatprep.mubr.bf16.mxu0 0
      %3249 = vmatmul.mubr.bf16.gmra.mrb[0].mxu0 %v3208
      %v3250 = vpop.f32.mrb[0].mxu0
      %v3251 = vadd.f32 0.0, %v3250
      %v3252 = vpop.f32.mrb[0].mxu0
      %v3253 = vpop.f32.mrb[0].mxu0
      %v3254 = vadd.f32 0.0, %v3253
      %v3255 = vpop.f32.mrb[0].mxu0
      %3256 = vmatprep.mubr.bf16.mxu0 0
      %3257 = vmatmul.mubr.bf16.gmra.mrb[0].mxu0 %v3211
      %v3258 = vpop.f32.mrb[0].mxu0
      %v3259 = vadd.f32 0.0, %v3258
      %v3260 = vpop.f32.mrb[0].mxu0
      %v3261 = vpop.f32.mrb[0].mxu0
      %v3262 = vpop.f32.mrb[0].mxu0
      %3263 = vdwg.mxu0
      %3267 = vrot.lane.b32.xlu0 %v2915, 32
      %v3268 = vpop.permute.xlu0 %3267
      %3269 = vrot.lane.b32.xlu0 %v2918, 32
      %v3270 = vpop.permute.xlu0 %3269
      %3271 = vrot.lane.b32.xlu0 %v2923, 32
      %v3272 = vpop.permute.xlu0 %3271
      %3279 = vrot.lane.b32.xlu0 %v3083, 64
      %v3280 = vpop.permute.xlu0 %3279
      %3281 = vrot.lane.b32.xlu0 %v3086, 64
      %v3282 = vpop.permute.xlu0 %3281
      %3283 = vrot.lane.b32.xlu0 %v3091, 64
      %v3284 = vpop.permute.xlu0 %3283
      %3291 = vrot.lane.b32.xlu0 %v3251, 96
      %v3292 = vpop.permute.xlu0 %3291
      %3293 = vrot.lane.b32.xlu0 %v3254, 96
      %v3294 = vpop.permute.xlu0 %3293
      %3295 = vrot.lane.b32.xlu0 %v3259, 96
      %v3296 = vpop.permute.xlu0 %3295
      %v3300 = vsel %vm1203, %v2741, %v3268
      %v3301 = vsel %vm1203, %v2744, %v3270
      %v3302 = vsel %vm1203, %v2749, %v3272
      %v3303 = vsel %vm1914, %v3300, %v3280
      %v3304 = vsel %vm1914, %v3301, %v3282
      %v3305 = vsel %vm1914, %v3302, %v3284
      %v3306 = vsel %vm1918, %v3303, %v3292
      %v3307 = vsel %vm1918, %v3304, %v3294
      %v3308 = vsel %vm1918, %v3305, %v3296
      %s3309 = scalar_lea.vmem %s9, 128
      %v3310 = vld [vmem:[%s3309] sm:$0xff]
      %v3311 = vld [vmem:[%s3309 + $0x8] sm:$0xff]
      %v3312 = vld [vmem:[%s3309 + $0x10] sm:$0xff]
      %v3313 = vld [vmem:[%s3309 + $0x18] sm:$0xff]
      %v3314 = vld [vmem:[%s3309 + $0x20] sm:$0xff]
      %v3315 = vld [vmem:[%s3309 + $0x28] sm:$0xff]
      %v3316 = vld [vmem:[%s3309 + $0x30] sm:$0xff]
      %v3317 = vld [vmem:[%s3309 + $0x38] sm:$0xff]
      %v3318 = vld [vmem:[%s3309 + $0x40] sm:$0xff]
      %v3319 = vld [vmem:[%s3309 + $0x48] sm:$0xff]
      %v3320 = vld [vmem:[%s3309 + $0x50] sm:$0xff]
      %v3321 = vld [vmem:[%s3309 + $0x58] sm:$0xff]
      %v3322 = vld [vmem:[%s3309 + $0x60] sm:$0xff]
      %v3323 = vld [vmem:[%s3309 + $0x68] sm:$0xff]
      %v3324 = vld [vmem:[%s3309 + $0x70] sm:$0xff]
      %v3325 = vld [vmem:[%s3309 + $0x78] sm:$0xff]
      %v3326 = vpack.c.bf16 %v3307, %v3306
      %v3327 = vpack.c.bf16 %v3308, %v3308
      %v3328 = vpack.c.bf16 %v3311, %v3310
      %v3329 = vpack.c.bf16 %v3313, %v3312
      %v3330 = vpack.c.bf16 %v3315, %v3314
      %v3331 = vpack.c.bf16 %v3317, %v3316
      %v3332 = vpack.c.bf16 %v3319, %v3318
      %v3333 = vpack.c.bf16 %v3321, %v3320
      %v3334 = vpack.c.bf16 %v3323, %v3322
      %v3335 = vpack.c.bf16 %v3325, %v3324
      %3336 = vmatprep.subr.bf16.mxu0 0
      %3337 = vmatpush1.bf16.msra.mxu0 %v3328
      %3338 = vmatprep.subr.bf16.mxu0 0
      %3339 = vmatpush1.bf16.msra.mxu0 %v3329
      %3340 = vmatprep.subr.bf16.mxu0 0
      %3341 = vmatpush1.bf16.msra.mxu0 %v3330
      %3342 = vmatprep.subr.bf16.mxu0 0
      %3343 = vmatpush1.bf16.msra.mxu0 %v3331
      %3344 = vmatprep.subr.bf16.mxu0 0
      %3345 = vmatpush1.bf16.msra.mxu0 %v3332
      %3346 = vmatprep.subr.bf16.mxu0 0
      %3347 = vmatpush1.bf16.msra.mxu0 %v3333
      %3348 = vmatprep.subr.bf16.mxu0 0
      %3349 = vmatpush1.bf16.msra.mxu0 %v3334
      %3350 = vmatprep.subr.bf16.mxu0 0
      %3351 = vmatpush1.bf16.msra.mxu0 %v3335
      %3352 = vmatprep.subr.bf16.mxu0 0
      %3353 = vmatpush1.bf16.msra.mxu0 0
      %3354 = vmatprep.subr.bf16.mxu0 0
      %3355 = vmatpush1.bf16.msra.mxu0 0
      %3356 = vmatprep.subr.bf16.mxu0 0
      %3357 = vmatpush1.bf16.msra.mxu0 0
      %3358 = vmatprep.subr.bf16.mxu0 0
      %3359 = vmatpush1.bf16.msra.mxu0 0
      %3360 = vmatprep.subr.bf16.mxu0 0
      %3361 = vmatpush1.bf16.msra.mxu0 0
      %3362 = vmatprep.subr.bf16.mxu0 0
      %3363 = vmatpush1.bf16.msra.mxu0 0
      %3364 = vmatprep.subr.bf16.mxu0 0
      %3365 = vmatpush1.bf16.msra.mxu0 0
      %3366 = vmatprep.subr.bf16.mxu0 0
      %3367 = vmatpush1.bf16.msra.mxu0 0
      %3368 = vmatprep.mubr.bf16.mxu0 0
      %3369 = vmatmul.mubr.bf16.gmra.mrb[0].mxu0 %v3326
      %v3370 = vpop.f32.mrb[0].mxu0
      %v3371 = vadd.f32 0.0, %v3370
      %v3372 = vpop.f32.mrb[0].mxu0
      %v3373 = vpop.f32.mrb[0].mxu0
      %v3374 = vadd.f32 0.0, %v3373
      %v3375 = vpop.f32.mrb[0].mxu0
      %3376 = vmatprep.mubr.bf16.mxu0 0
      %3377 = vmatmul.mubr.bf16.gmra.mrb[0].mxu0 %v3327
      %v3378 = vpop.f32.mrb[0].mxu0
      %v3379 = vadd.f32 0.0, %v3378
      %v3380 = vpop.f32.mrb[0].mxu0
      %v3381 = vpop.f32.mrb[0].mxu0
      %v3382 = vpop.f32.mrb[0].mxu0
      %3383 = vdwg.mxu0
      %v3384 = vadd.f32 %v2341, %v3371
      %v3385 = vadd.f32 %v2342, %v3374
      %v3386 = vadd.f32 %v2343, %v3379
      %s3387 = scalar_lea.vmem %s10, 1
      %v3388 = vld [vmem:[%s3387] sm:$0x1]
      %v3390 = vlaneseq
      %v3391 = vshrl.u32 %v3390, 7
      %v3392 = vsub.s32 0, %v3391
      %v3393 = vrot.slane %v3388, %v3392
      %v3395 = vadd.f32 %v3384, %v3393
      %v3396 = vadd.f32 %v3385, %v3393
      %v3397 = vadd.f32 %v3386, %v3393
      %s3398 = scalar_lea.vmem %s11, 1
      %v3399 = vld [vmem:[%s3398] sm:$0x1]
      %s3400 = scalar_lea.vmem %s12, 1
      %v3401 = vld [vmem:[%s3400] sm:$0x1]
      %3402 = vadd.xlane.f32.xlu0 %v3395
      %v3403 = vpop.xlane.xlu0 %3402
      %3404 = vadd.xlane.f32.xlu0 %v3396
      %v3405 = vpop.xlane.xlu0 %3404
      %v3406 = vsel %vm939, %v3397, 0.0
      %3407 = vadd.xlane.f32.xlu0 %v3406
      %v3408 = vpop.xlane.xlu0 %3407
      %v3409 = vmul.f32 %v3403, %v962
      %v3410 = vmul.f32 %v3405, %v962
      %v3411 = vmul.f32 %v3408, %v962
      %v3412 = vsub.f32 %v3395, %v3409
      %v3413 = vsub.f32 %v3396, %v3410
      %v3414 = vsub.f32 %v3397, %v3411
      %v3415 = vmul.f32 %v3412, %v3412
      %v3416 = vmul.f32 %v3413, %v3413
      %v3417 = vmul.f32 %v3414, %v3414
      %3418 = vadd.xlane.f32.xlu0 %v3415
      %v3419 = vpop.xlane.xlu0 %3418
      %3420 = vadd.xlane.f32.xlu0 %v3416
      %v3421 = vpop.xlane.xlu0 %3420
      %v3422 = vsel %vm939, %v3417, 0.0
      %3423 = vadd.xlane.f32.xlu0 %v3422
      %v3424 = vpop.xlane.xlu0 %3423
      %v3425 = vmul.f32 %v3419, %v962
      %v3426 = vmul.f32 %v3421, %v962
      %v3427 = vmul.f32 %v3424, %v962
      %v3428 = vadd.f32 %v3425, 1e-06
      %v3429 = vadd.f32 %v3426, 1e-06
      %v3430 = vadd.f32 %v3427, 1e-06
      %v3431 = vrsqrt.pop %v3428
      %v3432 = vrsqrt.pop %v3429
      %v3433 = vrsqrt.pop %v3430
      %v3434 = vmul.f32 %v3412, %v3431
      %v3435 = vmul.f32 %v3413, %v3432
      %v3436 = vmul.f32 %v3414, %v3433
      %v3438 = vlaneseq
      %v3439 = vshrl.u32 %v3438, 7
      %v3440 = vsub.s32 0, %v3439
      %v3441 = vrot.slane %v3399, %v3440
      %v3443 = vmul.f32 %v3434, %v3441
      %v3444 = vmul.f32 %v3435, %v3441
      %v3445 = vmul.f32 %v3436, %v3441
      %v3447 = vlaneseq
      %v3448 = vshrl.u32 %v3447, 7
      %v3449 = vsub.s32 0, %v3448
      %v3450 = vrot.slane %v3401, %v3449
      %v3452 = vadd.f32 %v3443, %v3450
      %v3453 = vadd.f32 %v3444, %v3450
      %v3454 = vadd.f32 %v3445, %v3450
      %s3455 = scalar_lea.vmem %s13, 256
      %v3456 = vld [vmem:[%s3455] sm:$0xff]
      %v3457 = vld [vmem:[%s3455 + $0x8] sm:$0xff]
      %v3458 = vld [vmem:[%s3455 + $0x10] sm:$0xff]
      %v3459 = vld [vmem:[%s3455 + $0x18] sm:$0xff]
      %v3460 = vld [vmem:[%s3455 + $0x20] sm:$0xff]
      %v3461 = vld [vmem:[%s3455 + $0x28] sm:$0xff]
      %v3462 = vld [vmem:[%s3455 + $0x30] sm:$0xff]
      %v3463 = vld [vmem:[%s3455 + $0x38] sm:$0xff]
      %v3464 = vld [vmem:[%s3455 + $0x40] sm:$0xff]
      %v3465 = vld [vmem:[%s3455 + $0x48] sm:$0xff]
      %v3466 = vld [vmem:[%s3455 + $0x50] sm:$0xff]
      %v3467 = vld [vmem:[%s3455 + $0x58] sm:$0xff]
      %v3468 = vld [vmem:[%s3455 + $0x60] sm:$0xff]
      %v3469 = vld [vmem:[%s3455 + $0x68] sm:$0xff]
      %v3470 = vld [vmem:[%s3455 + $0x70] sm:$0xff]
      %v3471 = vld [vmem:[%s3455 + $0x78] sm:$0xff]
      %v3472 = vld [vmem:[%s3455 + $0x80] sm:$0xff]
      %v3473 = vld [vmem:[%s3455 + $0x88] sm:$0xff]
      %v3474 = vld [vmem:[%s3455 + $0x90] sm:$0xff]
      %v3475 = vld [vmem:[%s3455 + $0x98] sm:$0xff]
      %v3476 = vld [vmem:[%s3455 + $0xa0] sm:$0xff]
      %v3477 = vld [vmem:[%s3455 + $0xa8] sm:$0xff]
      %v3478 = vld [vmem:[%s3455 + $0xb0] sm:$0xff]
      %v3479 = vld [vmem:[%s3455 + $0xb8] sm:$0xff]
      %v3480 = vld [vmem:[%s3455 + $0xc0] sm:$0xff]
      %v3481 = vld [vmem:[%s3455 + $0xc8] sm:$0xff]
      %v3482 = vld [vmem:[%s3455 + $0xd0] sm:$0xff]
      %v3483 = vld [vmem:[%s3455 + $0xd8] sm:$0xff]
      %v3484 = vld [vmem:[%s3455 + $0xe0] sm:$0xff]
      %v3485 = vld [vmem:[%s3455 + $0xe8] sm:$0xff]
      %v3486 = vld [vmem:[%s3455 + $0xf0] sm:$0xff]
      %v3487 = vld [vmem:[%s3455 + $0xf8] sm:$0xff]
      %v3488 = vpack.c.bf16 %v3453, %v3452
      %v3489 = vpack.c.bf16 %v3454, %v3454
      %v3490 = vpack.c.bf16 %v3458, %v3456
      %v3491 = vpack.c.bf16 %v3459, %v3457
      %v3492 = vpack.c.bf16 %v3462, %v3460
      %v3493 = vpack.c.bf16 %v3463, %v3461
      %v3494 = vpack.c.bf16 %v3466, %v3464
      %v3495 = vpack.c.bf16 %v3467, %v3465
      %v3496 = vpack.c.bf16 %v3470, %v3468
      %v3497 = vpack.c.bf16 %v3471, %v3469
      %v3498 = vpack.c.bf16 %v3474, %v3472
      %v3499 = vpack.c.bf16 %v3475, %v3473
      %v3500 = vpack.c.bf16 %v3478, %v3476
      %v3501 = vpack.c.bf16 %v3479, %v3477
      %v3502 = vpack.c.bf16 %v3482, %v3480
      %v3503 = vpack.c.bf16 %v3483, %v3481
      %v3504 = vpack.c.bf16 %v3486, %v3484
      %v3505 = vpack.c.bf16 %v3487, %v3485
      %s3506 = scalar_lea.vmem %s14, 2
      %v3507 = vld [vmem:[%s3506] sm:$0x3]
      %v3509 = vlaneseq
      %v3510 = vshrl.u32 %v3509, 7
      %v3511 = vsub.s32 0, %v3510
      %v3512 = vrot.slane %v3507, %v3511
      %v3513 = vlaneseq
      %v3514 = vshrl.u32 %v3513, 7
      %v3515 = vsub.s32 1, %v3514
      %v3516 = vrot.slane %v3507, %v3515
      %3519 = vmatprep.subr.bf16.mxu0 %v3491
      %3520 = vmatpush1.bf16.msra.mxu0 %v3490
      %3521 = vmatprep.subr.bf16.mxu0 %v3493
      %3522 = vmatpush1.bf16.msra.mxu0 %v3492
      %3523 = vmatprep.subr.bf16.mxu0 %v3495
      %3524 = vmatpush1.bf16.msra.mxu0 %v3494
      %3525 = vmatprep.subr.bf16.mxu0 %v3497
      %3526 = vmatpush1.bf16.msra.mxu0 %v3496
      %3527 = vmatprep.subr.bf16.mxu0 %v3499
      %3528 = vmatpush1.bf16.msra.mxu0 %v3498
      %3529 = vmatprep.subr.bf16.mxu0 %v3501
      %3530 = vmatpush1.bf16.msra.mxu0 %v3500
      %3531 = vmatprep.subr.bf16.mxu0 %v3503
      %3532 = vmatpush1.bf16.msra.mxu0 %v3502
      %3533 = vmatprep.subr.bf16.mxu0 %v3505
      %3534 = vmatpush1.bf16.msra.mxu0 %v3504
      %3535 = vmatprep.subr.bf16.mxu0 0
      %3536 = vmatpush1.bf16.msra.mxu0 0
      %3537 = vmatprep.subr.bf16.mxu0 0
      %3538 = vmatpush1.bf16.msra.mxu0 0
      %3539 = vmatprep.subr.bf16.mxu0 0
      %3540 = vmatpush1.bf16.msra.mxu0 0
      %3541 = vmatprep.subr.bf16.mxu0 0
      %3542 = vmatpush1.bf16.msra.mxu0 0
      %3543 = vmatprep.subr.bf16.mxu0 0
      %3544 = vmatpush1.bf16.msra.mxu0 0
      %3545 = vmatprep.subr.bf16.mxu0 0
      %3546 = vmatpush1.bf16.msra.mxu0 0
      %3547 = vmatprep.subr.bf16.mxu0 0
      %3548 = vmatpush1.bf16.msra.mxu0 0
      %3549 = vmatprep.subr.bf16.mxu0 0
      %3550 = vmatpush1.bf16.msra.mxu0 0
      %3551 = vmatprep.mubr.bf16.mxu0 0
      %3552 = vmatmul.mubr.bf16.gmra.mrb[0].mxu0 %v3488
      %v3553 = vpop.f32.mrb[0].mxu0
      %v3554 = vadd.f32 %v3512, %v3553
      %v3555 = vpop.f32.mrb[0].mxu0
      %v3556 = vadd.f32 %v3516, %v3555
      %v3557 = vpop.f32.mrb[0].mxu0
      %v3558 = vadd.f32 %v3512, %v3557
      %v3559 = vpop.f32.mrb[0].mxu0
      %v3560 = vadd.f32 %v3516, %v3559
      %3561 = vmatprep.mubr.bf16.mxu0 0
      %3562 = vmatmul.mubr.bf16.gmra.mrb[0].mxu0 %v3489
      %v3563 = vpop.f32.mrb[0].mxu0
      %v3564 = vadd.f32 %v3512, %v3563
      %v3565 = vpop.f32.mrb[0].mxu0
      %v3566 = vadd.f32 %v3516, %v3565
      %v3567 = vpop.f32.mrb[0].mxu0
      %v3568 = vpop.f32.mrb[0].mxu0
      %3569 = vdwg.mxu0
      %v3570 = vmul.f32 %v3554, %v3554
      %v3571 = vmul.f32 %v3556, %v3556
      %v3572 = vmul.f32 %v3558, %v3558
      %v3573 = vmul.f32 %v3560, %v3560
      %v3574 = vmul.f32 %v3564, %v3564
      %v3575 = vmul.f32 %v3566, %v3566
      %v3576 = vmul.f32 %v3554, %v3570
      %v3577 = vmul.f32 %v3556, %v3571
      %v3578 = vmul.f32 %v3558, %v3572
      %v3579 = vmul.f32 %v3560, %v3573
      %v3580 = vmul.f32 %v3564, %v3574
      %v3581 = vmul.f32 %v3566, %v3575
      %v3582 = vmul.f32 %v3576, 0.044715
      %v3583 = vmul.f32 %v3577, 0.044715
      %v3584 = vmul.f32 %v3578, 0.044715
      %v3585 = vmul.f32 %v3579, 0.044715
      %v3586 = vmul.f32 %v3580, 0.044715
      %v3587 = vmul.f32 %v3581, 0.044715
      %v3588 = vadd.f32 %v3554, %v3582
      %v3589 = vadd.f32 %v3556, %v3583
      %v3590 = vadd.f32 %v3558, %v3584
      %v3591 = vadd.f32 %v3560, %v3585
      %v3592 = vadd.f32 %v3564, %v3586
      %v3593 = vadd.f32 %v3566, %v3587
      %v3594 = vmul.f32 %v3588, 0.7978846
      %v3595 = vmul.f32 %v3589, 0.7978846
      %v3596 = vmul.f32 %v3590, 0.7978846
      %v3597 = vmul.f32 %v3591, 0.7978846
      %v3598 = vmul.f32 %v3592, 0.7978846
      %v3599 = vmul.f32 %v3593, 0.7978846
      %v3600 = vtanh.pop %v3594
      %v3601 = vtanh.pop %v3595
      %v3602 = vtanh.pop %v3596
      %v3603 = vtanh.pop %v3597
      %v3604 = vtanh.pop %v3598
      %v3605 = vtanh.pop %v3599
      %v3606 = vadd.f32 %v3600, 1.0
      %v3607 = vadd.f32 %v3601, 1.0
      %v3608 = vadd.f32 %v3602, 1.0
      %v3609 = vadd.f32 %v3603, 1.0
      %v3610 = vadd.f32 %v3604, 1.0
      %v3611 = vadd.f32 %v3605, 1.0
      %v3612 = vmul.f32 %v3606, 0.5
      %v3613 = vmul.f32 %v3607, 0.5
      %v3614 = vmul.f32 %v3608, 0.5
      %v3615 = vmul.f32 %v3609, 0.5
      %v3616 = vmul.f32 %v3610, 0.5
      %v3617 = vmul.f32 %v3611, 0.5
      %v3618 = vmul.f32 %v3554, %v3612
      %v3619 = vmul.f32 %v3556, %v3613
      %v3620 = vmul.f32 %v3558, %v3614
      %v3621 = vmul.f32 %v3560, %v3615
      %v3622 = vmul.f32 %v3564, %v3616
      %v3623 = vmul.f32 %v3566, %v3617
      %s3624 = scalar_lea.vmem %s15, 256
      %v3625 = vld [vmem:[%s3624] sm:$0xff]
      %v3626 = vld [vmem:[%s3624 + $0x8] sm:$0xff]
      %v3627 = vld [vmem:[%s3624 + $0x10] sm:$0xff]
      %v3628 = vld [vmem:[%s3624 + $0x18] sm:$0xff]
      %v3629 = vld [vmem:[%s3624 + $0x20] sm:$0xff]
      %v3630 = vld [vmem:[%s3624 + $0x28] sm:$0xff]
      %v3631 = vld [vmem:[%s3624 + $0x30] sm:$0xff]
      %v3632 = vld [vmem:[%s3624 + $0x38] sm:$0xff]
      %v3633 = vld [vmem:[%s3624 + $0x40] sm:$0xff]
      %v3634 = vld [vmem:[%s3624 + $0x48] sm:$0xff]
      %v3635 = vld [vmem:[%s3624 + $0x50] sm:$0xff]
      %v3636 = vld [vmem:[%s3624 + $0x58] sm:$0xff]
      %v3637 = vld [vmem:[%s3624 + $0x60] sm:$0xff]
      %v3638 = vld [vmem:[%s3624 + $0x68] sm:$0xff]
      %v3639 = vld [vmem:[%s3624 + $0x70] sm:$0xff]
      %v3640 = vld [vmem:[%s3624 + $0x78] sm:$0xff]
      %v3641 = vld [vmem:[%s3624 + $0x80] sm:$0xff]
      %v3642 = vld [vmem:[%s3624 + $0x88] sm:$0xff]
      %v3643 = vld [vmem:[%s3624 + $0x90] sm:$0xff]
      %v3644 = vld [vmem:[%s3624 + $0x98] sm:$0xff]
      %v3645 = vld [vmem:[%s3624 + $0xa0] sm:$0xff]
      %v3646 = vld [vmem:[%s3624 + $0xa8] sm:$0xff]
      %v3647 = vld [vmem:[%s3624 + $0xb0] sm:$0xff]
      %v3648 = vld [vmem:[%s3624 + $0xb8] sm:$0xff]
      %v3649 = vld [vmem:[%s3624 + $0xc0] sm:$0xff]
      %v3650 = vld [vmem:[%s3624 + $0xc8] sm:$0xff]
      %v3651 = vld [vmem:[%s3624 + $0xd0] sm:$0xff]
      %v3652 = vld [vmem:[%s3624 + $0xd8] sm:$0xff]
      %v3653 = vld [vmem:[%s3624 + $0xe0] sm:$0xff]
      %v3654 = vld [vmem:[%s3624 + $0xe8] sm:$0xff]
      %v3655 = vld [vmem:[%s3624 + $0xf0] sm:$0xff]
      %v3656 = vld [vmem:[%s3624 + $0xf8] sm:$0xff]
      %v3657 = vpack.c.bf16 %v3620, %v3618
      %v3658 = vpack.c.bf16 %v3621, %v3619
      %v3659 = vpack.c.bf16 %v3622, %v3622
      %v3660 = vpack.c.bf16 %v3623, %v3623
      %v3661 = vpack.c.bf16 %v3626, %v3625
      %v3662 = vpack.c.bf16 %v3628, %v3627
      %v3663 = vpack.c.bf16 %v3630, %v3629
      %v3664 = vpack.c.bf16 %v3632, %v3631
      %v3665 = vpack.c.bf16 %v3634, %v3633
      %v3666 = vpack.c.bf16 %v3636, %v3635
      %v3667 = vpack.c.bf16 %v3638, %v3637
      %v3668 = vpack.c.bf16 %v3640, %v3639
      %v3669 = vpack.c.bf16 %v3642, %v3641
      %v3670 = vpack.c.bf16 %v3644, %v3643
      %v3671 = vpack.c.bf16 %v3646, %v3645
      %v3672 = vpack.c.bf16 %v3648, %v3647
      %v3673 = vpack.c.bf16 %v3650, %v3649
      %v3674 = vpack.c.bf16 %v3652, %v3651
      %v3675 = vpack.c.bf16 %v3654, %v3653
      %v3676 = vpack.c.bf16 %v3656, %v3655
      %3677 = vmatprep.subr.bf16.mxu0 0
      %3678 = vmatpush1.bf16.msra.mxu0 %v3661
      %3679 = vmatprep.subr.bf16.mxu0 0
      %3680 = vmatpush1.bf16.msra.mxu0 %v3662
      %3681 = vmatprep.subr.bf16.mxu0 0
      %3682 = vmatpush1.bf16.msra.mxu0 %v3663
      %3683 = vmatprep.subr.bf16.mxu0 0
      %3684 = vmatpush1.bf16.msra.mxu0 %v3664
      %3685 = vmatprep.subr.bf16.mxu0 0
      %3686 = vmatpush1.bf16.msra.mxu0 %v3665
      %3687 = vmatprep.subr.bf16.mxu0 0
      %3688 = vmatpush1.bf16.msra.mxu0 %v3666
      %3689 = vmatprep.subr.bf16.mxu0 0
      %3690 = vmatpush1.bf16.msra.mxu0 %v3667
      %3691 = vmatprep.subr.bf16.mxu0 0
      %3692 = vmatpush1.bf16.msra.mxu0 %v3668
      %3693 = vmatprep.subr.bf16.mxu0 0
      %3694 = vmatpush1.bf16.msra.mxu0 %v3669
      %3695 = vmatprep.subr.bf16.mxu0 0
      %3696 = vmatpush1.bf16.msra.mxu0 %v3670
      %3697 = vmatprep.subr.bf16.mxu0 0
      %3698 = vmatpush1.bf16.msra.mxu0 %v3671
      %3699 = vmatprep.subr.bf16.mxu0 0
      %3700 = vmatpush1.bf16.msra.mxu0 %v3672
      %3701 = vmatprep.subr.bf16.mxu0 0
      %3702 = vmatpush1.bf16.msra.mxu0 %v3673
      %3703 = vmatprep.subr.bf16.mxu0 0
      %3704 = vmatpush1.bf16.msra.mxu0 %v3674
      %3705 = vmatprep.subr.bf16.mxu0 0
      %3706 = vmatpush1.bf16.msra.mxu0 %v3675
      %3707 = vmatprep.subr.bf16.mxu0 0
      %3708 = vmatpush1.bf16.msra.mxu0 %v3676
      %3709 = vmatprep.mubr.bf16.mxu0 %v3658
      %3710 = vmatmul.mubr.bf16.gmra.mrb[0].mxu0 %v3657
      %v3711 = vpop.f32.mrb[0].mxu0
      %v3712 = vadd.f32 0.0, %v3711
      %v3713 = vpop.f32.mrb[0].mxu0
      %v3714 = vpop.f32.mrb[0].mxu0
      %v3715 = vadd.f32 0.0, %v3714
      %v3716 = vpop.f32.mrb[0].mxu0
      %3717 = vmatprep.mubr.bf16.mxu0 %v3660
      %3718 = vmatmul.mubr.bf16.gmra.mrb[0].mxu0 %v3659
      %v3719 = vpop.f32.mrb[0].mxu0
      %v3720 = vadd.f32 0.0, %v3719
      %v3721 = vpop.f32.mrb[0].mxu0
      %v3722 = vpop.f32.mrb[0].mxu0
      %v3723 = vpop.f32.mrb[0].mxu0
      %3724 = vdwg.mxu0
      %v3725 = vadd.f32 %v3395, %v3712
      %v3726 = vadd.f32 %v3396, %v3715
      %v3727 = vadd.f32 %v3397, %v3720
      %s3728 = scalar_lea.vmem %s16, 1
      %v3729 = vld [vmem:[%s3728] sm:$0x1]
      %v3731 = vlaneseq
      %v3732 = vshrl.u32 %v3731, 7
      %v3733 = vsub.s32 0, %v3732
      %v3734 = vrot.slane %v3729, %v3733
      %v3736 = vadd.f32 %v3725, %v3734
      %v3737 = vadd.f32 %v3726, %v3734
      %v3738 = vadd.f32 %v3727, %v3734
      %v3739 = vld [vmem:[%s17] sm:$0x1]
      %v3740 = vld [vmem:[%s18] sm:$0x1]
      %3741 = vadd.xlane.f32.xlu0 %v3736
      %v3742 = vpop.xlane.xlu0 %3741
      %3743 = vadd.xlane.f32.xlu0 %v3737
      %v3744 = vpop.xlane.xlu0 %3743
      %v3745 = vsel %vm939, %v3738, 0.0
      %3746 = vadd.xlane.f32.xlu0 %v3745
      %v3747 = vpop.xlane.xlu0 %3746
      %v3748 = vmul.f32 %v3742, %v962
      %v3749 = vmul.f32 %v3744, %v962
      %v3750 = vmul.f32 %v3747, %v962
      %v3751 = vsub.f32 %v3736, %v3748
      %v3752 = vsub.f32 %v3737, %v3749
      %v3753 = vsub.f32 %v3738, %v3750
      %v3754 = vmul.f32 %v3751, %v3751
      %v3755 = vmul.f32 %v3752, %v3752
      %v3756 = vmul.f32 %v3753, %v3753
      %3757 = vadd.xlane.f32.xlu0 %v3754
      %v3758 = vpop.xlane.xlu0 %3757
      %3759 = vadd.xlane.f32.xlu0 %v3755
      %v3760 = vpop.xlane.xlu0 %3759
      %v3761 = vsel %vm939, %v3756, 0.0
      %3762 = vadd.xlane.f32.xlu0 %v3761
      %v3763 = vpop.xlane.xlu0 %3762
      %v3764 = vmul.f32 %v3758, %v962
      %v3765 = vmul.f32 %v3760, %v962
      %v3766 = vmul.f32 %v3763, %v962
      %v3767 = vadd.f32 %v3764, 1e-06
      %v3768 = vadd.f32 %v3765, 1e-06
      %v3769 = vadd.f32 %v3766, 1e-06
      %v3770 = vrsqrt.pop %v3767
      %v3771 = vrsqrt.pop %v3768
      %v3772 = vrsqrt.pop %v3769
      %v3773 = vmul.f32 %v3751, %v3770
      %v3774 = vmul.f32 %v3752, %v3771
      %v3775 = vmul.f32 %v3753, %v3772
      %v3777 = vlaneseq
      %v3778 = vshrl.u32 %v3777, 7
      %v3779 = vsub.s32 0, %v3778
      %v3780 = vrot.slane %v3739, %v3779
      %v3782 = vmul.f32 %v3773, %v3780
      %v3783 = vmul.f32 %v3774, %v3780
      %v3784 = vmul.f32 %v3775, %v3780
      %v3786 = vlaneseq
      %v3787 = vshrl.u32 %v3786, 7
      %v3788 = vsub.s32 0, %v3787
      %v3789 = vrot.slane %v3740, %v3788
      %v3791 = vadd.f32 %v3782, %v3789
      %v3792 = vadd.f32 %v3783, %v3789
      %v3793 = vadd.f32 %v3784, %v3789
      %3794 = vst [vmem:[%s637 - $0x1] sm:$0xfe] %v3791
      %3795 = vst [vmem:[%s637 + $0x7] sm:$0xff] %v3792
      %3796 = vst [vmem:[%s637 + $0xf] sm:$0x1] %v3793
      %vm3797 = vcmask 1047553
      %v3798 = vsel %vm3797, %v3791, 0.0
      %3799 = vadd.xlane.f32.xlu0 %v3798
      %v3800 = vpop.xlane.xlu0 %3799
      %3801 = vadd.xlane.f32.xlu0 %v3792
      %v3802 = vpop.xlane.xlu0 %3801
      %v3803 = vsel %vm939, %v3793, 0.0
      %3804 = vadd.xlane.f32.xlu0 %v3803
      %v3805 = vpop.xlane.xlu0 %3804
      %v3806 = vmul.f32 %v3800, %v962
      %v3807 = vmul.f32 %v3802, %v962
      %v3808 = vmul.f32 %v3805, %v962
      %vm3809 = vcmask 7169
      %3810 = vst.msk [vmem:[%s642 - $0x1] sm:$0xfe] %vm3809, %v3806
      %vm3811 = vcmask 7168
      %3812 = vst.msk [vmem:[%s642 + $0x7] sm:$0xff] %vm3811, %v3807
      %vm3813 = vcmask 0
      %3814 = vst.msk [vmem:[%s642 + $0xf] sm:$0x1] %vm3813, %v3808
      %p3815 = scmp.lt.s32.totalorder %s32, 1
      %s3816 = scalar_select %p3815, %s32, 1
      %s3817 = smul.addr %s3816, 2
      %s3818 = smul.addr %s3817, 8
      %s3819 = scalar_lea.vmem %s19, %s3818
      %p3820 = scmp.lt.s32.totalorder %s32, 1
      %s3821 = scalar_select %p3820, %s32, 1
      %s3822 = smul.addr %s3821, 2
      %s3823 = smul.addr %s3822, 8
      %s3824 = scalar_lea.vmem %s20, %s3823
      // Predicated region
      $region97: #{build_transformer_forward.2} parent=95 // pred_check
        %p3825 = pneg %p454
      $region98: #{build_transformer_forward.2} parent=95 // pred_check_branch
        %3827 = sbr.rel (%p3825) target = $region100
      $region99: #{build_transformer_forward.2} parent=95 // pred_region
        _
      $region100: #{build_transformer_forward.2} parent=95 // pred_fallthru
        _
      // Predicated region
      $region101: #{build_transformer_forward.2} parent=95 // pred_check
        %p3828 = pneg %p480
      $region102: #{build_transformer_forward.2} parent=95 // pred_check_branch
        %3830 = sbr.rel (%p3828) target = $region104
      $region103: #{build_transformer_forward.2} parent=95 // pred_region
        _
      $region104: #{build_transformer_forward.2} parent=95 // pred_fallthru
        _
    $region96: #{build_transformer_forward.2} parent=5 // pred_fallthru
      _
    %p3831 = scmp.le.s32.totalorder 2, %s27
    // Predicated region
    $region105: #{build_transformer_forward.2} parent=5 // pred_check
      %p3832 = pneg %p3831
    $region106: #{build_transformer_forward.2} parent=5 // pred_check_branch
      %3834 = sbr.rel (%p3832) target = $region108
    $region107: #{build_transformer_forward.2} parent=5 // pred_region
      %s3835 = ssub.s32 %s27, 2
      // Predicated region
      $region109: #{build_transformer_forward.2} parent=107 // pred_check
        %p3836 = pneg %p460
      $region110: #{build_transformer_forward.2} parent=107 // pred_check_branch
        %3838 = sbr.rel (%p3836) target = $region112
      $region111: #{build_transformer_forward.2} parent=107 // pred_region
        %p3839 = scmp.lt.s32.totalorder %s33, 1
        %s3840 = scalar_select %p3839, %s33, 1
        %s3841 = smul.addr %s3840, 2
        %s3842 = smul.addr %s3841, 8
        %s3843 = scalar_lea.vmem %s19, %s3842
      $region112: #{build_transformer_forward.2} parent=107 // pred_fallthru
        _
      // Predicated region
      $region113: #{build_transformer_forward.2} parent=107 // pred_check
        %p3844 = pneg %p486
      $region114: #{build_transformer_forward.2} parent=107 // pred_check_branch
        %3846 = sbr.rel (%p3844) target = $region116
      $region115: #{build_transformer_forward.2} parent=107 // pred_region
        %p3847 = scmp.lt.s32.totalorder %s33, 1
        %s3848 = scalar_select %p3847, %s33, 1
        %s3849 = smul.addr %s3848, 2
        %s3850 = smul.addr %s3849, 8
        %s3851 = scalar_lea.vmem %s20, %s3850
      $region116: #{build_transformer_forward.2} parent=107 // pred_fallthru
        _
    $region108: #{build_transformer_forward.2} parent=5 // pred_fallthru
      _
  $region6: #{build_transformer_forward.2} parent=0 // loop_footer
    %s31 = sadd.s32 1, %s27
  $region7: #{build_transformer_forward.2} parent=0 // loop_footer_branch
    %26 = sbr.rel target = $region3
  $region8: #{build_transformer_forward.2} parent=0 // loop_exit
    _

</llo_original>
